<compile_context>
chip_gen: v7x
topology: tpu7x:2x2x1
jax: 0.10.0
libtpu: 0.0.40
codegen_flags: <defaults>
</compile_context>

<pallas_src>
import math
import functools

import jax
import jax.numpy as jnp
from jax.experimental import pallas as pl
from jax.experimental.pallas import tpu as pltpu


def _block_kernel(x_ref,
                  ln1_w_ref, ln1_b_ref,
                  w_attn_ref, b_attn_ref,
                  w_cproj_ref, b_cproj_ref,
                  ln2_w_ref, ln2_b_ref,
                  w_fc_ref, b_fc_ref,
                  w_mproj_ref, b_mproj_ref,
                  o_ref, *, n_head):
    """One grid step: (Bt, T, C) activations; all weights VMEM-resident."""
    Bt, T, C = x_ref.shape
    H = n_head
    Dh = C // H
    R = Bt * T
    scale = 1.0 / math.sqrt(Dh)
    mxu = w_attn_ref.dtype                 # bf16 MXU operands, f32 accumulation

    x = x_ref[...].reshape(R, C)           # leading-dim reshape: free

    def layer_norm(h, w_ref, b_ref):
        # matches F.layer_norm (biased variance, eps=1e-5); stays in f32
        mu = jnp.mean(h, axis=-1, keepdims=True)
        var = jnp.mean((h - mu) ** 2, axis=-1, keepdims=True)
        return (h - mu) * jax.lax.rsqrt(var + 1e-5) * w_ref[...] + b_ref[...]

    # ---------------- attention branch ----------------
    h1 = layer_norm(x, ln1_w_ref, ln1_b_ref)                         # (R, C)
    # fused QKV projection: one wide (R, C) @ (C, 3C) MXU matmul
    qkv = jnp.dot(h1.astype(mxu), w_attn_ref[...],
                  preferred_element_type=jnp.float32) + b_attn_ref[...]
    qkv = qkv.reshape(Bt, T, 3 * C)

    def head_major(base):
        # lane-slice each head, stack along a new leading (batch) axis:
        # layout plumbing only, no narrow per-head matmuls.
        parts = [qkv[:, :, base + h * Dh: base + (h + 1) * Dh] for h in range(H)]
        return jnp.stack(parts, axis=1).reshape(Bt * H, T, Dh)       # (Bt*H,T,Dh)

    q = head_major(0) * scale           # fold 1/sqrt(Dh) into q (small tensor)
    k = head_major(C)
    v = head_major(2 * C)

    # scores: single batched einsum over all (sequence, head) pairs
    s = jnp.einsum('bqd,bkd->bqk', q.astype(mxu), k.astype(mxu),
                   preferred_element_type=jnp.float32)               # (Bt*H,T,T)

    # causal mask from (T,1) vs (1,T) iotas; finite large-negative fill
    row = jax.lax.broadcasted_iota(jnp.int32, (T, 1), 0)
    col = jax.lax.broadcasted_iota(jnp.int32, (1, T), 1)
    causal = col <= row                                              # (T, T)
    s = jnp.where(causal[None, :, :], s, jnp.float32(-1e30))

    s = s - jnp.max(s, axis=-1, keepdims=True)
    p = jnp.exp(s)
    p = p * pl.reciprocal(jnp.sum(p, axis=-1, keepdims=True), approx=True)  # EUP

    y = jnp.einsum('bqk,bkd->bqd', p.astype(mxu), v.astype(mxu),
                   preferred_element_type=jnp.float32)               # (Bt*H,T,Dh)

    # heads back onto lanes: (Bt,H,T,Dh) -> concat over H -> (R, C), then one
    # (R, C) @ (C, C) output projection (no per-head matmuls / head-sum).
    y = y.reshape(Bt, H, T, Dh)
    y_cat = jnp.concatenate([y[:, h] for h in range(H)], axis=-1).reshape(R, C)
    attn_out = jnp.dot(y_cat.astype(mxu), w_cproj_ref[...],
                       preferred_element_type=jnp.float32) + b_cproj_ref[...]

    x1 = x + attn_out

    # ---------------- MLP branch ----------------
    h2 = layer_norm(x1, ln2_w_ref, ln2_b_ref)                        # (R, C)
    f = jnp.dot(h2.astype(mxu), w_fc_ref[...],
                preferred_element_type=jnp.float32) + b_fc_ref[...]  # (R, 4C)
    # tanh-approx GELU in f32 (matches the reference GELU module)
    g = 0.5 * f * (1.0 + jnp.tanh(math.sqrt(2.0 / math.pi) *
                                  (f + 0.044715 * f * f * f)))
    mlp_out = jnp.dot(g.astype(mxu), w_mproj_ref[...],
                      preferred_element_type=jnp.float32) + b_mproj_ref[...]

    o_ref[...] = (x1 + mlp_out).reshape(Bt, T, C).astype(o_ref.dtype)


def _vmem_limit_bytes():
    """~75% of per-core VMEM capped at 96 MiB: leaves headroom for Mosaic
    internal scratch + pipeline buffers (v7x 64MiB->48MiB, v5e/v6e 128->96)."""
    cap = 64 * 1024 * 1024           # conservative fallback: v7x per-TC budget
    try:
        cap = int(pltpu.get_tpu_info().vmem_capacity_bytes)
    except Exception:
        pass
    return min((cap * 3) // 4, 96 * 1024 * 1024)


def block_forward(x, params, n_head, mxu_dtype=jnp.bfloat16, seq_per_block=None):
    """x: (B, T, C) float32. params: canonical (PyTorch-like) parameter tuple."""
    (ln1_w, ln1_b, w_attn, b_attn, w_cproj, b_cproj,
     ln2_w, ln2_b, w_fc, b_fc, w_mproj, b_mproj) = params
    B, T, C = x.shape
    assert C % n_head == 0

    # rows per grid step: fold whole sequences together so each matmul's M dim
    # is taller (amortizes MXU fill/drain and per-step overhead).
    if seq_per_block is None:
        seq_per_block = 1
        for cand in range(min(B, max(1, 256 // T)), 0, -1):
            if B % cand == 0:
                seq_per_block = cand
                break
    Bt = seq_per_block
    assert B % Bt == 0

    # ---- wrapper-side (free) parameter layout / dtype plumbing ----
    args = (
        x,
        ln1_w.reshape(1, C).astype(jnp.float32),
        ln1_b.reshape(1, C).astype(jnp.float32),
        w_attn.astype(mxu_dtype),                        # (C, 3C)
        b_attn.reshape(1, 3 * C).astype(jnp.float32),
        w_cproj.astype(mxu_dtype),                       # (C, C)
        b_cproj.reshape(1, C).astype(jnp.float32),
        ln2_w.reshape(1, C).astype(jnp.float32),
        ln2_b.reshape(1, C).astype(jnp.float32),
        w_fc.astype(mxu_dtype),                          # (C, 4C)
        b_fc.reshape(1, 4 * C).astype(jnp.float32),
        w_mproj.astype(mxu_dtype),                       # (4C, C)
        b_mproj.reshape(1, C).astype(jnp.float32),
    )

    kernel = functools.partial(_block_kernel, n_head=n_head)

    def build(single_buffer_weights):
        def resident_spec(a):
            nd = a.ndim
            idx = lambda b, _nd=nd: (0,) * _nd       # constant block index
            if single_buffer_weights:
                # no block-index change across the grid -> no DMA to hide;
                # a single buffer halves the weights' VMEM footprint.
                return pl.BlockSpec(a.shape, idx, pipeline_mode=pl.Buffered(1))
            return pl.BlockSpec(a.shape, idx)

        in_specs = ([pl.BlockSpec((Bt, T, C), lambda b: (b, 0, 0))]
                    + [resident_spec(a) for a in args[1:]])
        out_specs = pl.BlockSpec((Bt, T, C), lambda b: (b, 0, 0))
        return pl.pallas_call(
            kernel,
            out_shape=jax.ShapeDtypeStruct((B, T, C), x.dtype),
            grid=(B // Bt,),
            in_specs=in_specs,
            out_specs=out_specs,
            compiler_params=pltpu.CompilerParams(
                dimension_semantics=("parallel",),       # shard steps across TCs
                vmem_limit_bytes=_vmem_limit_bytes()),
        )

    try:
        return build(True)(*args)
    except Exception:
        # pipeline_mode=pl.Buffered(1) is a VMEM-only optimization; fall back
        # to default double-buffered resident weights if this build rejects it.
        return build(False)(*args)


def init_params(key, n_embed):
    """Canonical params; Linear weights stored (in_features, out_features)."""
    C = n_embed
    ks = jax.random.split(key, 6)
    std = 0.02

    ln1_w = jnp.ones((C,), jnp.float32)
    ln1_b = jnp.zeros((C,), jnp.float32)
    ln2_w = jnp.ones((C,), jnp.float32)
    ln2_b = jnp.zeros((C,), jnp.float32)

    w_attn = std * jax.random.normal(ks[0], (C, 3 * C), jnp.float32)
    b_attn = std * jax.random.normal(ks[1], (3 * C,), jnp.float32)
    w_cproj = std * jax.random.normal(ks[2], (C, C), jnp.float32)
    b_cproj = jnp.zeros((C,), jnp.float32)
    w_fc = std * jax.random.normal(ks[3], (C, 4 * C), jnp.float32)
    b_fc = std * jax.random.normal(ks[4], (4 * C,), jnp.float32)
    w_mproj = std * jax.random.normal(ks[5], (4 * C, C), jnp.float32)
    b_mproj = jnp.zeros((C,), jnp.float32)

    return (ln1_w, ln1_b, w_attn, b_attn, w_cproj, b_cproj,
            ln2_w, ln2_b, w_fc, b_fc, w_mproj, b_mproj)


def block_reference(x, params, n_head):
    """Pure-JAX f32 reference matching the PyTorch forward (dropout=0)."""
    (ln1_w, ln1_b, w_attn, b_attn, w_cproj, b_cproj,
     ln2_w, ln2_b, w_fc, b_fc, w_mproj, b_mproj) = params
    B, T, C = x.shape
    Dh = C // n_head

    def ln(h, w, b):
        mu = jnp.mean(h, -1, keepdims=True)
        var = jnp.mean((h - mu) ** 2, -1, keepdims=True)
        return (h - mu) / jnp.sqrt(var + 1e-5) * w + b

    h1 = ln(x, ln1_w, ln1_b)
    qkv = h1 @ w_attn + b_attn
    q, k, v = jnp.split(qkv, 3, axis=-1)
    q = q.reshape(B, T, n_head, Dh).transpose(0, 2, 1, 3)
    k = k.reshape(B, T, n_head, Dh).transpose(0, 2, 1, 3)
    v = v.reshape(B, T, n_head, Dh).transpose(0, 2, 1, 3)
    att = (q @ k.transpose(0, 1, 3, 2)) / math.sqrt(Dh)
    mask = jnp.tril(jnp.ones((T, T), bool))
    att = jnp.where(mask[None, None], att, -jnp.inf)
    att = jax.nn.softmax(att, axis=-1)
    y = (att @ v).transpose(0, 2, 1, 3).reshape(B, T, C)
    x1 = x + (y @ w_cproj + b_cproj)

    h2 = ln(x1, ln2_w, ln2_b)
    f = h2 @ w_fc + b_fc
    g = 0.5 * f * (1.0 + jnp.tanh(math.sqrt(2.0 / math.pi) *
                                  (f + 0.044715 * f ** 3)))
    return x1 + (g @ w_mproj + b_mproj)


if __name__ == "__main__":
    # config: n_embed=128 (multiple of 128 -> lane-dense), n_head=4,
    #         block_size=8, bias=True, dropout=0.0
    B, T, C, H = 2, 8, 128, 4

    key = jax.random.PRNGKey(0)
    kx, kp = jax.random.split(key)
    x = jax.random.normal(kx, (B, T, C), jnp.float32)
    params = init_params(kp, C)

    out = jax.block_until_ready(block_forward(x, params, H))
    ref = block_reference(x, params, H)

    assert out.shape == (B, T, C)
    # bf16 MXU operands with f32 accumulation -> looser tolerance than pure f32
    assert jnp.allclose(out, ref, atol=2e-2, rtol=2e-2), "mismatch vs reference"

    print("KERNEL_OK")
</pallas_src>

<mosaic_0001>
module attributes {stable_mosaic.version = 11 : i64} {
  func.func @_block_kernel(%arg0: i32, %arg1: memref<2x8x128xf32, #tpu.memory_space<vmem>>, %arg2: memref<1x128xf32, #tpu.memory_space<vmem>>, %arg3: memref<1x128xf32, #tpu.memory_space<vmem>>, %arg4: memref<128x384xbf16, #tpu.memory_space<vmem>>, %arg5: memref<1x384xf32, #tpu.memory_space<vmem>>, %arg6: memref<128x128xbf16, #tpu.memory_space<vmem>>, %arg7: memref<1x128xf32, #tpu.memory_space<vmem>>, %arg8: memref<1x128xf32, #tpu.memory_space<vmem>>, %arg9: memref<1x128xf32, #tpu.memory_space<vmem>>, %arg10: memref<128x512xbf16, #tpu.memory_space<vmem>>, %arg11: memref<1x512xf32, #tpu.memory_space<vmem>>, %arg12: memref<512x128xbf16, #tpu.memory_space<vmem>>, %arg13: memref<1x128xf32, #tpu.memory_space<vmem>>, %arg14: memref<2x8x128xf32, #tpu.memory_space<vmem>>) attributes {dimension_semantics = [#tpu.dimension_semantics<parallel>], iteration_bounds = array<i64: 1>, scalar_prefetch = 0 : i64, scratch_operands = 0 : i64, tpu.core_type = #tpu.core_type<tc>, window_params = [{transform_indices = @transform_0, window_bounds = array<i64: 2, 8, 128>}, {pipeline_mode = #tpu.pipeline_mode<synchronous>, transform_indices = @transform_1, window_bounds = array<i64: 1, 128>}, {pipeline_mode = #tpu.pipeline_mode<synchronous>, transform_indices = @transform_2, window_bounds = array<i64: 1, 128>}, {pipeline_mode = #tpu.pipeline_mode<synchronous>, transform_indices = @transform_3, window_bounds = array<i64: 128, 384>}, {pipeline_mode = #tpu.pipeline_mode<synchronous>, transform_indices = @transform_4, window_bounds = array<i64: 1, 384>}, {pipeline_mode = #tpu.pipeline_mode<synchronous>, transform_indices = @transform_5, window_bounds = array<i64: 128, 128>}, {pipeline_mode = #tpu.pipeline_mode<synchronous>, transform_indices = @transform_6, window_bounds = array<i64: 1, 128>}, {pipeline_mode = #tpu.pipeline_mode<synchronous>, transform_indices = @transform_7, window_bounds = array<i64: 1, 128>}, {pipeline_mode = #tpu.pipeline_mode<synchronous>, transform_indices = @transform_8, window_bounds = array<i64: 1, 128>}, {pipeline_mode = #tpu.pipeline_mode<synchronous>, transform_indices = @transform_9, window_bounds = array<i64: 128, 512>}, {pipeline_mode = #tpu.pipeline_mode<synchronous>, transform_indices = @transform_10, window_bounds = array<i64: 1, 512>}, {pipeline_mode = #tpu.pipeline_mode<synchronous>, transform_indices = @transform_11, window_bounds = array<i64: 512, 128>}, {pipeline_mode = #tpu.pipeline_mode<synchronous>, transform_indices = @transform_12, window_bounds = array<i64: 1, 128>}, {transform_indices = @transform_13, window_bounds = array<i64: 2, 8, 128>}]} {
    %c0 = arith.constant 0 : index
    %c0_0 = arith.constant 0 : index
    %c0_1 = arith.constant 0 : index
    %0 = vector.load %arg1[%c0, %c0_0, %c0_1] : memref<2x8x128xf32, #tpu.memory_space<vmem>>, vector<2x8x128xf32>
    %1 = vector.shape_cast %0 : vector<2x8x128xf32> to vector<16x128xf32>
    %cst = arith.constant dense<0.000000e+00> : vector<16xf32>
    %2 = vector.multi_reduction <add>, %1, %cst [1] : vector<16x128xf32> to vector<16xf32>
    %3 = vector.shape_cast %2 : vector<16xf32> to vector<16x1xf32>
    %cst_2 = arith.constant 1.280000e+02 : f32
    %4 = vector.broadcast %cst_2 : f32 to vector<16x1xf32>
    %5 = arith.divf %3, %4 : vector<16x1xf32>
    %6 = vector.broadcast %5 : vector<16x1xf32> to vector<16x128xf32>
    %7 = arith.subf %1, %6 : vector<16x128xf32>
    %8 = arith.mulf %7, %7 : vector<16x128xf32>
    %cst_3 = arith.constant dense<0.000000e+00> : vector<16xf32>
    %9 = vector.multi_reduction <add>, %8, %cst_3 [1] : vector<16x128xf32> to vector<16xf32>
    %10 = vector.shape_cast %9 : vector<16xf32> to vector<16x1xf32>
    %cst_4 = arith.constant 1.280000e+02 : f32
    %11 = vector.broadcast %cst_4 : f32 to vector<16x1xf32>
    %12 = arith.divf %10, %11 : vector<16x1xf32>
    %13 = vector.broadcast %5 : vector<16x1xf32> to vector<16x128xf32>
    %14 = arith.subf %1, %13 : vector<16x128xf32>
    %cst_5 = arith.constant 9.99999974E-6 : f32
    %15 = vector.broadcast %cst_5 : f32 to vector<16x1xf32>
    %16 = arith.addf %12, %15 : vector<16x1xf32>
    %17 = math.rsqrt %16 : vector<16x1xf32>
    %18 = vector.broadcast %17 : vector<16x1xf32> to vector<16x128xf32>
    %19 = arith.mulf %14, %18 : vector<16x128xf32>
    %c0_6 = arith.constant 0 : index
    %c0_7 = arith.constant 0 : index
    %20 = vector.load %arg2[%c0_6, %c0_7] : memref<1x128xf32, #tpu.memory_space<vmem>>, vector<1x128xf32>
    %21 = vector.broadcast %20 : vector<1x128xf32> to vector<16x128xf32>
    %22 = arith.mulf %19, %21 : vector<16x128xf32>
    %c0_8 = arith.constant 0 : index
    %c0_9 = arith.constant 0 : index
    %23 = vector.load %arg3[%c0_8, %c0_9] : memref<1x128xf32, #tpu.memory_space<vmem>>, vector<1x128xf32>
    %24 = vector.broadcast %23 : vector<1x128xf32> to vector<16x128xf32>
    %25 = arith.addf %22, %24 : vector<16x128xf32>
    %26 = arith.truncf %25 : vector<16x128xf32> to vector<16x128xbf16>
    %c0_10 = arith.constant 0 : index
    %c0_11 = arith.constant 0 : index
    %27 = vector.load %arg4[%c0_10, %c0_11] : memref<128x384xbf16, #tpu.memory_space<vmem>>, vector<128x384xbf16>
    %cst_12 = arith.constant dense<0.000000e+00> : vector<16x384xf32>
    %28 = tpu.matmul %26, %27, %cst_12 {dimension_numbers = #tpu.dot_dimension_numbers<[1], [0], [0], [1], [0, 0, 1, 1], [], []>} : vector<16x128xbf16>, vector<128x384xbf16>, vector<16x384xf32> -> vector<16x384xf32>
    %c0_13 = arith.constant 0 : index
    %c0_14 = arith.constant 0 : index
    %29 = vector.load %arg5[%c0_13, %c0_14] : memref<1x384xf32, #tpu.memory_space<vmem>>, vector<1x384xf32>
    %30 = vector.broadcast %29 : vector<1x384xf32> to vector<16x384xf32>
    %31 = arith.addf %28, %30 : vector<16x384xf32>
    %32 = vector.shape_cast %31 : vector<16x384xf32> to vector<2x8x384xf32>
    %33 = vector.extract_strided_slice %32 {offsets = [0, 0, 0], sizes = [2, 8, 32], strides = [1, 1, 1]} : vector<2x8x384xf32> to vector<2x8x32xf32>
    %34 = vector.extract_strided_slice %32 {offsets = [0, 0, 32], sizes = [2, 8, 32], strides = [1, 1, 1]} : vector<2x8x384xf32> to vector<2x8x32xf32>
    %35 = vector.extract_strided_slice %32 {offsets = [0, 0, 64], sizes = [2, 8, 32], strides = [1, 1, 1]} : vector<2x8x384xf32> to vector<2x8x32xf32>
    %36 = vector.extract_strided_slice %32 {offsets = [0, 0, 96], sizes = [2, 8, 32], strides = [1, 1, 1]} : vector<2x8x384xf32> to vector<2x8x32xf32>
    %37 = vector.shape_cast %33 : vector<2x8x32xf32> to vector<2x1x8x32xf32>
    %38 = vector.shape_cast %34 : vector<2x8x32xf32> to vector<2x1x8x32xf32>
    %39 = vector.shape_cast %35 : vector<2x8x32xf32> to vector<2x1x8x32xf32>
    %40 = vector.shape_cast %36 : vector<2x8x32xf32> to vector<2x1x8x32xf32>
    %41 = tpu.concatenate %37, %38, %39, %40 in 1 : vector<2x1x8x32xf32>, vector<2x1x8x32xf32>, vector<2x1x8x32xf32>, vector<2x1x8x32xf32> -> vector<2x4x8x32xf32>
    %42 = vector.shape_cast %41 : vector<2x4x8x32xf32> to vector<8x8x32xf32>
    %cst_15 = arith.constant 0.176776692 : f32
    %43 = vector.broadcast %cst_15 : f32 to vector<8x8x32xf32>
    %44 = arith.mulf %42, %43 : vector<8x8x32xf32>
    %45 = vector.extract_strided_slice %32 {offsets = [0, 0, 128], sizes = [2, 8, 32], strides = [1, 1, 1]} : vector<2x8x384xf32> to vector<2x8x32xf32>
    %46 = vector.extract_strided_slice %32 {offsets = [0, 0, 160], sizes = [2, 8, 32], strides = [1, 1, 1]} : vector<2x8x384xf32> to vector<2x8x32xf32>
    %47 = vector.extract_strided_slice %32 {offsets = [0, 0, 192], sizes = [2, 8, 32], strides = [1, 1, 1]} : vector<2x8x384xf32> to vector<2x8x32xf32>
    %48 = vector.extract_strided_slice %32 {offsets = [0, 0, 224], sizes = [2, 8, 32], strides = [1, 1, 1]} : vector<2x8x384xf32> to vector<2x8x32xf32>
    %49 = vector.shape_cast %45 : vector<2x8x32xf32> to vector<2x1x8x32xf32>
    %50 = vector.shape_cast %46 : vector<2x8x32xf32> to vector<2x1x8x32xf32>
    %51 = vector.shape_cast %47 : vector<2x8x32xf32> to vector<2x1x8x32xf32>
    %52 = vector.shape_cast %48 : vector<2x8x32xf32> to vector<2x1x8x32xf32>
    %53 = tpu.concatenate %49, %50, %51, %52 in 1 : vector<2x1x8x32xf32>, vector<2x1x8x32xf32>, vector<2x1x8x32xf32>, vector<2x1x8x32xf32> -> vector<2x4x8x32xf32>
    %54 = vector.shape_cast %53 : vector<2x4x8x32xf32> to vector<8x8x32xf32>
    %55 = vector.extract_strided_slice %32 {offsets = [0, 0, 256], sizes = [2, 8, 32], strides = [1, 1, 1]} : vector<2x8x384xf32> to vector<2x8x32xf32>
    %56 = vector.extract_strided_slice %32 {offsets = [0, 0, 288], sizes = [2, 8, 32], strides = [1, 1, 1]} : vector<2x8x384xf32> to vector<2x8x32xf32>
    %57 = vector.extract_strided_slice %32 {offsets = [0, 0, 320], sizes = [2, 8, 32], strides = [1, 1, 1]} : vector<2x8x384xf32> to vector<2x8x32xf32>
    %58 = vector.extract_strided_slice %32 {offsets = [0, 0, 352], sizes = [2, 8, 32], strides = [1, 1, 1]} : vector<2x8x384xf32> to vector<2x8x32xf32>
    %59 = vector.shape_cast %55 : vector<2x8x32xf32> to vector<2x1x8x32xf32>
    %60 = vector.shape_cast %56 : vector<2x8x32xf32> to vector<2x1x8x32xf32>
    %61 = vector.shape_cast %57 : vector<2x8x32xf32> to vector<2x1x8x32xf32>
    %62 = vector.shape_cast %58 : vector<2x8x32xf32> to vector<2x1x8x32xf32>
    %63 = tpu.concatenate %59, %60, %61, %62 in 1 : vector<2x1x8x32xf32>, vector<2x1x8x32xf32>, vector<2x1x8x32xf32>, vector<2x1x8x32xf32> -> vector<2x4x8x32xf32>
    %64 = vector.shape_cast %63 : vector<2x4x8x32xf32> to vector<8x8x32xf32>
    %65 = arith.truncf %44 : vector<8x8x32xf32> to vector<8x8x32xbf16>
    %66 = arith.truncf %54 : vector<8x8x32xf32> to vector<8x8x32xbf16>
    "tpu.trace_start"() <{level = 10 : i32, message = "bqd,bkd->bqk"}> : () -> ()
    %cst_16 = arith.constant dense<0.000000e+00> : vector<8x8x8xf32>
    %67 = tpu.matmul %65, %66, %cst_16 {dimension_numbers = #tpu.dot_dimension_numbers<[2], [2], [1], [1], [0, 0, 0, 1, 1, 1], [0], [0]>} : vector<8x8x32xbf16>, vector<8x8x32xbf16>, vector<8x8x8xf32> -> vector<8x8x8xf32>
    "tpu.trace_stop"() : () -> ()
    %68 = tpu.iota {dimensions = array<i32: 0>} : vector<8x1xi32>
    %69 = tpu.iota {dimensions = array<i32: 1>} : vector<1x8xi32>
    %70 = vector.broadcast %69 : vector<1x8xi32> to vector<8x8xi32>
    %71 = vector.broadcast %68 : vector<8x1xi32> to vector<8x8xi32>
    %72 = arith.cmpi sle, %70, %71 : vector<8x8xi32>
    %73 = vector.shape_cast %72 : vector<8x8xi1> to vector<1x8x8xi1>
    %cst_17 = arith.constant -1.000000e+30 : f32
    %74 = vector.shape_cast %73 : vector<1x8x8xi1> to vector<1x8x8xi1>
    %75 = vector.broadcast %74 : vector<1x8x8xi1> to vector<8x8x8xi1>
    %76 = vector.broadcast %cst_17 : f32 to vector<8x8x8xf32>
    %77 = arith.select %75, %67, %76 : vector<8x8x8xi1>, vector<8x8x8xf32>
    %cst_18 = arith.constant dense<0xFF800000> : vector<8x8xf32>
    %78 = vector.multi_reduction <maximumf>, %77, %cst_18 [2] : vector<8x8x8xf32> to vector<8x8xf32>
    %79 = vector.shape_cast %78 : vector<8x8xf32> to vector<8x8x1xf32>
    %80 = vector.broadcast %79 : vector<8x8x1xf32> to vector<8x8x8xf32>
    %81 = arith.subf %77, %80 : vector<8x8x8xf32>
    %82 = math.exp %81 : vector<8x8x8xf32>
    %cst_19 = arith.constant dense<0.000000e+00> : vector<8x8xf32>
    %83 = vector.multi_reduction <add>, %82, %cst_19 [2] : vector<8x8x8xf32> to vector<8x8xf32>
    %84 = vector.shape_cast %83 : vector<8x8xf32> to vector<8x8x1xf32>
    %85 = tpu.reciprocal %84 {approx = true} : vector<8x8x1xf32> -> vector<8x8x1xf32>
    %86 = vector.broadcast %85 : vector<8x8x1xf32> to vector<8x8x8xf32>
    %87 = arith.mulf %82, %86 : vector<8x8x8xf32>
    %88 = arith.truncf %87 : vector<8x8x8xf32> to vector<8x8x8xbf16>
    %89 = arith.truncf %64 : vector<8x8x32xf32> to vector<8x8x32xbf16>
    "tpu.trace_start"() <{level = 10 : i32, message = "bqk,bkd->bqd"}> : () -> ()
    %cst_20 = arith.constant dense<0.000000e+00> : vector<8x8x32xf32>
    %90 = tpu.matmul %88, %89, %cst_20 {dimension_numbers = #tpu.dot_dimension_numbers<[2], [1], [1], [2], [0, 0, 0, 1, 1, 2], [0], [0]>} : vector<8x8x8xbf16>, vector<8x8x32xbf16>, vector<8x8x32xf32> -> vector<8x8x32xf32>
    "tpu.trace_stop"() : () -> ()
    %91 = vector.shape_cast %90 : vector<8x8x32xf32> to vector<2x4x8x32xf32>
    %92 = vector.extract_strided_slice %91 {offsets = [0, 0, 0, 0], sizes = [2, 1, 8, 32], strides = [1, 1, 1, 1]} : vector<2x4x8x32xf32> to vector<2x1x8x32xf32>
    %93 = vector.shape_cast %92 : vector<2x1x8x32xf32> to vector<2x8x32xf32>
    %94 = vector.extract_strided_slice %91 {offsets = [0, 1, 0, 0], sizes = [2, 1, 8, 32], strides = [1, 1, 1, 1]} : vector<2x4x8x32xf32> to vector<2x1x8x32xf32>
    %95 = vector.shape_cast %94 : vector<2x1x8x32xf32> to vector<2x8x32xf32>
    %96 = vector.extract_strided_slice %91 {offsets = [0, 2, 0, 0], sizes = [2, 1, 8, 32], strides = [1, 1, 1, 1]} : vector<2x4x8x32xf32> to vector<2x1x8x32xf32>
    %97 = vector.shape_cast %96 : vector<2x1x8x32xf32> to vector<2x8x32xf32>
    %98 = vector.extract_strided_slice %91 {offsets = [0, 3, 0, 0], sizes = [2, 1, 8, 32], strides = [1, 1, 1, 1]} : vector<2x4x8x32xf32> to vector<2x1x8x32xf32>
    %99 = vector.shape_cast %98 : vector<2x1x8x32xf32> to vector<2x8x32xf32>
    %100 = tpu.concatenate %93, %95, %97, %99 in 2 : vector<2x8x32xf32>, vector<2x8x32xf32>, vector<2x8x32xf32>, vector<2x8x32xf32> -> vector<2x8x128xf32>
    %101 = vector.shape_cast %100 : vector<2x8x128xf32> to vector<16x128xf32>
    %102 = arith.truncf %101 : vector<16x128xf32> to vector<16x128xbf16>
    %c0_21 = arith.constant 0 : index
    %c0_22 = arith.constant 0 : index
    %103 = vector.load %arg6[%c0_21, %c0_22] : memref<128x128xbf16, #tpu.memory_space<vmem>>, vector<128x128xbf16>
    %cst_23 = arith.constant dense<0.000000e+00> : vector<16x128xf32>
    %104 = tpu.matmul %102, %103, %cst_23 {dimension_numbers = #tpu.dot_dimension_numbers<[1], [0], [0], [1], [0, 0, 1, 1], [], []>} : vector<16x128xbf16>, vector<128x128xbf16>, vector<16x128xf32> -> vector<16x128xf32>
    %c0_24 = arith.constant 0 : index
    %c0_25 = arith.constant 0 : index
    %105 = vector.load %arg7[%c0_24, %c0_25] : memref<1x128xf32, #tpu.memory_space<vmem>>, vector<1x128xf32>
    %106 = vector.broadcast %105 : vector<1x128xf32> to vector<16x128xf32>
    %107 = arith.addf %104, %106 : vector<16x128xf32>
    %108 = arith.addf %1, %107 : vector<16x128xf32>
    %cst_26 = arith.constant dense<0.000000e+00> : vector<16xf32>
    %109 = vector.multi_reduction <add>, %108, %cst_26 [1] : vector<16x128xf32> to vector<16xf32>
    %110 = vector.shape_cast %109 : vector<16xf32> to vector<16x1xf32>
    %cst_27 = arith.constant 1.280000e+02 : f32
    %111 = vector.broadcast %cst_27 : f32 to vector<16x1xf32>
    %112 = arith.divf %110, %111 : vector<16x1xf32>
    %113 = vector.broadcast %112 : vector<16x1xf32> to vector<16x128xf32>
    %114 = arith.subf %108, %113 : vector<16x128xf32>
    %115 = arith.mulf %114, %114 : vector<16x128xf32>
    %cst_28 = arith.constant dense<0.000000e+00> : vector<16xf32>
    %116 = vector.multi_reduction <add>, %115, %cst_28 [1] : vector<16x128xf32> to vector<16xf32>
    %117 = vector.shape_cast %116 : vector<16xf32> to vector<16x1xf32>
    %cst_29 = arith.constant 1.280000e+02 : f32
    %118 = vector.broadcast %cst_29 : f32 to vector<16x1xf32>
    %119 = arith.divf %117, %118 : vector<16x1xf32>
    %120 = vector.broadcast %112 : vector<16x1xf32> to vector<16x128xf32>
    %121 = arith.subf %108, %120 : vector<16x128xf32>
    %cst_30 = arith.constant 9.99999974E-6 : f32
    %122 = vector.broadcast %cst_30 : f32 to vector<16x1xf32>
    %123 = arith.addf %119, %122 : vector<16x1xf32>
    %124 = math.rsqrt %123 : vector<16x1xf32>
    %125 = vector.broadcast %124 : vector<16x1xf32> to vector<16x128xf32>
    %126 = arith.mulf %121, %125 : vector<16x128xf32>
    %c0_31 = arith.constant 0 : index
    %c0_32 = arith.constant 0 : index
    %127 = vector.load %arg8[%c0_31, %c0_32] : memref<1x128xf32, #tpu.memory_space<vmem>>, vector<1x128xf32>
    %128 = vector.broadcast %127 : vector<1x128xf32> to vector<16x128xf32>
    %129 = arith.mulf %126, %128 : vector<16x128xf32>
    %c0_33 = arith.constant 0 : index
    %c0_34 = arith.constant 0 : index
    %130 = vector.load %arg9[%c0_33, %c0_34] : memref<1x128xf32, #tpu.memory_space<vmem>>, vector<1x128xf32>
    %131 = vector.broadcast %130 : vector<1x128xf32> to vector<16x128xf32>
    %132 = arith.addf %129, %131 : vector<16x128xf32>
    %133 = arith.truncf %132 : vector<16x128xf32> to vector<16x128xbf16>
    %c0_35 = arith.constant 0 : index
    %c0_36 = arith.constant 0 : index
    %134 = vector.load %arg10[%c0_35, %c0_36] : memref<128x512xbf16, #tpu.memory_space<vmem>>, vector<128x512xbf16>
    %cst_37 = arith.constant dense<0.000000e+00> : vector<16x512xf32>
    %135 = tpu.matmul %133, %134, %cst_37 {dimension_numbers = #tpu.dot_dimension_numbers<[1], [0], [0], [1], [0, 0, 1, 1], [], []>} : vector<16x128xbf16>, vector<128x512xbf16>, vector<16x512xf32> -> vector<16x512xf32>
    %c0_38 = arith.constant 0 : index
    %c0_39 = arith.constant 0 : index
    %136 = vector.load %arg11[%c0_38, %c0_39] : memref<1x512xf32, #tpu.memory_space<vmem>>, vector<1x512xf32>
    %137 = vector.broadcast %136 : vector<1x512xf32> to vector<16x512xf32>
    %138 = arith.addf %135, %137 : vector<16x512xf32>
    %cst_40 = arith.constant 5.000000e-01 : f32
    %139 = vector.broadcast %cst_40 : f32 to vector<16x512xf32>
    %140 = arith.mulf %139, %138 : vector<16x512xf32>
    %cst_41 = arith.constant 4.471500e-02 : f32
    %141 = vector.broadcast %cst_41 : f32 to vector<16x512xf32>
    %142 = arith.mulf %141, %138 : vector<16x512xf32>
    %143 = arith.mulf %142, %138 : vector<16x512xf32>
    %144 = arith.mulf %143, %138 : vector<16x512xf32>
    %145 = arith.addf %138, %144 : vector<16x512xf32>
    %cst_42 = arith.constant 0.797884583 : f32
    %146 = vector.broadcast %cst_42 : f32 to vector<16x512xf32>
    %147 = arith.mulf %146, %145 : vector<16x512xf32>
    %148 = math.tanh %147 : vector<16x512xf32>
    %cst_43 = arith.constant 1.000000e+00 : f32
    %149 = vector.broadcast %cst_43 : f32 to vector<16x512xf32>
    %150 = arith.addf %149, %148 : vector<16x512xf32>
    %151 = arith.mulf %140, %150 : vector<16x512xf32>
    %152 = arith.truncf %151 : vector<16x512xf32> to vector<16x512xbf16>
    %c0_44 = arith.constant 0 : index
    %c0_45 = arith.constant 0 : index
    %153 = vector.load %arg12[%c0_44, %c0_45] : memref<512x128xbf16, #tpu.memory_space<vmem>>, vector<512x128xbf16>
    %cst_46 = arith.constant dense<0.000000e+00> : vector<16x128xf32>
    %154 = tpu.matmul %152, %153, %cst_46 {dimension_numbers = #tpu.dot_dimension_numbers<[1], [0], [0], [1], [0, 0, 1, 1], [], []>} : vector<16x512xbf16>, vector<512x128xbf16>, vector<16x128xf32> -> vector<16x128xf32>
    %c0_47 = arith.constant 0 : index
    %c0_48 = arith.constant 0 : index
    %155 = vector.load %arg13[%c0_47, %c0_48] : memref<1x128xf32, #tpu.memory_space<vmem>>, vector<1x128xf32>
    %156 = vector.broadcast %155 : vector<1x128xf32> to vector<16x128xf32>
    %157 = arith.addf %154, %156 : vector<16x128xf32>
    %158 = arith.addf %108, %157 : vector<16x128xf32>
    %159 = vector.shape_cast %158 : vector<16x128xf32> to vector<2x8x128xf32>
    %c0_49 = arith.constant 0 : index
    %c0_50 = arith.constant 0 : index
    %c0_51 = arith.constant 0 : index
    %160 = vector.load %arg14[%c0_49, %c0_50, %c0_51] : memref<2x8x128xf32, #tpu.memory_space<vmem>>, vector<2x8x128xf32>
    tpu.vector_store %arg14[%c0_49, %c0_50, %c0_51], %159 {strides = array<i32>} : memref<2x8x128xf32, #tpu.memory_space<vmem>>, vector<2x8x128xf32>,
    return
  }
  func.func @transform_0(%arg0: i32) -> (i32, i32, i32) {
    %c0_i32 = arith.constant 0 : i32
    %c0_i32_0 = arith.constant 0 : i32
    %c0_i32_1 = arith.constant 0 : i32
    return %arg0, %c0_i32, %c0_i32_0 : i32, i32, i32
  }
  func.func @transform_1(%arg0: i32) -> (i32, i32) {
    %c0_i32 = arith.constant 0 : i32
    %c0_i32_0 = arith.constant 0 : i32
    %c0_i32_1 = arith.constant 0 : i32
    return %c0_i32, %c0_i32_0 : i32, i32
  }
  func.func @transform_2(%arg0: i32) -> (i32, i32) {
    %c0_i32 = arith.constant 0 : i32
    %c0_i32_0 = arith.constant 0 : i32
    %c0_i32_1 = arith.constant 0 : i32
    return %c0_i32, %c0_i32_0 : i32, i32
  }
  func.func @transform_3(%arg0: i32) -> (i32, i32) {
    %c0_i32 = arith.constant 0 : i32
    %c0_i32_0 = arith.constant 0 : i32
    %c0_i32_1 = arith.constant 0 : i32
    return %c0_i32, %c0_i32_0 : i32, i32
  }
  func.func @transform_4(%arg0: i32) -> (i32, i32) {
    %c0_i32 = arith.constant 0 : i32
    %c0_i32_0 = arith.constant 0 : i32
    %c0_i32_1 = arith.constant 0 : i32
    return %c0_i32, %c0_i32_0 : i32, i32
  }
  func.func @transform_5(%arg0: i32) -> (i32, i32) {
    %c0_i32 = arith.constant 0 : i32
    %c0_i32_0 = arith.constant 0 : i32
    %c0_i32_1 = arith.constant 0 : i32
    return %c0_i32, %c0_i32_0 : i32, i32
  }
  func.func @transform_6(%arg0: i32) -> (i32, i32) {
    %c0_i32 = arith.constant 0 : i32
    %c0_i32_0 = arith.constant 0 : i32
    %c0_i32_1 = arith.constant 0 : i32
    return %c0_i32, %c0_i32_0 : i32, i32
  }
  func.func @transform_7(%arg0: i32) -> (i32, i32) {
    %c0_i32 = arith.constant 0 : i32
    %c0_i32_0 = arith.constant 0 : i32
    %c0_i32_1 = arith.constant 0 : i32
    return %c0_i32, %c0_i32_0 : i32, i32
  }
  func.func @transform_8(%arg0: i32) -> (i32, i32) {
    %c0_i32 = arith.constant 0 : i32
    %c0_i32_0 = arith.constant 0 : i32
    %c0_i32_1 = arith.constant 0 : i32
    return %c0_i32, %c0_i32_0 : i32, i32
  }
  func.func @transform_9(%arg0: i32) -> (i32, i32) {
    %c0_i32 = arith.constant 0 : i32
    %c0_i32_0 = arith.constant 0 : i32
    %c0_i32_1 = arith.constant 0 : i32
    return %c0_i32, %c0_i32_0 : i32, i32
  }
  func.func @transform_10(%arg0: i32) -> (i32, i32) {
    %c0_i32 = arith.constant 0 : i32
    %c0_i32_0 = arith.constant 0 : i32
    %c0_i32_1 = arith.constant 0 : i32
    return %c0_i32, %c0_i32_0 : i32, i32
  }
  func.func @transform_11(%arg0: i32) -> (i32, i32) {
    %c0_i32 = arith.constant 0 : i32
    %c0_i32_0 = arith.constant 0 : i32
    %c0_i32_1 = arith.constant 0 : i32
    return %c0_i32, %c0_i32_0 : i32, i32
  }
  func.func @transform_12(%arg0: i32) -> (i32, i32) {
    %c0_i32 = arith.constant 0 : i32
    %c0_i32_0 = arith.constant 0 : i32
    %c0_i32_1 = arith.constant 0 : i32
    return %c0_i32, %c0_i32_0 : i32, i32
  }
  func.func @transform_13(%arg0: i32) -> (i32, i32, i32) {
    %c0_i32 = arith.constant 0 : i32
    %c0_i32_0 = arith.constant 0 : i32
    %c0_i32_1 = arith.constant 0 : i32
    return %arg0, %c0_i32, %c0_i32_0 : i32, i32, i32
  }
}

module attributes {stable_mosaic.version = 11 : i64} {
  func.func @_block_kernel(%arg0: i32, %arg1: memref<2x8x128xf32, #tpu.memory_space<vmem>>, %arg2: memref<1x128xf32, #tpu.memory_space<vmem>>, %arg3: memref<1x128xf32, #tpu.memory_space<vmem>>, %arg4: memref<128x384xbf16, #tpu.memory_space<vmem>>, %arg5: memref<1x384xf32, #tpu.memory_space<vmem>>, %arg6: memref<128x128xbf16, #tpu.memory_space<vmem>>, %arg7: memref<1x128xf32, #tpu.memory_space<vmem>>, %arg8: memref<1x128xf32, #tpu.memory_space<vmem>>, %arg9: memref<1x128xf32, #tpu.memory_space<vmem>>, %arg10: memref<128x512xbf16, #tpu.memory_space<vmem>>, %arg11: memref<1x512xf32, #tpu.memory_space<vmem>>, %arg12: memref<512x128xbf16, #tpu.memory_space<vmem>>, %arg13: memref<1x128xf32, #tpu.memory_space<vmem>>, %arg14: memref<2x8x128xf32, #tpu.memory_space<vmem>>) attributes {dimension_semantics = [#tpu.dimension_semantics<parallel>], iteration_bounds = array<i64: 1>, scalar_prefetch = 0 : i64, scratch_operands = 0 : i64, tpu.core_type = #tpu.core_type<tc>, window_params = [{transform_indices = @transform_0, window_bounds = array<i64: 2, 8, 128>}, {pipeline_mode = #tpu.pipeline_mode<synchronous>, transform_indices = @transform_1, window_bounds = array<i64: 1, 128>}, {pipeline_mode = #tpu.pipeline_mode<synchronous>, transform_indices = @transform_2, window_bounds = array<i64: 1, 128>}, {pipeline_mode = #tpu.pipeline_mode<synchronous>, transform_indices = @transform_3, window_bounds = array<i64: 128, 384>}, {pipeline_mode = #tpu.pipeline_mode<synchronous>, transform_indices = @transform_4, window_bounds = array<i64: 1, 384>}, {pipeline_mode = #tpu.pipeline_mode<synchronous>, transform_indices = @transform_5, window_bounds = array<i64: 128, 128>}, {pipeline_mode = #tpu.pipeline_mode<synchronous>, transform_indices = @transform_6, window_bounds = array<i64: 1, 128>}, {pipeline_mode = #tpu.pipeline_mode<synchronous>, transform_indices = @transform_7, window_bounds = array<i64: 1, 128>}, {pipeline_mode = #tpu.pipeline_mode<synchronous>, transform_indices = @transform_8, window_bounds = array<i64: 1, 128>}, {pipeline_mode = #tpu.pipeline_mode<synchronous>, transform_indices = @transform_9, window_bounds = array<i64: 128, 512>}, {pipeline_mode = #tpu.pipeline_mode<synchronous>, transform_indices = @transform_10, window_bounds = array<i64: 1, 512>}, {pipeline_mode = #tpu.pipeline_mode<synchronous>, transform_indices = @transform_11, window_bounds = array<i64: 512, 128>}, {pipeline_mode = #tpu.pipeline_mode<synchronous>, transform_indices = @transform_12, window_bounds = array<i64: 1, 128>}, {transform_indices = @transform_13, window_bounds = array<i64: 2, 8, 128>}]} {
    %c0 = arith.constant 0 : index
    %c0_0 = arith.constant 0 : index
    %c0_1 = arith.constant 0 : index
    %0 = vector.load %arg1[%c0, %c0_0, %c0_1] : memref<2x8x128xf32, #tpu.memory_space<vmem>>, vector<2x8x128xf32>
    %1 = vector.shape_cast %0 : vector<2x8x128xf32> to vector<16x128xf32>
    %cst = arith.constant dense<0.000000e+00> : vector<16xf32>
    %2 = vector.multi_reduction <add>, %1, %cst [1] : vector<16x128xf32> to vector<16xf32>
    %3 = vector.shape_cast %2 : vector<16xf32> to vector<16x1xf32>
    %cst_2 = arith.constant 1.280000e+02 : f32
    %4 = vector.broadcast %cst_2 : f32 to vector<16x1xf32>
    %5 = arith.divf %3, %4 : vector<16x1xf32>
    %6 = vector.broadcast %5 : vector<16x1xf32> to vector<16x128xf32>
    %7 = arith.subf %1, %6 : vector<16x128xf32>
    %8 = arith.mulf %7, %7 : vector<16x128xf32>
    %cst_3 = arith.constant dense<0.000000e+00> : vector<16xf32>
    %9 = vector.multi_reduction <add>, %8, %cst_3 [1] : vector<16x128xf32> to vector<16xf32>
    %10 = vector.shape_cast %9 : vector<16xf32> to vector<16x1xf32>
    %cst_4 = arith.constant 1.280000e+02 : f32
    %11 = vector.broadcast %cst_4 : f32 to vector<16x1xf32>
    %12 = arith.divf %10, %11 : vector<16x1xf32>
    %13 = vector.broadcast %5 : vector<16x1xf32> to vector<16x128xf32>
    %14 = arith.subf %1, %13 : vector<16x128xf32>
    %cst_5 = arith.constant 9.99999974E-6 : f32
    %15 = vector.broadcast %cst_5 : f32 to vector<16x1xf32>
    %16 = arith.addf %12, %15 : vector<16x1xf32>
    %17 = math.rsqrt %16 : vector<16x1xf32>
    %18 = vector.broadcast %17 : vector<16x1xf32> to vector<16x128xf32>
    %19 = arith.mulf %14, %18 : vector<16x128xf32>
    %c0_6 = arith.constant 0 : index
    %c0_7 = arith.constant 0 : index
    %20 = vector.load %arg2[%c0_6, %c0_7] : memref<1x128xf32, #tpu.memory_space<vmem>>, vector<1x128xf32>
    %21 = vector.broadcast %20 : vector<1x128xf32> to vector<16x128xf32>
    %22 = arith.mulf %19, %21 : vector<16x128xf32>
    %c0_8 = arith.constant 0 : index
    %c0_9 = arith.constant 0 : index
    %23 = vector.load %arg3[%c0_8, %c0_9] : memref<1x128xf32, #tpu.memory_space<vmem>>, vector<1x128xf32>
    %24 = vector.broadcast %23 : vector<1x128xf32> to vector<16x128xf32>
    %25 = arith.addf %22, %24 : vector<16x128xf32>
    %26 = arith.truncf %25 : vector<16x128xf32> to vector<16x128xbf16>
    %c0_10 = arith.constant 0 : index
    %c0_11 = arith.constant 0 : index
    %27 = vector.load %arg4[%c0_10, %c0_11] : memref<128x384xbf16, #tpu.memory_space<vmem>>, vector<128x384xbf16>
    %cst_12 = arith.constant dense<0.000000e+00> : vector<16x384xf32>
    %28 = tpu.matmul %26, %27, %cst_12 {dimension_numbers = #tpu.dot_dimension_numbers<[1], [0], [0], [1], [0, 0, 1, 1], [], []>} : vector<16x128xbf16>, vector<128x384xbf16>, vector<16x384xf32> -> vector<16x384xf32>
    %c0_13 = arith.constant 0 : index
    %c0_14 = arith.constant 0 : index
    %29 = vector.load %arg5[%c0_13, %c0_14] : memref<1x384xf32, #tpu.memory_space<vmem>>, vector<1x384xf32>
    %30 = vector.broadcast %29 : vector<1x384xf32> to vector<16x384xf32>
    %31 = arith.addf %28, %30 : vector<16x384xf32>
    %32 = vector.shape_cast %31 : vector<16x384xf32> to vector<2x8x384xf32>
    %33 = vector.extract_strided_slice %32 {offsets = [0, 0, 0], sizes = [2, 8, 32], strides = [1, 1, 1]} : vector<2x8x384xf32> to vector<2x8x32xf32>
    %34 = vector.extract_strided_slice %32 {offsets = [0, 0, 32], sizes = [2, 8, 32], strides = [1, 1, 1]} : vector<2x8x384xf32> to vector<2x8x32xf32>
    %35 = vector.extract_strided_slice %32 {offsets = [0, 0, 64], sizes = [2, 8, 32], strides = [1, 1, 1]} : vector<2x8x384xf32> to vector<2x8x32xf32>
    %36 = vector.extract_strided_slice %32 {offsets = [0, 0, 96], sizes = [2, 8, 32], strides = [1, 1, 1]} : vector<2x8x384xf32> to vector<2x8x32xf32>
    %37 = vector.shape_cast %33 : vector<2x8x32xf32> to vector<2x1x8x32xf32>
    %38 = vector.shape_cast %34 : vector<2x8x32xf32> to vector<2x1x8x32xf32>
    %39 = vector.shape_cast %35 : vector<2x8x32xf32> to vector<2x1x8x32xf32>
    %40 = vector.shape_cast %36 : vector<2x8x32xf32> to vector<2x1x8x32xf32>
    %41 = tpu.concatenate %37, %38, %39, %40 in 1 : vector<2x1x8x32xf32>, vector<2x1x8x32xf32>, vector<2x1x8x32xf32>, vector<2x1x8x32xf32> -> vector<2x4x8x32xf32>
    %42 = vector.shape_cast %41 : vector<2x4x8x32xf32> to vector<8x8x32xf32>
    %cst_15 = arith.constant 0.176776692 : f32
    %43 = vector.broadcast %cst_15 : f32 to vector<8x8x32xf32>
    %44 = arith.mulf %42, %43 : vector<8x8x32xf32>
    %45 = vector.extract_strided_slice %32 {offsets = [0, 0, 128], sizes = [2, 8, 32], strides = [1, 1, 1]} : vector<2x8x384xf32> to vector<2x8x32xf32>
    %46 = vector.extract_strided_slice %32 {offsets = [0, 0, 160], sizes = [2, 8, 32], strides = [1, 1, 1]} : vector<2x8x384xf32> to vector<2x8x32xf32>
    %47 = vector.extract_strided_slice %32 {offsets = [0, 0, 192], sizes = [2, 8, 32], strides = [1, 1, 1]} : vector<2x8x384xf32> to vector<2x8x32xf32>
    %48 = vector.extract_strided_slice %32 {offsets = [0, 0, 224], sizes = [2, 8, 32], strides = [1, 1, 1]} : vector<2x8x384xf32> to vector<2x8x32xf32>
    %49 = vector.shape_cast %45 : vector<2x8x32xf32> to vector<2x1x8x32xf32>
    %50 = vector.shape_cast %46 : vector<2x8x32xf32> to vector<2x1x8x32xf32>
    %51 = vector.shape_cast %47 : vector<2x8x32xf32> to vector<2x1x8x32xf32>
    %52 = vector.shape_cast %48 : vector<2x8x32xf32> to vector<2x1x8x32xf32>
    %53 = tpu.concatenate %49, %50, %51, %52 in 1 : vector<2x1x8x32xf32>, vector<2x1x8x32xf32>, vector<2x1x8x32xf32>, vector<2x1x8x32xf32> -> vector<2x4x8x32xf32>
    %54 = vector.shape_cast %53 : vector<2x4x8x32xf32> to vector<8x8x32xf32>
    %55 = vector.extract_strided_slice %32 {offsets = [0, 0, 256], sizes = [2, 8, 32], strides = [1, 1, 1]} : vector<2x8x384xf32> to vector<2x8x32xf32>
    %56 = vector.extract_strided_slice %32 {offsets = [0, 0, 288], sizes = [2, 8, 32], strides = [1, 1, 1]} : vector<2x8x384xf32> to vector<2x8x32xf32>
    %57 = vector.extract_strided_slice %32 {offsets = [0, 0, 320], sizes = [2, 8, 32], strides = [1, 1, 1]} : vector<2x8x384xf32> to vector<2x8x32xf32>
    %58 = vector.extract_strided_slice %32 {offsets = [0, 0, 352], sizes = [2, 8, 32], strides = [1, 1, 1]} : vector<2x8x384xf32> to vector<2x8x32xf32>
    %59 = vector.shape_cast %55 : vector<2x8x32xf32> to vector<2x1x8x32xf32>
    %60 = vector.shape_cast %56 : vector<2x8x32xf32> to vector<2x1x8x32xf32>
    %61 = vector.shape_cast %57 : vector<2x8x32xf32> to vector<2x1x8x32xf32>
    %62 = vector.shape_cast %58 : vector<2x8x32xf32> to vector<2x1x8x32xf32>
    %63 = tpu.concatenate %59, %60, %61, %62 in 1 : vector<2x1x8x32xf32>, vector<2x1x8x32xf32>, vector<2x1x8x32xf32>, vector<2x1x8x32xf32> -> vector<2x4x8x32xf32>
    %64 = vector.shape_cast %63 : vector<2x4x8x32xf32> to vector<8x8x32xf32>
    %65 = arith.truncf %44 : vector<8x8x32xf32> to vector<8x8x32xbf16>
    %66 = arith.truncf %54 : vector<8x8x32xf32> to vector<8x8x32xbf16>
    "tpu.trace_start"() <{level = 10 : i32, message = "bqd,bkd->bqk"}> : () -> ()
    %cst_16 = arith.constant dense<0.000000e+00> : vector<8x8x8xf32>
    %67 = tpu.matmul %65, %66, %cst_16 {dimension_numbers = #tpu.dot_dimension_numbers<[2], [2], [1], [1], [0, 0, 0, 1, 1, 1], [0], [0]>} : vector<8x8x32xbf16>, vector<8x8x32xbf16>, vector<8x8x8xf32> -> vector<8x8x8xf32>
    "tpu.trace_stop"() : () -> ()
    %68 = tpu.iota {dimensions = array<i32: 0>} : vector<8x1xi32>
    %69 = tpu.iota {dimensions = array<i32: 1>} : vector<1x8xi32>
    %70 = vector.broadcast %69 : vector<1x8xi32> to vector<8x8xi32>
    %71 = vector.broadcast %68 : vector<8x1xi32> to vector<8x8xi32>
    %72 = arith.cmpi sle, %70, %71 : vector<8x8xi32>
    %73 = vector.shape_cast %72 : vector<8x8xi1> to vector<1x8x8xi1>
    %cst_17 = arith.constant -1.000000e+30 : f32
    %74 = vector.shape_cast %73 : vector<1x8x8xi1> to vector<1x8x8xi1>
    %75 = vector.broadcast %74 : vector<1x8x8xi1> to vector<8x8x8xi1>
    %76 = vector.broadcast %cst_17 : f32 to vector<8x8x8xf32>
    %77 = arith.select %75, %67, %76 : vector<8x8x8xi1>, vector<8x8x8xf32>
    %cst_18 = arith.constant dense<0xFF800000> : vector<8x8xf32>
    %78 = vector.multi_reduction <maximumf>, %77, %cst_18 [2] : vector<8x8x8xf32> to vector<8x8xf32>
    %79 = vector.shape_cast %78 : vector<8x8xf32> to vector<8x8x1xf32>
    %80 = vector.broadcast %79 : vector<8x8x1xf32> to vector<8x8x8xf32>
    %81 = arith.subf %77, %80 : vector<8x8x8xf32>
    %82 = math.exp %81 : vector<8x8x8xf32>
    %cst_19 = arith.constant dense<0.000000e+00> : vector<8x8xf32>
    %83 = vector.multi_reduction <add>, %82, %cst_19 [2] : vector<8x8x8xf32> to vector<8x8xf32>
    %84 = vector.shape_cast %83 : vector<8x8xf32> to vector<8x8x1xf32>
    %85 = tpu.reciprocal %84 {approx = true} : vector<8x8x1xf32> -> vector<8x8x1xf32>
    %86 = vector.broadcast %85 : vector<8x8x1xf32> to vector<8x8x8xf32>
    %87 = arith.mulf %82, %86 : vector<8x8x8xf32>
    %88 = arith.truncf %87 : vector<8x8x8xf32> to vector<8x8x8xbf16>
    %89 = arith.truncf %64 : vector<8x8x32xf32> to vector<8x8x32xbf16>
    "tpu.trace_start"() <{level = 10 : i32, message = "bqk,bkd->bqd"}> : () -> ()
    %cst_20 = arith.constant dense<0.000000e+00> : vector<8x8x32xf32>
    %90 = tpu.matmul %88, %89, %cst_20 {dimension_numbers = #tpu.dot_dimension_numbers<[2], [1], [1], [2], [0, 0, 0, 1, 1, 2], [0], [0]>} : vector<8x8x8xbf16>, vector<8x8x32xbf16>, vector<8x8x32xf32> -> vector<8x8x32xf32>
    "tpu.trace_stop"() : () -> ()
    %91 = vector.shape_cast %90 : vector<8x8x32xf32> to vector<2x4x8x32xf32>
    %92 = vector.extract_strided_slice %91 {offsets = [0, 0, 0, 0], sizes = [2, 1, 8, 32], strides = [1, 1, 1, 1]} : vector<2x4x8x32xf32> to vector<2x1x8x32xf32>
    %93 = vector.shape_cast %92 : vector<2x1x8x32xf32> to vector<2x8x32xf32>
    %94 = vector.extract_strided_slice %91 {offsets = [0, 1, 0, 0], sizes = [2, 1, 8, 32], strides = [1, 1, 1, 1]} : vector<2x4x8x32xf32> to vector<2x1x8x32xf32>
    %95 = vector.shape_cast %94 : vector<2x1x8x32xf32> to vector<2x8x32xf32>
    %96 = vector.extract_strided_slice %91 {offsets = [0, 2, 0, 0], sizes = [2, 1, 8, 32], strides = [1, 1, 1, 1]} : vector<2x4x8x32xf32> to vector<2x1x8x32xf32>
    %97 = vector.shape_cast %96 : vector<2x1x8x32xf32> to vector<2x8x32xf32>
    %98 = vector.extract_strided_slice %91 {offsets = [0, 3, 0, 0], sizes = [2, 1, 8, 32], strides = [1, 1, 1, 1]} : vector<2x4x8x32xf32> to vector<2x1x8x32xf32>
    %99 = vector.shape_cast %98 : vector<2x1x8x32xf32> to vector<2x8x32xf32>
    %100 = tpu.concatenate %93, %95, %97, %99 in 2 : vector<2x8x32xf32>, vector<2x8x32xf32>, vector<2x8x32xf32>, vector<2x8x32xf32> -> vector<2x8x128xf32>
    %101 = vector.shape_cast %100 : vector<2x8x128xf32> to vector<16x128xf32>
    %102 = arith.truncf %101 : vector<16x128xf32> to vector<16x128xbf16>
    %c0_21 = arith.constant 0 : index
    %c0_22 = arith.constant 0 : index
    %103 = vector.load %arg6[%c0_21, %c0_22] : memref<128x128xbf16, #tpu.memory_space<vmem>>, vector<128x128xbf16>
    %cst_23 = arith.constant dense<0.000000e+00> : vector<16x128xf32>
    %104 = tpu.matmul %102, %103, %cst_23 {dimension_numbers = #tpu.dot_dimension_numbers<[1], [0], [0], [1], [0, 0, 1, 1], [], []>} : vector<16x128xbf16>, vector<128x128xbf16>, vector<16x128xf32> -> vector<16x128xf32>
    %c0_24 = arith.constant 0 : index
    %c0_25 = arith.constant 0 : index
    %105 = vector.load %arg7[%c0_24, %c0_25] : memref<1x128xf32, #tpu.memory_space<vmem>>, vector<1x128xf32>
    %106 = vector.broadcast %105 : vector<1x128xf32> to vector<16x128xf32>
    %107 = arith.addf %104, %106 : vector<16x128xf32>
    %108 = arith.addf %1, %107 : vector<16x128xf32>
    %cst_26 = arith.constant dense<0.000000e+00> : vector<16xf32>
    %109 = vector.multi_reduction <add>, %108, %cst_26 [1] : vector<16x128xf32> to vector<16xf32>
    %110 = vector.shape_cast %109 : vector<16xf32> to vector<16x1xf32>
    %cst_27 = arith.constant 1.280000e+02 : f32
    %111 = vector.broadcast %cst_27 : f32 to vector<16x1xf32>
    %112 = arith.divf %110, %111 : vector<16x1xf32>
    %113 = vector.broadcast %112 : vector<16x1xf32> to vector<16x128xf32>
    %114 = arith.subf %108, %113 : vector<16x128xf32>
    %115 = arith.mulf %114, %114 : vector<16x128xf32>
    %cst_28 = arith.constant dense<0.000000e+00> : vector<16xf32>
    %116 = vector.multi_reduction <add>, %115, %cst_28 [1] : vector<16x128xf32> to vector<16xf32>
    %117 = vector.shape_cast %116 : vector<16xf32> to vector<16x1xf32>
    %cst_29 = arith.constant 1.280000e+02 : f32
    %118 = vector.broadcast %cst_29 : f32 to vector<16x1xf32>
    %119 = arith.divf %117, %118 : vector<16x1xf32>
    %120 = vector.broadcast %112 : vector<16x1xf32> to vector<16x128xf32>
    %121 = arith.subf %108, %120 : vector<16x128xf32>
    %cst_30 = arith.constant 9.99999974E-6 : f32
    %122 = vector.broadcast %cst_30 : f32 to vector<16x1xf32>
    %123 = arith.addf %119, %122 : vector<16x1xf32>
    %124 = math.rsqrt %123 : vector<16x1xf32>
    %125 = vector.broadcast %124 : vector<16x1xf32> to vector<16x128xf32>
    %126 = arith.mulf %121, %125 : vector<16x128xf32>
    %c0_31 = arith.constant 0 : index
    %c0_32 = arith.constant 0 : index
    %127 = vector.load %arg8[%c0_31, %c0_32] : memref<1x128xf32, #tpu.memory_space<vmem>>, vector<1x128xf32>
    %128 = vector.broadcast %127 : vector<1x128xf32> to vector<16x128xf32>
    %129 = arith.mulf %126, %128 : vector<16x128xf32>
    %c0_33 = arith.constant 0 : index
    %c0_34 = arith.constant 0 : index
    %130 = vector.load %arg9[%c0_33, %c0_34] : memref<1x128xf32, #tpu.memory_space<vmem>>, vector<1x128xf32>
    %131 = vector.broadcast %130 : vector<1x128xf32> to vector<16x128xf32>
    %132 = arith.addf %129, %131 : vector<16x128xf32>
    %133 = arith.truncf %132 : vector<16x128xf32> to vector<16x128xbf16>
    %c0_35 = arith.constant 0 : index
    %c0_36 = arith.constant 0 : index
    %134 = vector.load %arg10[%c0_35, %c0_36] : memref<128x512xbf16, #tpu.memory_space<vmem>>, vector<128x512xbf16>
    %cst_37 = arith.constant dense<0.000000e+00> : vector<16x512xf32>
    %135 = tpu.matmul %133, %134, %cst_37 {dimension_numbers = #tpu.dot_dimension_numbers<[1], [0], [0], [1], [0, 0, 1, 1], [], []>} : vector<16x128xbf16>, vector<128x512xbf16>, vector<16x512xf32> -> vector<16x512xf32>
    %c0_38 = arith.constant 0 : index
    %c0_39 = arith.constant 0 : index
    %136 = vector.load %arg11[%c0_38, %c0_39] : memref<1x512xf32, #tpu.memory_space<vmem>>, vector<1x512xf32>
    %137 = vector.broadcast %136 : vector<1x512xf32> to vector<16x512xf32>
    %138 = arith.addf %135, %137 : vector<16x512xf32>
    %cst_40 = arith.constant 5.000000e-01 : f32
    %139 = vector.broadcast %cst_40 : f32 to vector<16x512xf32>
    %140 = arith.mulf %139, %138 : vector<16x512xf32>
    %cst_41 = arith.constant 4.471500e-02 : f32
    %141 = vector.broadcast %cst_41 : f32 to vector<16x512xf32>
    %142 = arith.mulf %141, %138 : vector<16x512xf32>
    %143 = arith.mulf %142, %138 : vector<16x512xf32>
    %144 = arith.mulf %143, %138 : vector<16x512xf32>
    %145 = arith.addf %138, %144 : vector<16x512xf32>
    %cst_42 = arith.constant 0.797884583 : f32
    %146 = vector.broadcast %cst_42 : f32 to vector<16x512xf32>
    %147 = arith.mulf %146, %145 : vector<16x512xf32>
    %148 = math.tanh %147 : vector<16x512xf32>
    %cst_43 = arith.constant 1.000000e+00 : f32
    %149 = vector.broadcast %cst_43 : f32 to vector<16x512xf32>
    %150 = arith.addf %149, %148 : vector<16x512xf32>
    %151 = arith.mulf %140, %150 : vector<16x512xf32>
    %152 = arith.truncf %151 : vector<16x512xf32> to vector<16x512xbf16>
    %c0_44 = arith.constant 0 : index
    %c0_45 = arith.constant 0 : index
    %153 = vector.load %arg12[%c0_44, %c0_45] : memref<512x128xbf16, #tpu.memory_space<vmem>>, vector<512x128xbf16>
    %cst_46 = arith.constant dense<0.000000e+00> : vector<16x128xf32>
    %154 = tpu.matmul %152, %153, %cst_46 {dimension_numbers = #tpu.dot_dimension_numbers<[1], [0], [0], [1], [0, 0, 1, 1], [], []>} : vector<16x512xbf16>, vector<512x128xbf16>, vector<16x128xf32> -> vector<16x128xf32>
    %c0_47 = arith.constant 0 : index
    %c0_48 = arith.constant 0 : index
    %155 = vector.load %arg13[%c0_47, %c0_48] : memref<1x128xf32, #tpu.memory_space<vmem>>, vector<1x128xf32>
    %156 = vector.broadcast %155 : vector<1x128xf32> to vector<16x128xf32>
    %157 = arith.addf %154, %156 : vector<16x128xf32>
    %158 = arith.addf %108, %157 : vector<16x128xf32>
    %159 = vector.shape_cast %158 : vector<16x128xf32> to vector<2x8x128xf32>
    %c0_49 = arith.constant 0 : index
    %c0_50 = arith.constant 0 : index
    %c0_51 = arith.constant 0 : index
    %160 = vector.load %arg14[%c0_49, %c0_50, %c0_51] : memref<2x8x128xf32, #tpu.memory_space<vmem>>, vector<2x8x128xf32>
    tpu.vector_store %arg14[%c0_49, %c0_50, %c0_51], %159 {strides = array<i32>} : memref<2x8x128xf32, #tpu.memory_space<vmem>>, vector<2x8x128xf32>,
    return
  }
  func.func @transform_0(%arg0: i32) -> (i32, i32, i32) {
    %c0_i32 = arith.constant 0 : i32
    %c0_i32_0 = arith.constant 0 : i32
    %c0_i32_1 = arith.constant 0 : i32
    return %arg0, %c0_i32, %c0_i32_0 : i32, i32, i32
  }
  func.func @transform_1(%arg0: i32) -> (i32, i32) {
    %c0_i32 = arith.constant 0 : i32
    %c0_i32_0 = arith.constant 0 : i32
    %c0_i32_1 = arith.constant 0 : i32
    return %c0_i32, %c0_i32_0 : i32, i32
  }
  func.func @transform_2(%arg0: i32) -> (i32, i32) {
    %c0_i32 = arith.constant 0 : i32
    %c0_i32_0 = arith.constant 0 : i32
    %c0_i32_1 = arith.constant 0 : i32
    return %c0_i32, %c0_i32_0 : i32, i32
  }
  func.func @transform_3(%arg0: i32) -> (i32, i32) {
    %c0_i32 = arith.constant 0 : i32
    %c0_i32_0 = arith.constant 0 : i32
    %c0_i32_1 = arith.constant 0 : i32
    return %c0_i32, %c0_i32_0 : i32, i32
  }
  func.func @transform_4(%arg0: i32) -> (i32, i32) {
    %c0_i32 = arith.constant 0 : i32
    %c0_i32_0 = arith.constant 0 : i32
    %c0_i32_1 = arith.constant 0 : i32
    return %c0_i32, %c0_i32_0 : i32, i32
  }
  func.func @transform_5(%arg0: i32) -> (i32, i32) {
    %c0_i32 = arith.constant 0 : i32
    %c0_i32_0 = arith.constant 0 : i32
    %c0_i32_1 = arith.constant 0 : i32
    return %c0_i32, %c0_i32_0 : i32, i32
  }
  func.func @transform_6(%arg0: i32) -> (i32, i32) {
    %c0_i32 = arith.constant 0 : i32
    %c0_i32_0 = arith.constant 0 : i32
    %c0_i32_1 = arith.constant 0 : i32
    return %c0_i32, %c0_i32_0 : i32, i32
  }
  func.func @transform_7(%arg0: i32) -> (i32, i32) {
    %c0_i32 = arith.constant 0 : i32
    %c0_i32_0 = arith.constant 0 : i32
    %c0_i32_1 = arith.constant 0 : i32
    return %c0_i32, %c0_i32_0 : i32, i32
  }
  func.func @transform_8(%arg0: i32) -> (i32, i32) {
    %c0_i32 = arith.constant 0 : i32
    %c0_i32_0 = arith.constant 0 : i32
    %c0_i32_1 = arith.constant 0 : i32
    return %c0_i32, %c0_i32_0 : i32, i32
  }
  func.func @transform_9(%arg0: i32) -> (i32, i32) {
    %c0_i32 = arith.constant 0 : i32
    %c0_i32_0 = arith.constant 0 : i32
    %c0_i32_1 = arith.constant 0 : i32
    return %c0_i32, %c0_i32_0 : i32, i32
  }
  func.func @transform_10(%arg0: i32) -> (i32, i32) {
    %c0_i32 = arith.constant 0 : i32
    %c0_i32_0 = arith.constant 0 : i32
    %c0_i32_1 = arith.constant 0 : i32
    return %c0_i32, %c0_i32_0 : i32, i32
  }
  func.func @transform_11(%arg0: i32) -> (i32, i32) {
    %c0_i32 = arith.constant 0 : i32
    %c0_i32_0 = arith.constant 0 : i32
    %c0_i32_1 = arith.constant 0 : i32
    return %c0_i32, %c0_i32_0 : i32, i32
  }
  func.func @transform_12(%arg0: i32) -> (i32, i32) {
    %c0_i32 = arith.constant 0 : i32
    %c0_i32_0 = arith.constant 0 : i32
    %c0_i32_1 = arith.constant 0 : i32
    return %c0_i32, %c0_i32_0 : i32, i32
  }
  func.func @transform_13(%arg0: i32) -> (i32, i32, i32) {
    %c0_i32 = arith.constant 0 : i32
    %c0_i32_0 = arith.constant 0 : i32
    %c0_i32_1 = arith.constant 0 : i32
    return %arg0, %c0_i32, %c0_i32_0 : i32, i32, i32
  }
}

</mosaic_0001>

<llo_original>
// kernel: tpu_custom_call.1
$region0: #{tpu_custom_call.1}
  #allocation0 [shape = 'u32[]', space=smem, size = 0x4, offset = 0x4, fixed_abs, tag = 'smem constant byte address 0x4 - core index']
  #allocation1 [shape = 'u32[144,128]{1,0:T(1,128)}', space=vmem, size = 0x12000, scoped, tag = 'internal scratch']
  %s0 = inlined_call_operand.hbm [shape: f32[2,8,128], index: 0, kind: input, shape index: {}]
  %s1 = inlined_call_operand.hbm [shape: f32[1,128], index: 1, kind: input, shape index: {}]
  %s2 = inlined_call_operand.hbm [shape: f32[1,128], index: 2, kind: input, shape index: {}]
  %s3 = inlined_call_operand.hbm [shape: bf16[128,384], index: 3, kind: input, shape index: {}]
  %s4 = inlined_call_operand.vmem [shape: f32[1,384], index: 4, kind: input, shape index: {}]
  %s5 = inlined_call_operand.hbm [shape: bf16[128,128], index: 5, kind: input, shape index: {}]
  %s6 = inlined_call_operand.vmem [shape: f32[1,128], index: 6, kind: input, shape index: {}]
  %s7 = inlined_call_operand.vmem [shape: f32[1,128], index: 7, kind: input, shape index: {}]
  %s8 = inlined_call_operand.vmem [shape: f32[1,128], index: 8, kind: input, shape index: {}]
  %s9 = inlined_call_operand.hbm [shape: bf16[128,512], index: 9, kind: input, shape index: {}]
  %s10 = inlined_call_operand.vmem [shape: f32[1,512], index: 10, kind: input, shape index: {}]
  %s11 = inlined_call_operand.hbm [shape: bf16[512,128], index: 11, kind: input, shape index: {}]
  %s12 = inlined_call_operand.vmem [shape: f32[1,128], index: 12, kind: input, shape index: {}]
  %s13 = inlined_call_operand.hbm [shape: f32[2,8,128], index: 13, kind: output, shape index: {}]
  %s14 = sld [smem:[#allocation0]]
  $region90: #{tpu_custom_call.1} parent=0
    _
  %s16 = ssub.s32 1, %s14
  %s17 = scalar_select 0, %s16, %s14
  $region1: #{tpu_custom_call.1} parent=0
    #allocation2 [shape = 'u8[8192]{0}', space=vmem, size = 0x2000, scoped, tag = 'input window, operand 0, single buffered']
    #allocation3 [shape = 's32[1]{0}', space=sflag, size = 0x4, scoped, tag = 'scoped memory for tpu_custom_call.1']
    #allocation4 [shape = 's32[1]{0}', space=sflag, size = 0x4, scoped, tag = 'scoped memory for tpu_custom_call.1']
    #allocation5 [shape = 'u8[512]{0}', space=vmem, size = 0x400, scoped, tag = 'input window, operand 1, single buffered']
    #allocation6 [shape = 's32[1]{0}', space=sflag, size = 0x4, scoped, tag = 'scoped memory for tpu_custom_call.1']
    #allocation7 [shape = 'u8[512]{0}', space=vmem, size = 0x400, scoped, tag = 'input window, operand 2, single buffered']
    #allocation8 [shape = 'u8[98304]{0}', space=vmem, size = 0x18000, scoped, tag = 'input window, operand 3, single buffered']
    #allocation9 [shape = 's32[1]{0}', space=sflag, size = 0x4, scoped, tag = 'scoped memory for tpu_custom_call.1']
    #allocation10 [shape = 'u8[32768]{0}', space=vmem, size = 0x8000, scoped, tag = 'input window, operand 5, single buffered']
    #allocation11 [shape = 'u8[131072]{0}', space=vmem, size = 0x20000, scoped, tag = 'input window, operand 9, single buffered']
    #allocation12 [shape = 's32[1]{0}', space=sflag, size = 0x4, scoped, tag = 'scoped memory for tpu_custom_call.1']
    #allocation13 [shape = 'u8[131072]{0}', space=vmem, size = 0x20000, scoped, tag = 'input window, operand 11, single buffered']
    #allocation14 [shape = 'u8[8192]{0}', space=vmem, size = 0x2000, scoped, tag = 'output window, operand 0, single buffered']
    %18 = vsyncpa [#allocation3], 0
    %19 = vsyncpa [#allocation6], 0
    %20 = vsyncpa [#allocation9], 0
    %21 = vsyncpa [#allocation12], 0
    %22 = vsyncpa [#allocation4], 0
    // Predicated region
    $region2: #{tpu_custom_call.1} parent=1 // pred_check
      _
    $region3: #{tpu_custom_call.1} parent=1 // pred_check_branch
      %24 = sbr.rel (0) target = $region5
    $region4: #{tpu_custom_call.1} parent=1 // pred_region
      %s26 = ssub.s32 256, 256
      %27 = vsyncadd [#allocation3], %s26
      %s28 = sshll.u32 [#allocation2], 4
      %s29 = int_to_ptr.vmem [resolvable:$true] %s28
      %34 = dma.hbm_to_vmem [thread:$0]  %s0, 256, %s29, [#allocation3], 128, 128, 8
    $region5: #{tpu_custom_call.1} parent=1 // pred_fallthru
      _
    // Predicated region
    $region6: #{tpu_custom_call.1} parent=1 // pred_check
      _
    $region7: #{tpu_custom_call.1} parent=1 // pred_check_branch
      %36 = sbr.rel (0) target = $region9
    $region8: #{tpu_custom_call.1} parent=1 // pred_region
      %s38 = ssub.s32 16, 16
      %39 = vsyncadd [#allocation6], %s38
      %s41 = sshll.u32 [#allocation5], 4
      %s42 = int_to_ptr.vmem [resolvable:$true] %s41
      %44 = dma.hbm_to_vmem [thread:$0]  %s1, 16, %s42, [#allocation6]
    $region9: #{tpu_custom_call.1} parent=1 // pred_fallthru
      _
    // Predicated region
    $region10: #{tpu_custom_call.1} parent=1 // pred_check
      _
    $region11: #{tpu_custom_call.1} parent=1 // pred_check_branch
      %46 = sbr.rel (0) target = $region13
    $region12: #{tpu_custom_call.1} parent=1 // pred_region
      %s48 = ssub.s32 16, 16
      %49 = vsyncadd [#allocation6], %s48
      %s51 = sshll.u32 [#allocation7], 4
      %s52 = int_to_ptr.vmem [resolvable:$true] %s51
      %54 = dma.hbm_to_vmem [thread:$0]  %s2, 16, %s52, [#allocation6]
    $region13: #{tpu_custom_call.1} parent=1 // pred_fallthru
      _
    // Predicated region
    $region14: #{tpu_custom_call.1} parent=1 // pred_check
      _
    $region15: #{tpu_custom_call.1} parent=1 // pred_check_branch
      %56 = sbr.rel (0) target = $region17
    $region16: #{tpu_custom_call.1} parent=1 // pred_region
      %s58 = ssub.s32 3072, 3072
      %59 = vsyncadd [#allocation9], %s58
      %s60 = sshll.u32 [#allocation8], 4
      %s61 = int_to_ptr.vmem [resolvable:$true] %s60
      %66 = dma.hbm_to_vmem [thread:$0]  %s3, 3072, %s61, [#allocation9], 192, 192, 12
    $region17: #{tpu_custom_call.1} parent=1 // pred_fallthru
      _
    // Predicated region
    $region18: #{tpu_custom_call.1} parent=1 // pred_check
      _
    $region19: #{tpu_custom_call.1} parent=1 // pred_check_branch
      %68 = sbr.rel (0) target = $region21
    $region20: #{tpu_custom_call.1} parent=1 // pred_region
      _
    $region21: #{tpu_custom_call.1} parent=1 // pred_fallthru
      _
    // Predicated region
    $region22: #{tpu_custom_call.1} parent=1 // pred_check
      _
    $region23: #{tpu_custom_call.1} parent=1 // pred_check_branch
      %70 = sbr.rel (0) target = $region25
    $region24: #{tpu_custom_call.1} parent=1 // pred_region
      %s72 = ssub.s32 1024, 1024
      %73 = vsyncadd [#allocation9], %s72
      %s74 = sshll.u32 [#allocation10], 4
      %s75 = int_to_ptr.vmem [resolvable:$true] %s74
      %80 = dma.hbm_to_vmem [thread:$0]  %s5, 1024, %s75, [#allocation9], 64, 64, 4
    $region25: #{tpu_custom_call.1} parent=1 // pred_fallthru
      _
    // Predicated region
    $region26: #{tpu_custom_call.1} parent=1 // pred_check
      _
    $region27: #{tpu_custom_call.1} parent=1 // pred_check_branch
      %82 = sbr.rel (0) target = $region29
    $region28: #{tpu_custom_call.1} parent=1 // pred_region
      _
    $region29: #{tpu_custom_call.1} parent=1 // pred_fallthru
      _
    // Predicated region
    $region30: #{tpu_custom_call.1} parent=1 // pred_check
      _
    $region31: #{tpu_custom_call.1} parent=1 // pred_check_branch
      %84 = sbr.rel (0) target = $region33
    $region32: #{tpu_custom_call.1} parent=1 // pred_region
      _
    $region33: #{tpu_custom_call.1} parent=1 // pred_fallthru
      _
    // Predicated region
    $region34: #{tpu_custom_call.1} parent=1 // pred_check
      _
    $region35: #{tpu_custom_call.1} parent=1 // pred_check_branch
      %86 = sbr.rel (0) target = $region37
    $region36: #{tpu_custom_call.1} parent=1 // pred_region
      _
    $region37: #{tpu_custom_call.1} parent=1 // pred_fallthru
      _
    // Predicated region
    $region38: #{tpu_custom_call.1} parent=1 // pred_check
      _
    $region39: #{tpu_custom_call.1} parent=1 // pred_check_branch
      %88 = sbr.rel (0) target = $region41
    $region40: #{tpu_custom_call.1} parent=1 // pred_region
      %s90 = ssub.s32 4096, 4096
      %91 = vsyncadd [#allocation12], %s90
      %s92 = sshll.u32 [#allocation11], 4
      %s93 = int_to_ptr.vmem [resolvable:$true] %s92
      %98 = dma.hbm_to_vmem [thread:$0]  %s9, 4096, %s93, [#allocation12], 256, 256, 16
    $region41: #{tpu_custom_call.1} parent=1 // pred_fallthru
      _
    // Predicated region
    $region42: #{tpu_custom_call.1} parent=1 // pred_check
      _
    $region43: #{tpu_custom_call.1} parent=1 // pred_check_branch
      %100 = sbr.rel (0) target = $region45
    $region44: #{tpu_custom_call.1} parent=1 // pred_region
      _
    $region45: #{tpu_custom_call.1} parent=1 // pred_fallthru
      _
    // Predicated region
    $region46: #{tpu_custom_call.1} parent=1 // pred_check
      _
    $region47: #{tpu_custom_call.1} parent=1 // pred_check_branch
      %102 = sbr.rel (0) target = $region49
    $region48: #{tpu_custom_call.1} parent=1 // pred_region
      %s104 = ssub.s32 4096, 4096
      %105 = vsyncadd [#allocation12], %s104
      %s106 = sshll.u32 [#allocation13], 4
      %s107 = int_to_ptr.vmem [resolvable:$true] %s106
      %112 = dma.hbm_to_vmem [thread:$0]  %s11, 4096, %s107, [#allocation12], 64, 64, 4
    $region49: #{tpu_custom_call.1} parent=1 // pred_fallthru
      _
    // Predicated region
    $region50: #{tpu_custom_call.1} parent=1 // pred_check
      _
    $region51: #{tpu_custom_call.1} parent=1 // pred_check_branch
      %114 = sbr.rel (0) target = $region53
    $region52: #{tpu_custom_call.1} parent=1 // pred_region
      _
    $region53: #{tpu_custom_call.1} parent=1 // pred_fallthru
      _
    // Predicated region
    $region54: #{tpu_custom_call.1} parent=1 // pred_check
      _
    $region55: #{tpu_custom_call.1} parent=1 // pred_check_branch
      %116 = sbr.rel (0) target = $region57
    $region56: #{tpu_custom_call.1} parent=1 // pred_region
      %117 = dma.done [#allocation3], 256
    $region57: #{tpu_custom_call.1} parent=1 // pred_fallthru
      _
    // Predicated region
    $region58: #{tpu_custom_call.1} parent=1 // pred_check
      _
    $region59: #{tpu_custom_call.1} parent=1 // pred_check_branch
      %119 = sbr.rel (0) target = $region61
    $region60: #{tpu_custom_call.1} parent=1 // pred_region
      %120 = dma.done [#allocation6], 16
    $region61: #{tpu_custom_call.1} parent=1 // pred_fallthru
      _
    // Predicated region
    $region62: #{tpu_custom_call.1} parent=1 // pred_check
      _
    $region63: #{tpu_custom_call.1} parent=1 // pred_check_branch
      %122 = sbr.rel (0) target = $region65
    $region64: #{tpu_custom_call.1} parent=1 // pred_region
      %123 = dma.done [#allocation6], 16
    $region65: #{tpu_custom_call.1} parent=1 // pred_fallthru
      _
    // Predicated region
    $region66: #{tpu_custom_call.1} parent=1 // pred_check
      _
    $region67: #{tpu_custom_call.1} parent=1 // pred_check_branch
      %125 = sbr.rel (0) target = $region69
    $region68: #{tpu_custom_call.1} parent=1 // pred_region
      %126 = dma.done [#allocation9], 3072
    $region69: #{tpu_custom_call.1} parent=1 // pred_fallthru
      _
    // Predicated region
    $region70: #{tpu_custom_call.1} parent=1 // pred_check
      _
    $region71: #{tpu_custom_call.1} parent=1 // pred_check_branch
      %128 = sbr.rel (0) target = $region73
    $region72: #{tpu_custom_call.1} parent=1 // pred_region
      %129 = dma.done [#allocation9], 1024
    $region73: #{tpu_custom_call.1} parent=1 // pred_fallthru
      _
    // Predicated region
    $region74: #{tpu_custom_call.1} parent=1 // pred_check
      _
    $region75: #{tpu_custom_call.1} parent=1 // pred_check_branch
      %131 = sbr.rel (0) target = $region77
    $region76: #{tpu_custom_call.1} parent=1 // pred_region
      %132 = dma.done [#allocation12], 4096
    $region77: #{tpu_custom_call.1} parent=1 // pred_fallthru
      _
    // Predicated region
    $region78: #{tpu_custom_call.1} parent=1 // pred_check
      _
    $region79: #{tpu_custom_call.1} parent=1 // pred_check_branch
      %134 = sbr.rel (0) target = $region81
    $region80: #{tpu_custom_call.1} parent=1 // pred_region
      %135 = dma.done [#allocation12], 4096
    $region81: #{tpu_custom_call.1} parent=1 // pred_fallthru
      _
    %v137 = vld [vmem:[#allocation2] sm:$0xff]
    %v138 = vld [vmem:[#allocation2 + $0x8] sm:$0xff]
    %139 = vadd.xlane.f32.xlu0 %v137
    %v140 = vpop.xlane.xlu0 %139
    %141 = vadd.xlane.f32.xlu0 %v138
    %v142 = vpop.xlane.xlu0 %141
    %v143 = vrcp.pop 128.0
    %v144 = vmul.f32 %v140, %v143
    %v145 = vmul.f32 %v142, %v143
    %v146 = vsub.f32 %v137, %v144
    %v147 = vsub.f32 %v138, %v145
    %v148 = vmul.f32 %v146, %v146
    %v149 = vmul.f32 %v147, %v147
    %150 = vadd.xlane.f32.xlu0 %v148
    %v151 = vpop.xlane.xlu0 %150
    %152 = vadd.xlane.f32.xlu0 %v149
    %v153 = vpop.xlane.xlu0 %152
    %v154 = vmul.f32 %v151, %v143
    %v155 = vmul.f32 %v153, %v143
    %v156 = vadd.f32 %v154, 1e-05
    %v157 = vadd.f32 %v155, 1e-05
    %v158 = vrsqrt.pop %v156
    %v159 = vrsqrt.pop %v157
    %v160 = vmul.f32 %v146, %v158
    %v161 = vmul.f32 %v147, %v159
    %v162 = vld [vmem:[#allocation5] sm:$0x1]
    %v164 = vlaneseq
    %v165 = vshrl.u32 %v164, 7
    %v166 = vsub.s32 0, %v165
    %v167 = vrot.slane %v162, %v166
    %v169 = vmul.f32 %v160, %v167
    %v170 = vmul.f32 %v161, %v167
    %v171 = vld [vmem:[#allocation7] sm:$0x1]
    %v173 = vlaneseq
    %v174 = vshrl.u32 %v173, 7
    %v175 = vsub.s32 0, %v174
    %v176 = vrot.slane %v171, %v175
    %v178 = vadd.f32 %v169, %v176
    %v179 = vadd.f32 %v170, %v176
    %v180 = vpack.c.bf16 %v179, %v178
    %v181 = vld [vmem:[#allocation8] sm:$0xff]
    %v182 = vld [vmem:[#allocation8 + $0x8] sm:$0xf]
    %v183 = vld [vmem:[#allocation8 + $0xc] sm:$0xff]
    %v184 = vld [vmem:[#allocation8 + $0x14] sm:$0xf]
    %v185 = vld [vmem:[#allocation8 + $0x18] sm:$0xff]
    %v186 = vld [vmem:[#allocation8 + $0x20] sm:$0xf]
    %v187 = vld [vmem:[#allocation8 + $0x24] sm:$0xff]
    %v188 = vld [vmem:[#allocation8 + $0x2c] sm:$0xf]
    %v189 = vld [vmem:[#allocation8 + $0x30] sm:$0xff]
    %v190 = vld [vmem:[#allocation8 + $0x38] sm:$0xf]
    %v191 = vld [vmem:[#allocation8 + $0x3c] sm:$0xff]
    %v192 = vld [vmem:[#allocation8 + $0x44] sm:$0xf]
    %v193 = vld [vmem:[#allocation8 + $0x48] sm:$0xff]
    %v194 = vld [vmem:[#allocation8 + $0x50] sm:$0xf]
    %v195 = vld [vmem:[#allocation8 + $0x54] sm:$0xff]
    %v196 = vld [vmem:[#allocation8 + $0x5c] sm:$0xf]
    %v197 = vld [vmem:[#allocation8 + $0x60] sm:$0xff]
    %v198 = vld [vmem:[#allocation8 + $0x68] sm:$0xf]
    %v199 = vld [vmem:[#allocation8 + $0x6c] sm:$0xff]
    %v200 = vld [vmem:[#allocation8 + $0x74] sm:$0xf]
    %v201 = vld [vmem:[#allocation8 + $0x78] sm:$0xff]
    %v202 = vld [vmem:[#allocation8 + $0x80] sm:$0xf]
    %v203 = vld [vmem:[#allocation8 + $0x84] sm:$0xff]
    %v204 = vld [vmem:[#allocation8 + $0x8c] sm:$0xf]
    %v205 = vld [vmem:[#allocation8 + $0x90] sm:$0xff]
    %v206 = vld [vmem:[#allocation8 + $0x98] sm:$0xf]
    %v207 = vld [vmem:[#allocation8 + $0x9c] sm:$0xff]
    %v208 = vld [vmem:[#allocation8 + $0xa4] sm:$0xf]
    %v209 = vld [vmem:[#allocation8 + $0xa8] sm:$0xff]
    %v210 = vld [vmem:[#allocation8 + $0xb0] sm:$0xf]
    %v211 = vld [vmem:[#allocation8 + $0xb4] sm:$0xff]
    %v212 = vld [vmem:[#allocation8 + $0xbc] sm:$0xf]
    %v213 = vld [vmem:[%s4] sm:$0x7]
    %v215 = vlaneseq
    %v216 = vshrl.u32 %v215, 7
    %v217 = vsub.s32 0, %v216
    %v218 = vrot.slane %v213, %v217
    %v219 = vlaneseq
    %v220 = vshrl.u32 %v219, 7
    %v221 = vsub.s32 1, %v220
    %v222 = vrot.slane %v213, %v221
    %v223 = vlaneseq
    %v224 = vshrl.u32 %v223, 7
    %v225 = vsub.s32 2, %v224
    %v226 = vrot.slane %v213, %v225
    %v262 = vunpack.c.l.b16 %v181
    %v263 = vunpack.c.h.b16 %v181
    %v264 = vunpack.c.l.b16 %v182
    %v265 = vunpack.c.l.b16 %v183
    %v266 = vunpack.c.h.b16 %v183
    %v267 = vunpack.c.l.b16 %v184
    %v268 = vunpack.c.l.b16 %v185
    %v269 = vunpack.c.h.b16 %v185
    %v270 = vunpack.c.l.b16 %v186
    %v271 = vunpack.c.l.b16 %v187
    %v272 = vunpack.c.h.b16 %v187
    %v273 = vunpack.c.l.b16 %v188
    %v274 = vunpack.c.l.b16 %v189
    %v275 = vunpack.c.h.b16 %v189
    %v276 = vunpack.c.l.b16 %v190
    %v277 = vunpack.c.l.b16 %v191
    %v278 = vunpack.c.h.b16 %v191
    %v279 = vunpack.c.l.b16 %v192
    %v280 = vunpack.c.l.b16 %v193
    %v281 = vunpack.c.h.b16 %v193
    %v282 = vunpack.c.l.b16 %v194
    %v283 = vunpack.c.l.b16 %v195
    %v284 = vunpack.c.h.b16 %v195
    %v285 = vunpack.c.l.b16 %v196
    %v286 = vunpack.c.l.b16 %v197
    %v287 = vunpack.c.h.b16 %v197
    %v288 = vunpack.c.l.b16 %v198
    %v289 = vunpack.c.l.b16 %v199
    %v290 = vunpack.c.h.b16 %v199
    %v291 = vunpack.c.l.b16 %v200
    %v292 = vunpack.c.l.b16 %v201
    %v293 = vunpack.c.h.b16 %v201
    %v294 = vunpack.c.l.b16 %v202
    %v295 = vunpack.c.l.b16 %v203
    %v296 = vunpack.c.h.b16 %v203
    %v297 = vunpack.c.l.b16 %v204
    %v298 = vunpack.c.l.b16 %v205
    %v299 = vunpack.c.h.b16 %v205
    %v300 = vunpack.c.l.b16 %v206
    %v301 = vunpack.c.l.b16 %v207
    %v302 = vunpack.c.h.b16 %v207
    %v303 = vunpack.c.l.b16 %v208
    %v304 = vunpack.c.l.b16 %v209
    %v305 = vunpack.c.h.b16 %v209
    %v306 = vunpack.c.l.b16 %v210
    %v307 = vunpack.c.l.b16 %v211
    %v308 = vunpack.c.h.b16 %v211
    %v309 = vunpack.c.l.b16 %v212
    %v310 = vpack.c.b16 %v265, %v262
    %v311 = vpack.c.b16 %v266, %v263
    %v312 = vpack.c.b16 %v267, %v264
    %v313 = vpack.c.b16 %v271, %v268
    %v314 = vpack.c.b16 %v272, %v269
    %v315 = vpack.c.b16 %v273, %v270
    %v316 = vpack.c.b16 %v277, %v274
    %v317 = vpack.c.b16 %v278, %v275
    %v318 = vpack.c.b16 %v279, %v276
    %v319 = vpack.c.b16 %v283, %v280
    %v320 = vpack.c.b16 %v284, %v281
    %v321 = vpack.c.b16 %v285, %v282
    %v322 = vpack.c.b16 %v289, %v286
    %v323 = vpack.c.b16 %v290, %v287
    %v324 = vpack.c.b16 %v291, %v288
    %v325 = vpack.c.b16 %v295, %v292
    %v326 = vpack.c.b16 %v296, %v293
    %v327 = vpack.c.b16 %v297, %v294
    %v328 = vpack.c.b16 %v301, %v298
    %v329 = vpack.c.b16 %v302, %v299
    %v330 = vpack.c.b16 %v303, %v300
    %v331 = vpack.c.b16 %v307, %v304
    %v332 = vpack.c.b16 %v308, %v305
    %v333 = vpack.c.b16 %v309, %v306
    %358 = vmatprep.subr.bf16.mxu0 %v311
    %359 = vmatpush1.bf16.msra.mxu0 %v310
    %360 = vmatprep.subr.bf16.mxu0 %v314
    %361 = vmatpush1.bf16.msra.mxu0 %v313
    %362 = vmatprep.subr.bf16.mxu0 %v317
    %363 = vmatpush1.bf16.msra.mxu0 %v316
    %364 = vmatprep.subr.bf16.mxu0 %v320
    %365 = vmatpush1.bf16.msra.mxu0 %v319
    %366 = vmatprep.subr.bf16.mxu0 %v323
    %367 = vmatpush1.bf16.msra.mxu0 %v322
    %368 = vmatprep.subr.bf16.mxu0 %v326
    %369 = vmatpush1.bf16.msra.mxu0 %v325
    %370 = vmatprep.subr.bf16.mxu0 %v329
    %371 = vmatpush1.bf16.msra.mxu0 %v328
    %372 = vmatprep.subr.bf16.mxu0 %v332
    %373 = vmatpush1.bf16.msra.mxu0 %v331
    %374 = vmatprep.subr.bf16.mxu0 0
    %375 = vmatpush1.bf16.msra.mxu0 0
    %376 = vmatprep.subr.bf16.mxu0 0
    %377 = vmatpush1.bf16.msra.mxu0 0
    %378 = vmatprep.subr.bf16.mxu0 0
    %379 = vmatpush1.bf16.msra.mxu0 0
    %380 = vmatprep.subr.bf16.mxu0 0
    %381 = vmatpush1.bf16.msra.mxu0 0
    %382 = vmatprep.subr.bf16.mxu0 0
    %383 = vmatpush1.bf16.msra.mxu0 0
    %384 = vmatprep.subr.bf16.mxu0 0
    %385 = vmatpush1.bf16.msra.mxu0 0
    %386 = vmatprep.subr.bf16.mxu0 0
    %387 = vmatpush1.bf16.msra.mxu0 0
    %388 = vmatprep.subr.bf16.mxu0 0
    %389 = vmatpush1.bf16.msra.mxu0 0
    %390 = vmatprep.mubr.bf16.mxu0 0
    %391 = vmatmul.mubr.bf16.gmra.mrb[0].mxu0 %v180
    %v392 = vpop.f32.mrb[0].mxu0
    %v393 = vadd.f32 %v218, %v392
    %v394 = vpop.f32.mrb[0].mxu0
    %v395 = vadd.f32 %v222, %v394
    %v396 = vpop.f32.mrb[0].mxu0
    %v397 = vadd.f32 %v218, %v396
    %v398 = vpop.f32.mrb[0].mxu0
    %v399 = vadd.f32 %v222, %v398
    %400 = vdwg.mxu0
    %401 = vmatprep.subr.bf16.mxu0 0
    %402 = vmatpush1.bf16.msra.mxu0 %v312
    %403 = vmatprep.subr.bf16.mxu0 0
    %404 = vmatpush1.bf16.msra.mxu0 %v315
    %405 = vmatprep.subr.bf16.mxu0 0
    %406 = vmatpush1.bf16.msra.mxu0 %v318
    %407 = vmatprep.subr.bf16.mxu0 0
    %408 = vmatpush1.bf16.msra.mxu0 %v321
    %409 = vmatprep.subr.bf16.mxu0 0
    %410 = vmatpush1.bf16.msra.mxu0 %v324
    %411 = vmatprep.subr.bf16.mxu0 0
    %412 = vmatpush1.bf16.msra.mxu0 %v327
    %413 = vmatprep.subr.bf16.mxu0 0
    %414 = vmatpush1.bf16.msra.mxu0 %v330
    %415 = vmatprep.subr.bf16.mxu0 0
    %416 = vmatpush1.bf16.msra.mxu0 %v333
    %417 = vmatprep.subr.bf16.mxu0 0
    %418 = vmatpush1.bf16.msra.mxu0 0
    %419 = vmatprep.subr.bf16.mxu0 0
    %420 = vmatpush1.bf16.msra.mxu0 0
    %421 = vmatprep.subr.bf16.mxu0 0
    %422 = vmatpush1.bf16.msra.mxu0 0
    %423 = vmatprep.subr.bf16.mxu0 0
    %424 = vmatpush1.bf16.msra.mxu0 0
    %425 = vmatprep.subr.bf16.mxu0 0
    %426 = vmatpush1.bf16.msra.mxu0 0
    %427 = vmatprep.subr.bf16.mxu0 0
    %428 = vmatpush1.bf16.msra.mxu0 0
    %429 = vmatprep.subr.bf16.mxu0 0
    %430 = vmatpush1.bf16.msra.mxu0 0
    %431 = vmatprep.subr.bf16.mxu0 0
    %432 = vmatpush1.bf16.msra.mxu0 0
    %433 = vmatprep.mubr.bf16.mxu0 0
    %434 = vmatmul.mubr.bf16.gmra.mrb[0].mxu0 %v180
    %v435 = vpop.f32.mrb[0].mxu0
    %v436 = vadd.f32 %v226, %v435
    %v437 = vpop.f32.mrb[0].mxu0
    %v438 = vpop.f32.mrb[0].mxu0
    %v439 = vadd.f32 %v226, %v438
    %v440 = vpop.f32.mrb[0].mxu0
    %441 = vdwg.mxu0
    %444 = vrot.lane.b32.xlu0 %v393, 96
    %v445 = vpop.permute.xlu0 %444
    %446 = vrot.lane.b32.xlu0 %v397, 96
    %v447 = vpop.permute.xlu0 %446
    %450 = vrot.lane.b32.xlu0 %v393, 64
    %v451 = vpop.permute.xlu0 %450
    %452 = vrot.lane.b32.xlu0 %v397, 64
    %v453 = vpop.permute.xlu0 %452
    %456 = vrot.lane.b32.xlu0 %v393, 32
    %v457 = vpop.permute.xlu0 %456
    %458 = vrot.lane.b32.xlu0 %v397, 32
    %v459 = vpop.permute.xlu0 %458
    %v462 = vmul.f32 %v393, 0.17677669
    %v463 = vmul.f32 %v445, 0.17677669
    %v464 = vmul.f32 %v451, 0.17677669
    %v465 = vmul.f32 %v457, 0.17677669
    %v466 = vmul.f32 %v397, 0.17677669
    %v467 = vmul.f32 %v447, 0.17677669
    %v468 = vmul.f32 %v453, 0.17677669
    %v469 = vmul.f32 %v459, 0.17677669
    %472 = vrot.lane.b32.xlu0 %v395, 96
    %v473 = vpop.permute.xlu0 %472
    %474 = vrot.lane.b32.xlu0 %v399, 96
    %v475 = vpop.permute.xlu0 %474
    %478 = vrot.lane.b32.xlu0 %v395, 64
    %v479 = vpop.permute.xlu0 %478
    %480 = vrot.lane.b32.xlu0 %v399, 64
    %v481 = vpop.permute.xlu0 %480
    %484 = vrot.lane.b32.xlu0 %v395, 32
    %v485 = vpop.permute.xlu0 %484
    %486 = vrot.lane.b32.xlu0 %v399, 32
    %v487 = vpop.permute.xlu0 %486
    %492 = vrot.lane.b32.xlu0 %v436, 96
    %v493 = vpop.permute.xlu0 %492
    %494 = vrot.lane.b32.xlu0 %v439, 96
    %v495 = vpop.permute.xlu0 %494
    %498 = vrot.lane.b32.xlu0 %v436, 64
    %v499 = vpop.permute.xlu0 %498
    %500 = vrot.lane.b32.xlu0 %v439, 64
    %v501 = vpop.permute.xlu0 %500
    %504 = vrot.lane.b32.xlu0 %v436, 32
    %v505 = vpop.permute.xlu0 %504
    %506 = vrot.lane.b32.xlu0 %v439, 32
    %v507 = vpop.permute.xlu0 %506
    %v510 = vpack.c.bf16 %v462, %v462
    %v511 = vpack.c.bf16 %v463, %v463
    %v512 = vpack.c.bf16 %v464, %v464
    %v513 = vpack.c.bf16 %v465, %v465
    %v514 = vpack.c.bf16 %v466, %v466
    %v515 = vpack.c.bf16 %v467, %v467
    %v516 = vpack.c.bf16 %v468, %v468
    %v517 = vpack.c.bf16 %v469, %v469
    %v518 = vpack.c.bf16 %v395, %v395
    %v519 = vpack.c.bf16 %v473, %v473
    %v520 = vpack.c.bf16 %v479, %v479
    %v521 = vpack.c.bf16 %v485, %v485
    %v522 = vpack.c.bf16 %v399, %v399
    %v523 = vpack.c.bf16 %v475, %v475
    %v524 = vpack.c.bf16 %v481, %v481
    %v525 = vpack.c.bf16 %v487, %v487
    %vm526 = vcmask 261120
    %v528 = vsel %vm526, %v510, 0
    %v531 = vsel %vm526, %v518, 0
    %533 = vmatprep.subr.bf16.mxu0 0
    %534 = vmatpush1.bf16.xpose.msra.mxu0 %v531
    %535 = vmatprep.subr.bf16.mxu0 0
    %536 = vmatpush1.bf16.xpose.msra.mxu0 0
    %537 = vmatprep.subr.bf16.mxu0 0
    %538 = vmatpush1.bf16.xpose.msra.mxu0 0
    %539 = vmatprep.subr.bf16.mxu0 0
    %540 = vmatpush1.bf16.xpose.msra.mxu0 0
    %541 = vmatprep.subr.bf16.mxu0 0
    %542 = vmatpush1.bf16.xpose.msra.mxu0 0
    %543 = vmatprep.subr.bf16.mxu0 0
    %544 = vmatpush1.bf16.xpose.msra.mxu0 0
    %545 = vmatprep.subr.bf16.mxu0 0
    %546 = vmatpush1.bf16.xpose.msra.mxu0 0
    %547 = vmatprep.subr.bf16.mxu0 0
    %548 = vmatpush1.bf16.xpose.msra.mxu0 0
    %549 = vmatprep.subr.bf16.mxu0 0
    %550 = vmatpush1.bf16.xpose.msra.mxu0 0
    %551 = vmatprep.subr.bf16.mxu0 0
    %552 = vmatpush1.bf16.xpose.msra.mxu0 0
    %553 = vmatprep.subr.bf16.mxu0 0
    %554 = vmatpush1.bf16.xpose.msra.mxu0 0
    %555 = vmatprep.subr.bf16.mxu0 0
    %556 = vmatpush1.bf16.xpose.msra.mxu0 0
    %557 = vmatprep.subr.bf16.mxu0 0
    %558 = vmatpush1.bf16.xpose.msra.mxu0 0
    %559 = vmatprep.subr.bf16.mxu0 0
    %560 = vmatpush1.bf16.xpose.msra.mxu0 0
    %561 = vmatprep.subr.bf16.mxu0 0
    %562 = vmatpush1.bf16.xpose.msra.mxu0 0
    %563 = vmatprep.subr.bf16.mxu0 0
    %564 = vmatpush1.bf16.xpose.msra.mxu0 0
    %565 = vmatprep.mubr.bf16.mxu0 0
    %566 = vmatmul.mubr.bf16.gmra.mrb[0].mxu0 %v528
    %v567 = vpop.f32.mrb[0].mxu0
    %v568 = vadd.f32 0.0, %v567
    %v569 = vpop.f32.mrb[0].mxu0
    %v570 = vpop.f32.mrb[0].mxu0
    %v571 = vpop.f32.mrb[0].mxu0
    %572 = vdwg.mxu0
    %v574 = vsel %vm526, %v511, 0
    %v577 = vsel %vm526, %v519, 0
    %579 = vmatprep.subr.bf16.mxu0 0
    %580 = vmatpush1.bf16.xpose.msra.mxu0 %v577
    %581 = vmatprep.subr.bf16.mxu0 0
    %582 = vmatpush1.bf16.xpose.msra.mxu0 0
    %583 = vmatprep.subr.bf16.mxu0 0
    %584 = vmatpush1.bf16.xpose.msra.mxu0 0
    %585 = vmatprep.subr.bf16.mxu0 0
    %586 = vmatpush1.bf16.xpose.msra.mxu0 0
    %587 = vmatprep.subr.bf16.mxu0 0
    %588 = vmatpush1.bf16.xpose.msra.mxu0 0
    %589 = vmatprep.subr.bf16.mxu0 0
    %590 = vmatpush1.bf16.xpose.msra.mxu0 0
    %591 = vmatprep.subr.bf16.mxu0 0
    %592 = vmatpush1.bf16.xpose.msra.mxu0 0
    %593 = vmatprep.subr.bf16.mxu0 0
    %594 = vmatpush1.bf16.xpose.msra.mxu0 0
    %595 = vmatprep.subr.bf16.mxu0 0
    %596 = vmatpush1.bf16.xpose.msra.mxu0 0
    %597 = vmatprep.subr.bf16.mxu0 0
    %598 = vmatpush1.bf16.xpose.msra.mxu0 0
    %599 = vmatprep.subr.bf16.mxu0 0
    %600 = vmatpush1.bf16.xpose.msra.mxu0 0
    %601 = vmatprep.subr.bf16.mxu0 0
    %602 = vmatpush1.bf16.xpose.msra.mxu0 0
    %603 = vmatprep.subr.bf16.mxu0 0
    %604 = vmatpush1.bf16.xpose.msra.mxu0 0
    %605 = vmatprep.subr.bf16.mxu0 0
    %606 = vmatpush1.bf16.xpose.msra.mxu0 0
    %607 = vmatprep.subr.bf16.mxu0 0
    %608 = vmatpush1.bf16.xpose.msra.mxu0 0
    %609 = vmatprep.subr.bf16.mxu0 0
    %610 = vmatpush1.bf16.xpose.msra.mxu0 0
    %611 = vmatprep.mubr.bf16.mxu0 0
    %612 = vmatmul.mubr.bf16.gmra.mrb[0].mxu0 %v574
    %v613 = vpop.f32.mrb[0].mxu0
    %v614 = vadd.f32 0.0, %v613
    %v615 = vpop.f32.mrb[0].mxu0
    %v616 = vpop.f32.mrb[0].mxu0
    %v617 = vpop.f32.mrb[0].mxu0
    %618 = vdwg.mxu0
    %v620 = vsel %vm526, %v512, 0
    %v623 = vsel %vm526, %v520, 0
    %625 = vmatprep.subr.bf16.mxu0 0
    %626 = vmatpush1.bf16.xpose.msra.mxu0 %v623
    %627 = vmatprep.subr.bf16.mxu0 0
    %628 = vmatpush1.bf16.xpose.msra.mxu0 0
    %629 = vmatprep.subr.bf16.mxu0 0
    %630 = vmatpush1.bf16.xpose.msra.mxu0 0
    %631 = vmatprep.subr.bf16.mxu0 0
    %632 = vmatpush1.bf16.xpose.msra.mxu0 0
    %633 = vmatprep.subr.bf16.mxu0 0
    %634 = vmatpush1.bf16.xpose.msra.mxu0 0
    %635 = vmatprep.subr.bf16.mxu0 0
    %636 = vmatpush1.bf16.xpose.msra.mxu0 0
    %637 = vmatprep.subr.bf16.mxu0 0
    %638 = vmatpush1.bf16.xpose.msra.mxu0 0
    %639 = vmatprep.subr.bf16.mxu0 0
    %640 = vmatpush1.bf16.xpose.msra.mxu0 0
    %641 = vmatprep.subr.bf16.mxu0 0
    %642 = vmatpush1.bf16.xpose.msra.mxu0 0
    %643 = vmatprep.subr.bf16.mxu0 0
    %644 = vmatpush1.bf16.xpose.msra.mxu0 0
    %645 = vmatprep.subr.bf16.mxu0 0
    %646 = vmatpush1.bf16.xpose.msra.mxu0 0
    %647 = vmatprep.subr.bf16.mxu0 0
    %648 = vmatpush1.bf16.xpose.msra.mxu0 0
    %649 = vmatprep.subr.bf16.mxu0 0
    %650 = vmatpush1.bf16.xpose.msra.mxu0 0
    %651 = vmatprep.subr.bf16.mxu0 0
    %652 = vmatpush1.bf16.xpose.msra.mxu0 0
    %653 = vmatprep.subr.bf16.mxu0 0
    %654 = vmatpush1.bf16.xpose.msra.mxu0 0
    %655 = vmatprep.subr.bf16.mxu0 0
    %656 = vmatpush1.bf16.xpose.msra.mxu0 0
    %657 = vmatprep.mubr.bf16.mxu0 0
    %658 = vmatmul.mubr.bf16.gmra.mrb[0].mxu0 %v620
    %v659 = vpop.f32.mrb[0].mxu0
    %v660 = vadd.f32 0.0, %v659
    %v661 = vpop.f32.mrb[0].mxu0
    %v662 = vpop.f32.mrb[0].mxu0
    %v663 = vpop.f32.mrb[0].mxu0
    %664 = vdwg.mxu0
    %v666 = vsel %vm526, %v513, 0
    %v669 = vsel %vm526, %v521, 0
    %671 = vmatprep.subr.bf16.mxu0 0
    %672 = vmatpush1.bf16.xpose.msra.mxu0 %v669
    %673 = vmatprep.subr.bf16.mxu0 0
    %674 = vmatpush1.bf16.xpose.msra.mxu0 0
    %675 = vmatprep.subr.bf16.mxu0 0
    %676 = vmatpush1.bf16.xpose.msra.mxu0 0
    %677 = vmatprep.subr.bf16.mxu0 0
    %678 = vmatpush1.bf16.xpose.msra.mxu0 0
    %679 = vmatprep.subr.bf16.mxu0 0
    %680 = vmatpush1.bf16.xpose.msra.mxu0 0
    %681 = vmatprep.subr.bf16.mxu0 0
    %682 = vmatpush1.bf16.xpose.msra.mxu0 0
    %683 = vmatprep.subr.bf16.mxu0 0
    %684 = vmatpush1.bf16.xpose.msra.mxu0 0
    %685 = vmatprep.subr.bf16.mxu0 0
    %686 = vmatpush1.bf16.xpose.msra.mxu0 0
    %687 = vmatprep.subr.bf16.mxu0 0
    %688 = vmatpush1.bf16.xpose.msra.mxu0 0
    %689 = vmatprep.subr.bf16.mxu0 0
    %690 = vmatpush1.bf16.xpose.msra.mxu0 0
    %691 = vmatprep.subr.bf16.mxu0 0
    %692 = vmatpush1.bf16.xpose.msra.mxu0 0
    %693 = vmatprep.subr.bf16.mxu0 0
    %694 = vmatpush1.bf16.xpose.msra.mxu0 0
    %695 = vmatprep.subr.bf16.mxu0 0
    %696 = vmatpush1.bf16.xpose.msra.mxu0 0
    %697 = vmatprep.subr.bf16.mxu0 0
    %698 = vmatpush1.bf16.xpose.msra.mxu0 0
    %699 = vmatprep.subr.bf16.mxu0 0
    %700 = vmatpush1.bf16.xpose.msra.mxu0 0
    %701 = vmatprep.subr.bf16.mxu0 0
    %702 = vmatpush1.bf16.xpose.msra.mxu0 0
    %703 = vmatprep.mubr.bf16.mxu0 0
    %704 = vmatmul.mubr.bf16.gmra.mrb[0].mxu0 %v666
    %v705 = vpop.f32.mrb[0].mxu0
    %v706 = vadd.f32 0.0, %v705
    %v707 = vpop.f32.mrb[0].mxu0
    %v708 = vpop.f32.mrb[0].mxu0
    %v709 = vpop.f32.mrb[0].mxu0
    %710 = vdwg.mxu0
    %v712 = vsel %vm526, %v514, 0
    %v715 = vsel %vm526, %v522, 0
    %717 = vmatprep.subr.bf16.mxu0 0
    %718 = vmatpush1.bf16.xpose.msra.mxu0 %v715
    %719 = vmatprep.subr.bf16.mxu0 0
    %720 = vmatpush1.bf16.xpose.msra.mxu0 0
    %721 = vmatprep.subr.bf16.mxu0 0
    %722 = vmatpush1.bf16.xpose.msra.mxu0 0
    %723 = vmatprep.subr.bf16.mxu0 0
    %724 = vmatpush1.bf16.xpose.msra.mxu0 0
    %725 = vmatprep.subr.bf16.mxu0 0
    %726 = vmatpush1.bf16.xpose.msra.mxu0 0
    %727 = vmatprep.subr.bf16.mxu0 0
    %728 = vmatpush1.bf16.xpose.msra.mxu0 0
    %729 = vmatprep.subr.bf16.mxu0 0
    %730 = vmatpush1.bf16.xpose.msra.mxu0 0
    %731 = vmatprep.subr.bf16.mxu0 0
    %732 = vmatpush1.bf16.xpose.msra.mxu0 0
    %733 = vmatprep.subr.bf16.mxu0 0
    %734 = vmatpush1.bf16.xpose.msra.mxu0 0
    %735 = vmatprep.subr.bf16.mxu0 0
    %736 = vmatpush1.bf16.xpose.msra.mxu0 0
    %737 = vmatprep.subr.bf16.mxu0 0
    %738 = vmatpush1.bf16.xpose.msra.mxu0 0
    %739 = vmatprep.subr.bf16.mxu0 0
    %740 = vmatpush1.bf16.xpose.msra.mxu0 0
    %741 = vmatprep.subr.bf16.mxu0 0
    %742 = vmatpush1.bf16.xpose.msra.mxu0 0
    %743 = vmatprep.subr.bf16.mxu0 0
    %744 = vmatpush1.bf16.xpose.msra.mxu0 0
    %745 = vmatprep.subr.bf16.mxu0 0
    %746 = vmatpush1.bf16.xpose.msra.mxu0 0
    %747 = vmatprep.subr.bf16.mxu0 0
    %748 = vmatpush1.bf16.xpose.msra.mxu0 0
    %749 = vmatprep.mubr.bf16.mxu0 0
    %750 = vmatmul.mubr.bf16.gmra.mrb[0].mxu0 %v712
    %v751 = vpop.f32.mrb[0].mxu0
    %v752 = vadd.f32 0.0, %v751
    %v753 = vpop.f32.mrb[0].mxu0
    %v754 = vpop.f32.mrb[0].mxu0
    %v755 = vpop.f32.mrb[0].mxu0
    %756 = vdwg.mxu0
    %v758 = vsel %vm526, %v515, 0
    %v761 = vsel %vm526, %v523, 0
    %763 = vmatprep.subr.bf16.mxu0 0
    %764 = vmatpush1.bf16.xpose.msra.mxu0 %v761
    %765 = vmatprep.subr.bf16.mxu0 0
    %766 = vmatpush1.bf16.xpose.msra.mxu0 0
    %767 = vmatprep.subr.bf16.mxu0 0
    %768 = vmatpush1.bf16.xpose.msra.mxu0 0
    %769 = vmatprep.subr.bf16.mxu0 0
    %770 = vmatpush1.bf16.xpose.msra.mxu0 0
    %771 = vmatprep.subr.bf16.mxu0 0
    %772 = vmatpush1.bf16.xpose.msra.mxu0 0
    %773 = vmatprep.subr.bf16.mxu0 0
    %774 = vmatpush1.bf16.xpose.msra.mxu0 0
    %775 = vmatprep.subr.bf16.mxu0 0
    %776 = vmatpush1.bf16.xpose.msra.mxu0 0
    %777 = vmatprep.subr.bf16.mxu0 0
    %778 = vmatpush1.bf16.xpose.msra.mxu0 0
    %779 = vmatprep.subr.bf16.mxu0 0
    %780 = vmatpush1.bf16.xpose.msra.mxu0 0
    %781 = vmatprep.subr.bf16.mxu0 0
    %782 = vmatpush1.bf16.xpose.msra.mxu0 0
    %783 = vmatprep.subr.bf16.mxu0 0
    %784 = vmatpush1.bf16.xpose.msra.mxu0 0
    %785 = vmatprep.subr.bf16.mxu0 0
    %786 = vmatpush1.bf16.xpose.msra.mxu0 0
    %787 = vmatprep.subr.bf16.mxu0 0
    %788 = vmatpush1.bf16.xpose.msra.mxu0 0
    %789 = vmatprep.subr.bf16.mxu0 0
    %790 = vmatpush1.bf16.xpose.msra.mxu0 0
    %791 = vmatprep.subr.bf16.mxu0 0
    %792 = vmatpush1.bf16.xpose.msra.mxu0 0
    %793 = vmatprep.subr.bf16.mxu0 0
    %794 = vmatpush1.bf16.xpose.msra.mxu0 0
    %795 = vmatprep.mubr.bf16.mxu0 0
    %796 = vmatmul.mubr.bf16.gmra.mrb[0].mxu0 %v758
    %v797 = vpop.f32.mrb[0].mxu0
    %v798 = vadd.f32 0.0, %v797
    %v799 = vpop.f32.mrb[0].mxu0
    %v800 = vpop.f32.mrb[0].mxu0
    %v801 = vpop.f32.mrb[0].mxu0
    %802 = vdwg.mxu0
    %v804 = vsel %vm526, %v516, 0
    %v807 = vsel %vm526, %v524, 0
    %809 = vmatprep.subr.bf16.mxu0 0
    %810 = vmatpush1.bf16.xpose.msra.mxu0 %v807
    %811 = vmatprep.subr.bf16.mxu0 0
    %812 = vmatpush1.bf16.xpose.msra.mxu0 0
    %813 = vmatprep.subr.bf16.mxu0 0
    %814 = vmatpush1.bf16.xpose.msra.mxu0 0
    %815 = vmatprep.subr.bf16.mxu0 0
    %816 = vmatpush1.bf16.xpose.msra.mxu0 0
    %817 = vmatprep.subr.bf16.mxu0 0
    %818 = vmatpush1.bf16.xpose.msra.mxu0 0
    %819 = vmatprep.subr.bf16.mxu0 0
    %820 = vmatpush1.bf16.xpose.msra.mxu0 0
    %821 = vmatprep.subr.bf16.mxu0 0
    %822 = vmatpush1.bf16.xpose.msra.mxu0 0
    %823 = vmatprep.subr.bf16.mxu0 0
    %824 = vmatpush1.bf16.xpose.msra.mxu0 0
    %825 = vmatprep.subr.bf16.mxu0 0
    %826 = vmatpush1.bf16.xpose.msra.mxu0 0
    %827 = vmatprep.subr.bf16.mxu0 0
    %828 = vmatpush1.bf16.xpose.msra.mxu0 0
    %829 = vmatprep.subr.bf16.mxu0 0
    %830 = vmatpush1.bf16.xpose.msra.mxu0 0
    %831 = vmatprep.subr.bf16.mxu0 0
    %832 = vmatpush1.bf16.xpose.msra.mxu0 0
    %833 = vmatprep.subr.bf16.mxu0 0
    %834 = vmatpush1.bf16.xpose.msra.mxu0 0
    %835 = vmatprep.subr.bf16.mxu0 0
    %836 = vmatpush1.bf16.xpose.msra.mxu0 0
    %837 = vmatprep.subr.bf16.mxu0 0
    %838 = vmatpush1.bf16.xpose.msra.mxu0 0
    %839 = vmatprep.subr.bf16.mxu0 0
    %840 = vmatpush1.bf16.xpose.msra.mxu0 0
    %841 = vmatprep.mubr.bf16.mxu0 0
    %842 = vmatmul.mubr.bf16.gmra.mrb[0].mxu0 %v804
    %v843 = vpop.f32.mrb[0].mxu0
    %v844 = vadd.f32 0.0, %v843
    %v845 = vpop.f32.mrb[0].mxu0
    %v846 = vpop.f32.mrb[0].mxu0
    %v847 = vpop.f32.mrb[0].mxu0
    %848 = vdwg.mxu0
    %v850 = vsel %vm526, %v517, 0
    %v853 = vsel %vm526, %v525, 0
    %855 = vmatprep.subr.bf16.mxu0 0
    %856 = vmatpush1.bf16.xpose.msra.mxu0 %v853
    %857 = vmatprep.subr.bf16.mxu0 0
    %858 = vmatpush1.bf16.xpose.msra.mxu0 0
    %859 = vmatprep.subr.bf16.mxu0 0
    %860 = vmatpush1.bf16.xpose.msra.mxu0 0
    %861 = vmatprep.subr.bf16.mxu0 0
    %862 = vmatpush1.bf16.xpose.msra.mxu0 0
    %863 = vmatprep.subr.bf16.mxu0 0
    %864 = vmatpush1.bf16.xpose.msra.mxu0 0
    %865 = vmatprep.subr.bf16.mxu0 0
    %866 = vmatpush1.bf16.xpose.msra.mxu0 0
    %867 = vmatprep.subr.bf16.mxu0 0
    %868 = vmatpush1.bf16.xpose.msra.mxu0 0
    %869 = vmatprep.subr.bf16.mxu0 0
    %870 = vmatpush1.bf16.xpose.msra.mxu0 0
    %871 = vmatprep.subr.bf16.mxu0 0
    %872 = vmatpush1.bf16.xpose.msra.mxu0 0
    %873 = vmatprep.subr.bf16.mxu0 0
    %874 = vmatpush1.bf16.xpose.msra.mxu0 0
    %875 = vmatprep.subr.bf16.mxu0 0
    %876 = vmatpush1.bf16.xpose.msra.mxu0 0
    %877 = vmatprep.subr.bf16.mxu0 0
    %878 = vmatpush1.bf16.xpose.msra.mxu0 0
    %879 = vmatprep.subr.bf16.mxu0 0
    %880 = vmatpush1.bf16.xpose.msra.mxu0 0
    %881 = vmatprep.subr.bf16.mxu0 0
    %882 = vmatpush1.bf16.xpose.msra.mxu0 0
    %883 = vmatprep.subr.bf16.mxu0 0
    %884 = vmatpush1.bf16.xpose.msra.mxu0 0
    %885 = vmatprep.subr.bf16.mxu0 0
    %886 = vmatpush1.bf16.xpose.msra.mxu0 0
    %887 = vmatprep.mubr.bf16.mxu0 0
    %888 = vmatmul.mubr.bf16.gmra.mrb[0].mxu0 %v850
    %v889 = vpop.f32.mrb[0].mxu0
    %v890 = vadd.f32 0.0, %v889
    %v891 = vpop.f32.mrb[0].mxu0
    %v892 = vpop.f32.mrb[0].mxu0
    %v893 = vpop.f32.mrb[0].mxu0
    %894 = vdwg.mxu0
    %v895 = vlaneseq
    %v896 = vshrl.u32 %v895, 7
    %v897 = vlaneseq
    %v898 = vand.u32 %v897, 127
    %vm899 = vcmp.le.s32.totalorder %v898, %v896
    %v900 = vsel %vm899, 1, 0
    %vm901 = vcmp.eq.s32.totalorder %v900, 1
    %v902 = vsel %vm901, %v568, -1e+30
    %v903 = vsel %vm901, %v614, -1e+30
    %v904 = vsel %vm901, %v660, -1e+30
    %v905 = vsel %vm901, %v706, -1e+30
    %v906 = vsel %vm901, %v752, -1e+30
    %v907 = vsel %vm901, %v798, -1e+30
    %v908 = vsel %vm901, %v844, -1e+30
    %v909 = vsel %vm901, %v890, -1e+30
    %vm910 = vcmask 64512
    %v911 = vsel %vm910, %v902, -inf
    %912 = vmax.xlane.f32.xlu0 %v911
    %v913 = vpop.xlane.xlu0 %912
    %v914 = vsel %vm910, %v903, -inf
    %915 = vmax.xlane.f32.xlu0 %v914
    %v916 = vpop.xlane.xlu0 %915
    %v917 = vsel %vm910, %v904, -inf
    %918 = vmax.xlane.f32.xlu0 %v917
    %v919 = vpop.xlane.xlu0 %918
    %v920 = vsel %vm910, %v905, -inf
    %921 = vmax.xlane.f32.xlu0 %v920
    %v922 = vpop.xlane.xlu0 %921
    %v923 = vsel %vm910, %v906, -inf
    %924 = vmax.xlane.f32.xlu0 %v923
    %v925 = vpop.xlane.xlu0 %924
    %v926 = vsel %vm910, %v907, -inf
    %927 = vmax.xlane.f32.xlu0 %v926
    %v928 = vpop.xlane.xlu0 %927
    %v929 = vsel %vm910, %v908, -inf
    %930 = vmax.xlane.f32.xlu0 %v929
    %v931 = vpop.xlane.xlu0 %930
    %v932 = vsel %vm910, %v909, -inf
    %933 = vmax.xlane.f32.xlu0 %v932
    %v934 = vpop.xlane.xlu0 %933
    %v935 = vsub.f32 %v902, %v913
    %v936 = vsub.f32 %v903, %v916
    %v937 = vsub.f32 %v904, %v919
    %v938 = vsub.f32 %v905, %v922
    %v939 = vsub.f32 %v906, %v925
    %v940 = vsub.f32 %v907, %v928
    %v941 = vsub.f32 %v908, %v931
    %v942 = vsub.f32 %v909, %v934
    %v943 = vmul.f32 %v935, 1.442695
    %v944 = vpow.pop %v943
    %v945 = vmul.f32 %v936, 1.442695
    %v946 = vpow.pop %v945
    %v947 = vmul.f32 %v937, 1.442695
    %v948 = vpow.pop %v947
    %v949 = vmul.f32 %v938, 1.442695
    %v950 = vpow.pop %v949
    %v951 = vmul.f32 %v939, 1.442695
    %v952 = vpow.pop %v951
    %v953 = vmul.f32 %v940, 1.442695
    %v954 = vpow.pop %v953
    %v955 = vmul.f32 %v941, 1.442695
    %v956 = vpow.pop %v955
    %v957 = vmul.f32 %v942, 1.442695
    %v958 = vpow.pop %v957
    %v959 = vsel %vm910, %v944, 0.0
    %960 = vadd.xlane.f32.xlu0 %v959
    %v961 = vpop.xlane.xlu0 %960
    %v962 = vsel %vm910, %v946, 0.0
    %963 = vadd.xlane.f32.xlu0 %v962
    %v964 = vpop.xlane.xlu0 %963
    %v965 = vsel %vm910, %v948, 0.0
    %966 = vadd.xlane.f32.xlu0 %v965
    %v967 = vpop.xlane.xlu0 %966
    %v968 = vsel %vm910, %v950, 0.0
    %969 = vadd.xlane.f32.xlu0 %v968
    %v970 = vpop.xlane.xlu0 %969
    %v971 = vsel %vm910, %v952, 0.0
    %972 = vadd.xlane.f32.xlu0 %v971
    %v973 = vpop.xlane.xlu0 %972
    %v974 = vsel %vm910, %v954, 0.0
    %975 = vadd.xlane.f32.xlu0 %v974
    %v976 = vpop.xlane.xlu0 %975
    %v977 = vsel %vm910, %v956, 0.0
    %978 = vadd.xlane.f32.xlu0 %v977
    %v979 = vpop.xlane.xlu0 %978
    %v980 = vsel %vm910, %v958, 0.0
    %981 = vadd.xlane.f32.xlu0 %v980
    %v982 = vpop.xlane.xlu0 %981
    %v983 = vrcp.pop %v961
    %v984 = vrcp.pop %v964
    %v985 = vrcp.pop %v967
    %v986 = vrcp.pop %v970
    %v987 = vrcp.pop %v973
    %v988 = vrcp.pop %v976
    %v989 = vrcp.pop %v979
    %v990 = vrcp.pop %v982
    %v991 = vmul.f32 %v944, %v983
    %v992 = vmul.f32 %v946, %v984
    %v993 = vmul.f32 %v948, %v985
    %v994 = vmul.f32 %v950, %v986
    %v995 = vmul.f32 %v952, %v987
    %v996 = vmul.f32 %v954, %v988
    %v997 = vmul.f32 %v956, %v989
    %v998 = vmul.f32 %v958, %v990
    %v999 = vpack.c.bf16 %v991, %v991
    %v1000 = vpack.c.bf16 %v992, %v992
    %v1001 = vpack.c.bf16 %v993, %v993
    %v1002 = vpack.c.bf16 %v994, %v994
    %v1003 = vpack.c.bf16 %v995, %v995
    %v1004 = vpack.c.bf16 %v996, %v996
    %v1005 = vpack.c.bf16 %v997, %v997
    %v1006 = vpack.c.bf16 %v998, %v998
    %v1007 = vpack.c.bf16 %v436, %v436
    %v1008 = vpack.c.bf16 %v493, %v493
    %v1009 = vpack.c.bf16 %v499, %v499
    %v1010 = vpack.c.bf16 %v505, %v505
    %v1011 = vpack.c.bf16 %v439, %v439
    %v1012 = vpack.c.bf16 %v495, %v495
    %v1013 = vpack.c.bf16 %v501, %v501
    %v1014 = vpack.c.bf16 %v507, %v507
    %v1016 = vsel %vm910, %v999, 0
    %vm1018 = vcmask 1043456
    %v1020 = vsel %vm1018, %v1007, 0
    %1022 = vmatprep.subr.bf16.mxu0 0
    %1023 = vmatpush1.bf16.msra.mxu0 %v1020
    %1024 = vmatprep.subr.bf16.mxu0 0
    %1025 = vmatpush1.bf16.msra.mxu0 0
    %1026 = vmatprep.subr.bf16.mxu0 0
    %1027 = vmatpush1.bf16.msra.mxu0 0
    %1028 = vmatprep.subr.bf16.mxu0 0
    %1029 = vmatpush1.bf16.msra.mxu0 0
    %1030 = vmatprep.subr.bf16.mxu0 0
    %1031 = vmatpush1.bf16.msra.mxu0 0
    %1032 = vmatprep.subr.bf16.mxu0 0
    %1033 = vmatpush1.bf16.msra.mxu0 0
    %1034 = vmatprep.subr.bf16.mxu0 0
    %1035 = vmatpush1.bf16.msra.mxu0 0
    %1036 = vmatprep.subr.bf16.mxu0 0
    %1037 = vmatpush1.bf16.msra.mxu0 0
    %1038 = vmatprep.subr.bf16.mxu0 0
    %1039 = vmatpush1.bf16.msra.mxu0 0
    %1040 = vmatprep.subr.bf16.mxu0 0
    %1041 = vmatpush1.bf16.msra.mxu0 0
    %1042 = vmatprep.subr.bf16.mxu0 0
    %1043 = vmatpush1.bf16.msra.mxu0 0
    %1044 = vmatprep.subr.bf16.mxu0 0
    %1045 = vmatpush1.bf16.msra.mxu0 0
    %1046 = vmatprep.subr.bf16.mxu0 0
    %1047 = vmatpush1.bf16.msra.mxu0 0
    %1048 = vmatprep.subr.bf16.mxu0 0
    %1049 = vmatpush1.bf16.msra.mxu0 0
    %1050 = vmatprep.subr.bf16.mxu0 0
    %1051 = vmatpush1.bf16.msra.mxu0 0
    %1052 = vmatprep.subr.bf16.mxu0 0
    %1053 = vmatpush1.bf16.msra.mxu0 0
    %1054 = vmatprep.mubr.bf16.mxu0 0
    %1055 = vmatmul.mubr.bf16.gmra.mrb[0].mxu0 %v1016
    %v1056 = vpop.f32.mrb[0].mxu0
    %v1057 = vadd.f32 0.0, %v1056
    %v1058 = vpop.f32.mrb[0].mxu0
    %v1059 = vpop.f32.mrb[0].mxu0
    %v1060 = vpop.f32.mrb[0].mxu0
    %1061 = vdwg.mxu0
    %v1063 = vsel %vm910, %v1000, 0
    %v1066 = vsel %vm1018, %v1008, 0
    %1068 = vmatprep.subr.bf16.mxu0 0
    %1069 = vmatpush1.bf16.msra.mxu0 %v1066
    %1070 = vmatprep.subr.bf16.mxu0 0
    %1071 = vmatpush1.bf16.msra.mxu0 0
    %1072 = vmatprep.subr.bf16.mxu0 0
    %1073 = vmatpush1.bf16.msra.mxu0 0
    %1074 = vmatprep.subr.bf16.mxu0 0
    %1075 = vmatpush1.bf16.msra.mxu0 0
    %1076 = vmatprep.subr.bf16.mxu0 0
    %1077 = vmatpush1.bf16.msra.mxu0 0
    %1078 = vmatprep.subr.bf16.mxu0 0
    %1079 = vmatpush1.bf16.msra.mxu0 0
    %1080 = vmatprep.subr.bf16.mxu0 0
    %1081 = vmatpush1.bf16.msra.mxu0 0
    %1082 = vmatprep.subr.bf16.mxu0 0
    %1083 = vmatpush1.bf16.msra.mxu0 0
    %1084 = vmatprep.subr.bf16.mxu0 0
    %1085 = vmatpush1.bf16.msra.mxu0 0
    %1086 = vmatprep.subr.bf16.mxu0 0
    %1087 = vmatpush1.bf16.msra.mxu0 0
    %1088 = vmatprep.subr.bf16.mxu0 0
    %1089 = vmatpush1.bf16.msra.mxu0 0
    %1090 = vmatprep.subr.bf16.mxu0 0
    %1091 = vmatpush1.bf16.msra.mxu0 0
    %1092 = vmatprep.subr.bf16.mxu0 0
    %1093 = vmatpush1.bf16.msra.mxu0 0
    %1094 = vmatprep.subr.bf16.mxu0 0
    %1095 = vmatpush1.bf16.msra.mxu0 0
    %1096 = vmatprep.subr.bf16.mxu0 0
    %1097 = vmatpush1.bf16.msra.mxu0 0
    %1098 = vmatprep.subr.bf16.mxu0 0
    %1099 = vmatpush1.bf16.msra.mxu0 0
    %1100 = vmatprep.mubr.bf16.mxu0 0
    %1101 = vmatmul.mubr.bf16.gmra.mrb[0].mxu0 %v1063
    %v1102 = vpop.f32.mrb[0].mxu0
    %v1103 = vadd.f32 0.0, %v1102
    %v1104 = vpop.f32.mrb[0].mxu0
    %v1105 = vpop.f32.mrb[0].mxu0
    %v1106 = vpop.f32.mrb[0].mxu0
    %1107 = vdwg.mxu0
    %v1109 = vsel %vm910, %v1001, 0
    %v1112 = vsel %vm1018, %v1009, 0
    %1114 = vmatprep.subr.bf16.mxu0 0
    %1115 = vmatpush1.bf16.msra.mxu0 %v1112
    %1116 = vmatprep.subr.bf16.mxu0 0
    %1117 = vmatpush1.bf16.msra.mxu0 0
    %1118 = vmatprep.subr.bf16.mxu0 0
    %1119 = vmatpush1.bf16.msra.mxu0 0
    %1120 = vmatprep.subr.bf16.mxu0 0
    %1121 = vmatpush1.bf16.msra.mxu0 0
    %1122 = vmatprep.subr.bf16.mxu0 0
    %1123 = vmatpush1.bf16.msra.mxu0 0
    %1124 = vmatprep.subr.bf16.mxu0 0
    %1125 = vmatpush1.bf16.msra.mxu0 0
    %1126 = vmatprep.subr.bf16.mxu0 0
    %1127 = vmatpush1.bf16.msra.mxu0 0
    %1128 = vmatprep.subr.bf16.mxu0 0
    %1129 = vmatpush1.bf16.msra.mxu0 0
    %1130 = vmatprep.subr.bf16.mxu0 0
    %1131 = vmatpush1.bf16.msra.mxu0 0
    %1132 = vmatprep.subr.bf16.mxu0 0
    %1133 = vmatpush1.bf16.msra.mxu0 0
    %1134 = vmatprep.subr.bf16.mxu0 0
    %1135 = vmatpush1.bf16.msra.mxu0 0
    %1136 = vmatprep.subr.bf16.mxu0 0
    %1137 = vmatpush1.bf16.msra.mxu0 0
    %1138 = vmatprep.subr.bf16.mxu0 0
    %1139 = vmatpush1.bf16.msra.mxu0 0
    %1140 = vmatprep.subr.bf16.mxu0 0
    %1141 = vmatpush1.bf16.msra.mxu0 0
    %1142 = vmatprep.subr.bf16.mxu0 0
    %1143 = vmatpush1.bf16.msra.mxu0 0
    %1144 = vmatprep.subr.bf16.mxu0 0
    %1145 = vmatpush1.bf16.msra.mxu0 0
    %1146 = vmatprep.mubr.bf16.mxu0 0
    %1147 = vmatmul.mubr.bf16.gmra.mrb[0].mxu0 %v1109
    %v1148 = vpop.f32.mrb[0].mxu0
    %v1149 = vadd.f32 0.0, %v1148
    %v1150 = vpop.f32.mrb[0].mxu0
    %v1151 = vpop.f32.mrb[0].mxu0
    %v1152 = vpop.f32.mrb[0].mxu0
    %1153 = vdwg.mxu0
    %v1155 = vsel %vm910, %v1002, 0
    %v1158 = vsel %vm1018, %v1010, 0
    %1160 = vmatprep.subr.bf16.mxu0 0
    %1161 = vmatpush1.bf16.msra.mxu0 %v1158
    %1162 = vmatprep.subr.bf16.mxu0 0
    %1163 = vmatpush1.bf16.msra.mxu0 0
    %1164 = vmatprep.subr.bf16.mxu0 0
    %1165 = vmatpush1.bf16.msra.mxu0 0
    %1166 = vmatprep.subr.bf16.mxu0 0
    %1167 = vmatpush1.bf16.msra.mxu0 0
    %1168 = vmatprep.subr.bf16.mxu0 0
    %1169 = vmatpush1.bf16.msra.mxu0 0
    %1170 = vmatprep.subr.bf16.mxu0 0
    %1171 = vmatpush1.bf16.msra.mxu0 0
    %1172 = vmatprep.subr.bf16.mxu0 0
    %1173 = vmatpush1.bf16.msra.mxu0 0
    %1174 = vmatprep.subr.bf16.mxu0 0
    %1175 = vmatpush1.bf16.msra.mxu0 0
    %1176 = vmatprep.subr.bf16.mxu0 0
    %1177 = vmatpush1.bf16.msra.mxu0 0
    %1178 = vmatprep.subr.bf16.mxu0 0
    %1179 = vmatpush1.bf16.msra.mxu0 0
    %1180 = vmatprep.subr.bf16.mxu0 0
    %1181 = vmatpush1.bf16.msra.mxu0 0
    %1182 = vmatprep.subr.bf16.mxu0 0
    %1183 = vmatpush1.bf16.msra.mxu0 0
    %1184 = vmatprep.subr.bf16.mxu0 0
    %1185 = vmatpush1.bf16.msra.mxu0 0
    %1186 = vmatprep.subr.bf16.mxu0 0
    %1187 = vmatpush1.bf16.msra.mxu0 0
    %1188 = vmatprep.subr.bf16.mxu0 0
    %1189 = vmatpush1.bf16.msra.mxu0 0
    %1190 = vmatprep.subr.bf16.mxu0 0
    %1191 = vmatpush1.bf16.msra.mxu0 0
    %1192 = vmatprep.mubr.bf16.mxu0 0
    %1193 = vmatmul.mubr.bf16.gmra.mrb[0].mxu0 %v1155
    %v1194 = vpop.f32.mrb[0].mxu0
    %v1195 = vadd.f32 0.0, %v1194
    %v1196 = vpop.f32.mrb[0].mxu0
    %v1197 = vpop.f32.mrb[0].mxu0
    %v1198 = vpop.f32.mrb[0].mxu0
    %1199 = vdwg.mxu0
    %v1201 = vsel %vm910, %v1003, 0
    %v1204 = vsel %vm1018, %v1011, 0
    %1206 = vmatprep.subr.bf16.mxu0 0
    %1207 = vmatpush1.bf16.msra.mxu0 %v1204
    %1208 = vmatprep.subr.bf16.mxu0 0
    %1209 = vmatpush1.bf16.msra.mxu0 0
    %1210 = vmatprep.subr.bf16.mxu0 0
    %1211 = vmatpush1.bf16.msra.mxu0 0
    %1212 = vmatprep.subr.bf16.mxu0 0
    %1213 = vmatpush1.bf16.msra.mxu0 0
    %1214 = vmatprep.subr.bf16.mxu0 0
    %1215 = vmatpush1.bf16.msra.mxu0 0
    %1216 = vmatprep.subr.bf16.mxu0 0
    %1217 = vmatpush1.bf16.msra.mxu0 0
    %1218 = vmatprep.subr.bf16.mxu0 0
    %1219 = vmatpush1.bf16.msra.mxu0 0
    %1220 = vmatprep.subr.bf16.mxu0 0
    %1221 = vmatpush1.bf16.msra.mxu0 0
    %1222 = vmatprep.subr.bf16.mxu0 0
    %1223 = vmatpush1.bf16.msra.mxu0 0
    %1224 = vmatprep.subr.bf16.mxu0 0
    %1225 = vmatpush1.bf16.msra.mxu0 0
    %1226 = vmatprep.subr.bf16.mxu0 0
    %1227 = vmatpush1.bf16.msra.mxu0 0
    %1228 = vmatprep.subr.bf16.mxu0 0
    %1229 = vmatpush1.bf16.msra.mxu0 0
    %1230 = vmatprep.subr.bf16.mxu0 0
    %1231 = vmatpush1.bf16.msra.mxu0 0
    %1232 = vmatprep.subr.bf16.mxu0 0
    %1233 = vmatpush1.bf16.msra.mxu0 0
    %1234 = vmatprep.subr.bf16.mxu0 0
    %1235 = vmatpush1.bf16.msra.mxu0 0
    %1236 = vmatprep.subr.bf16.mxu0 0
    %1237 = vmatpush1.bf16.msra.mxu0 0
    %1238 = vmatprep.mubr.bf16.mxu0 0
    %1239 = vmatmul.mubr.bf16.gmra.mrb[0].mxu0 %v1201
    %v1240 = vpop.f32.mrb[0].mxu0
    %v1241 = vadd.f32 0.0, %v1240
    %v1242 = vpop.f32.mrb[0].mxu0
    %v1243 = vpop.f32.mrb[0].mxu0
    %v1244 = vpop.f32.mrb[0].mxu0
    %1245 = vdwg.mxu0
    %v1247 = vsel %vm910, %v1004, 0
    %v1250 = vsel %vm1018, %v1012, 0
    %1252 = vmatprep.subr.bf16.mxu0 0
    %1253 = vmatpush1.bf16.msra.mxu0 %v1250
    %1254 = vmatprep.subr.bf16.mxu0 0
    %1255 = vmatpush1.bf16.msra.mxu0 0
    %1256 = vmatprep.subr.bf16.mxu0 0
    %1257 = vmatpush1.bf16.msra.mxu0 0
    %1258 = vmatprep.subr.bf16.mxu0 0
    %1259 = vmatpush1.bf16.msra.mxu0 0
    %1260 = vmatprep.subr.bf16.mxu0 0
    %1261 = vmatpush1.bf16.msra.mxu0 0
    %1262 = vmatprep.subr.bf16.mxu0 0
    %1263 = vmatpush1.bf16.msra.mxu0 0
    %1264 = vmatprep.subr.bf16.mxu0 0
    %1265 = vmatpush1.bf16.msra.mxu0 0
    %1266 = vmatprep.subr.bf16.mxu0 0
    %1267 = vmatpush1.bf16.msra.mxu0 0
    %1268 = vmatprep.subr.bf16.mxu0 0
    %1269 = vmatpush1.bf16.msra.mxu0 0
    %1270 = vmatprep.subr.bf16.mxu0 0
    %1271 = vmatpush1.bf16.msra.mxu0 0
    %1272 = vmatprep.subr.bf16.mxu0 0
    %1273 = vmatpush1.bf16.msra.mxu0 0
    %1274 = vmatprep.subr.bf16.mxu0 0
    %1275 = vmatpush1.bf16.msra.mxu0 0
    %1276 = vmatprep.subr.bf16.mxu0 0
    %1277 = vmatpush1.bf16.msra.mxu0 0
    %1278 = vmatprep.subr.bf16.mxu0 0
    %1279 = vmatpush1.bf16.msra.mxu0 0
    %1280 = vmatprep.subr.bf16.mxu0 0
    %1281 = vmatpush1.bf16.msra.mxu0 0
    %1282 = vmatprep.subr.bf16.mxu0 0
    %1283 = vmatpush1.bf16.msra.mxu0 0
    %1284 = vmatprep.mubr.bf16.mxu0 0
    %1285 = vmatmul.mubr.bf16.gmra.mrb[0].mxu0 %v1247
    %v1286 = vpop.f32.mrb[0].mxu0
    %v1287 = vadd.f32 0.0, %v1286
    %v1288 = vpop.f32.mrb[0].mxu0
    %v1289 = vpop.f32.mrb[0].mxu0
    %v1290 = vpop.f32.mrb[0].mxu0
    %1291 = vdwg.mxu0
    %v1293 = vsel %vm910, %v1005, 0
    %v1296 = vsel %vm1018, %v1013, 0
    %1298 = vmatprep.subr.bf16.mxu0 0
    %1299 = vmatpush1.bf16.msra.mxu0 %v1296
    %1300 = vmatprep.subr.bf16.mxu0 0
    %1301 = vmatpush1.bf16.msra.mxu0 0
    %1302 = vmatprep.subr.bf16.mxu0 0
    %1303 = vmatpush1.bf16.msra.mxu0 0
    %1304 = vmatprep.subr.bf16.mxu0 0
    %1305 = vmatpush1.bf16.msra.mxu0 0
    %1306 = vmatprep.subr.bf16.mxu0 0
    %1307 = vmatpush1.bf16.msra.mxu0 0
    %1308 = vmatprep.subr.bf16.mxu0 0
    %1309 = vmatpush1.bf16.msra.mxu0 0
    %1310 = vmatprep.subr.bf16.mxu0 0
    %1311 = vmatpush1.bf16.msra.mxu0 0
    %1312 = vmatprep.subr.bf16.mxu0 0
    %1313 = vmatpush1.bf16.msra.mxu0 0
    %1314 = vmatprep.subr.bf16.mxu0 0
    %1315 = vmatpush1.bf16.msra.mxu0 0
    %1316 = vmatprep.subr.bf16.mxu0 0
    %1317 = vmatpush1.bf16.msra.mxu0 0
    %1318 = vmatprep.subr.bf16.mxu0 0
    %1319 = vmatpush1.bf16.msra.mxu0 0
    %1320 = vmatprep.subr.bf16.mxu0 0
    %1321 = vmatpush1.bf16.msra.mxu0 0
    %1322 = vmatprep.subr.bf16.mxu0 0
    %1323 = vmatpush1.bf16.msra.mxu0 0
    %1324 = vmatprep.subr.bf16.mxu0 0
    %1325 = vmatpush1.bf16.msra.mxu0 0
    %1326 = vmatprep.subr.bf16.mxu0 0
    %1327 = vmatpush1.bf16.msra.mxu0 0
    %1328 = vmatprep.subr.bf16.mxu0 0
    %1329 = vmatpush1.bf16.msra.mxu0 0
    %1330 = vmatprep.mubr.bf16.mxu0 0
    %1331 = vmatmul.mubr.bf16.gmra.mrb[0].mxu0 %v1293
    %v1332 = vpop.f32.mrb[0].mxu0
    %v1333 = vadd.f32 0.0, %v1332
    %v1334 = vpop.f32.mrb[0].mxu0
    %v1335 = vpop.f32.mrb[0].mxu0
    %v1336 = vpop.f32.mrb[0].mxu0
    %1337 = vdwg.mxu0
    %v1339 = vsel %vm910, %v1006, 0
    %v1342 = vsel %vm1018, %v1014, 0
    %1344 = vmatprep.subr.bf16.mxu0 0
    %1345 = vmatpush1.bf16.msra.mxu0 %v1342
    %1346 = vmatprep.subr.bf16.mxu0 0
    %1347 = vmatpush1.bf16.msra.mxu0 0
    %1348 = vmatprep.subr.bf16.mxu0 0
    %1349 = vmatpush1.bf16.msra.mxu0 0
    %1350 = vmatprep.subr.bf16.mxu0 0
    %1351 = vmatpush1.bf16.msra.mxu0 0
    %1352 = vmatprep.subr.bf16.mxu0 0
    %1353 = vmatpush1.bf16.msra.mxu0 0
    %1354 = vmatprep.subr.bf16.mxu0 0
    %1355 = vmatpush1.bf16.msra.mxu0 0
    %1356 = vmatprep.subr.bf16.mxu0 0
    %1357 = vmatpush1.bf16.msra.mxu0 0
    %1358 = vmatprep.subr.bf16.mxu0 0
    %1359 = vmatpush1.bf16.msra.mxu0 0
    %1360 = vmatprep.subr.bf16.mxu0 0
    %1361 = vmatpush1.bf16.msra.mxu0 0
    %1362 = vmatprep.subr.bf16.mxu0 0
    %1363 = vmatpush1.bf16.msra.mxu0 0
    %1364 = vmatprep.subr.bf16.mxu0 0
    %1365 = vmatpush1.bf16.msra.mxu0 0
    %1366 = vmatprep.subr.bf16.mxu0 0
    %1367 = vmatpush1.bf16.msra.mxu0 0
    %1368 = vmatprep.subr.bf16.mxu0 0
    %1369 = vmatpush1.bf16.msra.mxu0 0
    %1370 = vmatprep.subr.bf16.mxu0 0
    %1371 = vmatpush1.bf16.msra.mxu0 0
    %1372 = vmatprep.subr.bf16.mxu0 0
    %1373 = vmatpush1.bf16.msra.mxu0 0
    %1374 = vmatprep.subr.bf16.mxu0 0
    %1375 = vmatpush1.bf16.msra.mxu0 0
    %1376 = vmatprep.mubr.bf16.mxu0 0
    %1377 = vmatmul.mubr.bf16.gmra.mrb[0].mxu0 %v1339
    %v1378 = vpop.f32.mrb[0].mxu0
    %v1379 = vadd.f32 0.0, %v1378
    %v1380 = vpop.f32.mrb[0].mxu0
    %v1381 = vpop.f32.mrb[0].mxu0
    %v1382 = vpop.f32.mrb[0].mxu0
    %1383 = vdwg.mxu0
    %1386 = vrot.lane.b32.xlu0 %v1103, 32
    %v1387 = vpop.permute.xlu0 %1386
    %1388 = vrot.lane.b32.xlu0 %v1287, 32
    %v1389 = vpop.permute.xlu0 %1388
    %1394 = vrot.lane.b32.xlu0 %v1149, 64
    %v1395 = vpop.permute.xlu0 %1394
    %1396 = vrot.lane.b32.xlu0 %v1333, 64
    %v1397 = vpop.permute.xlu0 %1396
    %1402 = vrot.lane.b32.xlu0 %v1195, 96
    %v1403 = vpop.permute.xlu0 %1402
    %1404 = vrot.lane.b32.xlu0 %v1379, 96
    %v1405 = vpop.permute.xlu0 %1404
    %v1408 = vsel %vm526, %v1057, %v1387
    %v1409 = vsel %vm526, %v1241, %v1389
    %vm1410 = vcmask 523264
    %v1411 = vsel %vm1410, %v1408, %v1395
    %v1412 = vsel %vm1410, %v1409, %v1397
    %vm1413 = vcmask 785408
    %v1414 = vsel %vm1413, %v1411, %v1403
    %v1415 = vsel %vm1413, %v1412, %v1405
    %v1416 = vpack.c.bf16 %v1415, %v1414
    %v1417 = vld [vmem:[#allocation10] sm:$0xf]
    %v1418 = vld [vmem:[#allocation10 + $0x4] sm:$0xf]
    %v1419 = vld [vmem:[#allocation10 + $0x8] sm:$0xf]
    %v1420 = vld [vmem:[#allocation10 + $0xc] sm:$0xf]
    %v1421 = vld [vmem:[#allocation10 + $0x10] sm:$0xf]
    %v1422 = vld [vmem:[#allocation10 + $0x14] sm:$0xf]
    %v1423 = vld [vmem:[#allocation10 + $0x18] sm:$0xf]
    %v1424 = vld [vmem:[#allocation10 + $0x1c] sm:$0xf]
    %v1425 = vld [vmem:[#allocation10 + $0x20] sm:$0xf]
    %v1426 = vld [vmem:[#allocation10 + $0x24] sm:$0xf]
    %v1427 = vld [vmem:[#allocation10 + $0x28] sm:$0xf]
    %v1428 = vld [vmem:[#allocation10 + $0x2c] sm:$0xf]
    %v1429 = vld [vmem:[#allocation10 + $0x30] sm:$0xf]
    %v1430 = vld [vmem:[#allocation10 + $0x34] sm:$0xf]
    %v1431 = vld [vmem:[#allocation10 + $0x38] sm:$0xf]
    %v1432 = vld [vmem:[#allocation10 + $0x3c] sm:$0xf]
    %v1433 = vld [vmem:[%s6] sm:$0x1]
    %v1435 = vlaneseq
    %v1436 = vshrl.u32 %v1435, 7
    %v1437 = vsub.s32 0, %v1436
    %v1438 = vrot.slane %v1433, %v1437
    %v1456 = vunpack.c.l.b16 %v1417
    %v1457 = vunpack.c.l.b16 %v1418
    %v1458 = vunpack.c.l.b16 %v1419
    %v1459 = vunpack.c.l.b16 %v1420
    %v1460 = vunpack.c.l.b16 %v1421
    %v1461 = vunpack.c.l.b16 %v1422
    %v1462 = vunpack.c.l.b16 %v1423
    %v1463 = vunpack.c.l.b16 %v1424
    %v1464 = vunpack.c.l.b16 %v1425
    %v1465 = vunpack.c.l.b16 %v1426
    %v1466 = vunpack.c.l.b16 %v1427
    %v1467 = vunpack.c.l.b16 %v1428
    %v1468 = vunpack.c.l.b16 %v1429
    %v1469 = vunpack.c.l.b16 %v1430
    %v1470 = vunpack.c.l.b16 %v1431
    %v1471 = vunpack.c.l.b16 %v1432
    %v1472 = vpack.c.b16 %v1457, %v1456
    %v1473 = vpack.c.b16 %v1459, %v1458
    %v1474 = vpack.c.b16 %v1461, %v1460
    %v1475 = vpack.c.b16 %v1463, %v1462
    %v1476 = vpack.c.b16 %v1465, %v1464
    %v1477 = vpack.c.b16 %v1467, %v1466
    %v1478 = vpack.c.b16 %v1469, %v1468
    %v1479 = vpack.c.b16 %v1471, %v1470
    %1488 = vmatprep.subr.bf16.mxu0 0
    %1489 = vmatpush1.bf16.msra.mxu0 %v1472
    %1490 = vmatprep.subr.bf16.mxu0 0
    %1491 = vmatpush1.bf16.msra.mxu0 %v1473
    %1492 = vmatprep.subr.bf16.mxu0 0
    %1493 = vmatpush1.bf16.msra.mxu0 %v1474
    %1494 = vmatprep.subr.bf16.mxu0 0
    %1495 = vmatpush1.bf16.msra.mxu0 %v1475
    %1496 = vmatprep.subr.bf16.mxu0 0
    %1497 = vmatpush1.bf16.msra.mxu0 %v1476
    %1498 = vmatprep.subr.bf16.mxu0 0
    %1499 = vmatpush1.bf16.msra.mxu0 %v1477
    %1500 = vmatprep.subr.bf16.mxu0 0
    %1501 = vmatpush1.bf16.msra.mxu0 %v1478
    %1502 = vmatprep.subr.bf16.mxu0 0
    %1503 = vmatpush1.bf16.msra.mxu0 %v1479
    %1504 = vmatprep.subr.bf16.mxu0 0
    %1505 = vmatpush1.bf16.msra.mxu0 0
    %1506 = vmatprep.subr.bf16.mxu0 0
    %1507 = vmatpush1.bf16.msra.mxu0 0
    %1508 = vmatprep.subr.bf16.mxu0 0
    %1509 = vmatpush1.bf16.msra.mxu0 0
    %1510 = vmatprep.subr.bf16.mxu0 0
    %1511 = vmatpush1.bf16.msra.mxu0 0
    %1512 = vmatprep.subr.bf16.mxu0 0
    %1513 = vmatpush1.bf16.msra.mxu0 0
    %1514 = vmatprep.subr.bf16.mxu0 0
    %1515 = vmatpush1.bf16.msra.mxu0 0
    %1516 = vmatprep.subr.bf16.mxu0 0
    %1517 = vmatpush1.bf16.msra.mxu0 0
    %1518 = vmatprep.subr.bf16.mxu0 0
    %1519 = vmatpush1.bf16.msra.mxu0 0
    %1520 = vmatprep.mubr.bf16.mxu0 0
    %1521 = vmatmul.mubr.bf16.gmra.mrb[0].mxu0 %v1416
    %v1522 = vpop.f32.mrb[0].mxu0
    %v1523 = vadd.f32 %v1438, %v1522
    %v1524 = vpop.f32.mrb[0].mxu0
    %v1525 = vpop.f32.mrb[0].mxu0
    %v1526 = vadd.f32 %v1438, %v1525
    %v1527 = vpop.f32.mrb[0].mxu0
    %1528 = vdwg.mxu0
    %v1529 = vadd.f32 %v137, %v1523
    %v1530 = vadd.f32 %v138, %v1526
    %1531 = vadd.xlane.f32.xlu0 %v1529
    %v1532 = vpop.xlane.xlu0 %1531
    %1533 = vadd.xlane.f32.xlu0 %v1530
    %v1534 = vpop.xlane.xlu0 %1533
    %v1535 = vmul.f32 %v1532, %v143
    %v1536 = vmul.f32 %v1534, %v143
    %v1537 = vsub.f32 %v1529, %v1535
    %v1538 = vsub.f32 %v1530, %v1536
    %v1539 = vmul.f32 %v1537, %v1537
    %v1540 = vmul.f32 %v1538, %v1538
    %1541 = vadd.xlane.f32.xlu0 %v1539
    %v1542 = vpop.xlane.xlu0 %1541
    %1543 = vadd.xlane.f32.xlu0 %v1540
    %v1544 = vpop.xlane.xlu0 %1543
    %v1545 = vmul.f32 %v1542, %v143
    %v1546 = vmul.f32 %v1544, %v143
    %v1547 = vadd.f32 %v1545, 1e-05
    %v1548 = vadd.f32 %v1546, 1e-05
    %v1549 = vrsqrt.pop %v1547
    %v1550 = vrsqrt.pop %v1548
    %v1551 = vmul.f32 %v1537, %v1549
    %v1552 = vmul.f32 %v1538, %v1550
    %v1553 = vld [vmem:[%s7] sm:$0x1]
    %v1555 = vlaneseq
    %v1556 = vshrl.u32 %v1555, 7
    %v1557 = vsub.s32 0, %v1556
    %v1558 = vrot.slane %v1553, %v1557
    %v1560 = vmul.f32 %v1551, %v1558
    %v1561 = vmul.f32 %v1552, %v1558
    %v1562 = vld [vmem:[%s8] sm:$0x1]
    %v1564 = vlaneseq
    %v1565 = vshrl.u32 %v1564, 7
    %v1566 = vsub.s32 0, %v1565
    %v1567 = vrot.slane %v1562, %v1566
    %v1569 = vadd.f32 %v1560, %v1567
    %v1570 = vadd.f32 %v1561, %v1567
    %v1571 = vpack.c.bf16 %v1570, %v1569
    %v1572 = vld [vmem:[#allocation11] sm:$0xff]
    %v1573 = vld [vmem:[#allocation11 + $0x8] sm:$0xff]
    %v1574 = vld [vmem:[#allocation11 + $0x10] sm:$0xff]
    %v1575 = vld [vmem:[#allocation11 + $0x18] sm:$0xff]
    %v1576 = vld [vmem:[#allocation11 + $0x20] sm:$0xff]
    %v1577 = vld [vmem:[#allocation11 + $0x28] sm:$0xff]
    %v1578 = vld [vmem:[#allocation11 + $0x30] sm:$0xff]
    %v1579 = vld [vmem:[#allocation11 + $0x38] sm:$0xff]
    %v1580 = vld [vmem:[#allocation11 + $0x40] sm:$0xff]
    %v1581 = vld [vmem:[#allocation11 + $0x48] sm:$0xff]
    %v1582 = vld [vmem:[#allocation11 + $0x50] sm:$0xff]
    %v1583 = vld [vmem:[#allocation11 + $0x58] sm:$0xff]
    %v1584 = vld [vmem:[#allocation11 + $0x60] sm:$0xff]
    %v1585 = vld [vmem:[#allocation11 + $0x68] sm:$0xff]
    %v1586 = vld [vmem:[#allocation11 + $0x70] sm:$0xff]
    %v1587 = vld [vmem:[#allocation11 + $0x78] sm:$0xff]
    %v1588 = vld [vmem:[#allocation11 + $0x80] sm:$0xff]
    %v1589 = vld [vmem:[#allocation11 + $0x88] sm:$0xff]
    %v1590 = vld [vmem:[#allocation11 + $0x90] sm:$0xff]
    %v1591 = vld [vmem:[#allocation11 + $0x98] sm:$0xff]
    %v1592 = vld [vmem:[#allocation11 + $0xa0] sm:$0xff]
    %v1593 = vld [vmem:[#allocation11 + $0xa8] sm:$0xff]
    %v1594 = vld [vmem:[#allocation11 + $0xb0] sm:$0xff]
    %v1595 = vld [vmem:[#allocation11 + $0xb8] sm:$0xff]
    %v1596 = vld [vmem:[#allocation11 + $0xc0] sm:$0xff]
    %v1597 = vld [vmem:[#allocation11 + $0xc8] sm:$0xff]
    %v1598 = vld [vmem:[#allocation11 + $0xd0] sm:$0xff]
    %v1599 = vld [vmem:[#allocation11 + $0xd8] sm:$0xff]
    %v1600 = vld [vmem:[#allocation11 + $0xe0] sm:$0xff]
    %v1601 = vld [vmem:[#allocation11 + $0xe8] sm:$0xff]
    %v1602 = vld [vmem:[#allocation11 + $0xf0] sm:$0xff]
    %v1603 = vld [vmem:[#allocation11 + $0xf8] sm:$0xff]
    %v1604 = vld [vmem:[%s10] sm:$0xf]
    %v1606 = vlaneseq
    %v1607 = vshrl.u32 %v1606, 7
    %v1608 = vsub.s32 0, %v1607
    %v1609 = vrot.slane %v1604, %v1608
    %v1610 = vlaneseq
    %v1611 = vshrl.u32 %v1610, 7
    %v1612 = vsub.s32 1, %v1611
    %v1613 = vrot.slane %v1604, %v1612
    %v1614 = vlaneseq
    %v1615 = vshrl.u32 %v1614, 7
    %v1616 = vsub.s32 2, %v1615
    %v1617 = vrot.slane %v1604, %v1616
    %v1618 = vlaneseq
    %v1619 = vshrl.u32 %v1618, 7
    %v1620 = vsub.s32 3, %v1619
    %v1621 = vrot.slane %v1604, %v1620
    %v1658 = vunpack.c.l.b16 %v1572
    %v1659 = vunpack.c.h.b16 %v1572
    %v1660 = vunpack.c.l.b16 %v1573
    %v1661 = vunpack.c.h.b16 %v1573
    %v1662 = vunpack.c.l.b16 %v1574
    %v1663 = vunpack.c.h.b16 %v1574
    %v1664 = vunpack.c.l.b16 %v1575
    %v1665 = vunpack.c.h.b16 %v1575
    %v1666 = vunpack.c.l.b16 %v1576
    %v1667 = vunpack.c.h.b16 %v1576
    %v1668 = vunpack.c.l.b16 %v1577
    %v1669 = vunpack.c.h.b16 %v1577
    %v1670 = vunpack.c.l.b16 %v1578
    %v1671 = vunpack.c.h.b16 %v1578
    %v1672 = vunpack.c.l.b16 %v1579
    %v1673 = vunpack.c.h.b16 %v1579
    %v1674 = vunpack.c.l.b16 %v1580
    %v1675 = vunpack.c.h.b16 %v1580
    %v1676 = vunpack.c.l.b16 %v1581
    %v1677 = vunpack.c.h.b16 %v1581
    %v1678 = vunpack.c.l.b16 %v1582
    %v1679 = vunpack.c.h.b16 %v1582
    %v1680 = vunpack.c.l.b16 %v1583
    %v1681 = vunpack.c.h.b16 %v1583
    %v1682 = vunpack.c.l.b16 %v1584
    %v1683 = vunpack.c.h.b16 %v1584
    %v1684 = vunpack.c.l.b16 %v1585
    %v1685 = vunpack.c.h.b16 %v1585
    %v1686 = vunpack.c.l.b16 %v1586
    %v1687 = vunpack.c.h.b16 %v1586
    %v1688 = vunpack.c.l.b16 %v1587
    %v1689 = vunpack.c.h.b16 %v1587
    %v1690 = vunpack.c.l.b16 %v1588
    %v1691 = vunpack.c.h.b16 %v1588
    %v1692 = vunpack.c.l.b16 %v1589
    %v1693 = vunpack.c.h.b16 %v1589
    %v1694 = vunpack.c.l.b16 %v1590
    %v1695 = vunpack.c.h.b16 %v1590
    %v1696 = vunpack.c.l.b16 %v1591
    %v1697 = vunpack.c.h.b16 %v1591
    %v1698 = vunpack.c.l.b16 %v1592
    %v1699 = vunpack.c.h.b16 %v1592
    %v1700 = vunpack.c.l.b16 %v1593
    %v1701 = vunpack.c.h.b16 %v1593
    %v1702 = vunpack.c.l.b16 %v1594
    %v1703 = vunpack.c.h.b16 %v1594
    %v1704 = vunpack.c.l.b16 %v1595
    %v1705 = vunpack.c.h.b16 %v1595
    %v1706 = vunpack.c.l.b16 %v1596
    %v1707 = vunpack.c.h.b16 %v1596
    %v1708 = vunpack.c.l.b16 %v1597
    %v1709 = vunpack.c.h.b16 %v1597
    %v1710 = vunpack.c.l.b16 %v1598
    %v1711 = vunpack.c.h.b16 %v1598
    %v1712 = vunpack.c.l.b16 %v1599
    %v1713 = vunpack.c.h.b16 %v1599
    %v1714 = vunpack.c.l.b16 %v1600
    %v1715 = vunpack.c.h.b16 %v1600
    %v1716 = vunpack.c.l.b16 %v1601
    %v1717 = vunpack.c.h.b16 %v1601
    %v1718 = vunpack.c.l.b16 %v1602
    %v1719 = vunpack.c.h.b16 %v1602
    %v1720 = vunpack.c.l.b16 %v1603
    %v1721 = vunpack.c.h.b16 %v1603
    %v1722 = vpack.c.b16 %v1662, %v1658
    %v1723 = vpack.c.b16 %v1663, %v1659
    %v1724 = vpack.c.b16 %v1664, %v1660
    %v1725 = vpack.c.b16 %v1665, %v1661
    %v1726 = vpack.c.b16 %v1670, %v1666
    %v1727 = vpack.c.b16 %v1671, %v1667
    %v1728 = vpack.c.b16 %v1672, %v1668
    %v1729 = vpack.c.b16 %v1673, %v1669
    %v1730 = vpack.c.b16 %v1678, %v1674
    %v1731 = vpack.c.b16 %v1679, %v1675
    %v1732 = vpack.c.b16 %v1680, %v1676
    %v1733 = vpack.c.b16 %v1681, %v1677
    %v1734 = vpack.c.b16 %v1686, %v1682
    %v1735 = vpack.c.b16 %v1687, %v1683
    %v1736 = vpack.c.b16 %v1688, %v1684
    %v1737 = vpack.c.b16 %v1689, %v1685
    %v1738 = vpack.c.b16 %v1694, %v1690
    %v1739 = vpack.c.b16 %v1695, %v1691
    %v1740 = vpack.c.b16 %v1696, %v1692
    %v1741 = vpack.c.b16 %v1697, %v1693
    %v1742 = vpack.c.b16 %v1702, %v1698
    %v1743 = vpack.c.b16 %v1703, %v1699
    %v1744 = vpack.c.b16 %v1704, %v1700
    %v1745 = vpack.c.b16 %v1705, %v1701
    %v1746 = vpack.c.b16 %v1710, %v1706
    %v1747 = vpack.c.b16 %v1711, %v1707
    %v1748 = vpack.c.b16 %v1712, %v1708
    %v1749 = vpack.c.b16 %v1713, %v1709
    %v1750 = vpack.c.b16 %v1718, %v1714
    %v1751 = vpack.c.b16 %v1719, %v1715
    %v1752 = vpack.c.b16 %v1720, %v1716
    %v1753 = vpack.c.b16 %v1721, %v1717
    %1786 = vmatprep.subr.bf16.mxu0 %v1723
    %1787 = vmatpush1.bf16.msra.mxu0 %v1722
    %1788 = vmatprep.subr.bf16.mxu0 %v1727
    %1789 = vmatpush1.bf16.msra.mxu0 %v1726
    %1790 = vmatprep.subr.bf16.mxu0 %v1731
    %1791 = vmatpush1.bf16.msra.mxu0 %v1730
    %1792 = vmatprep.subr.bf16.mxu0 %v1735
    %1793 = vmatpush1.bf16.msra.mxu0 %v1734
    %1794 = vmatprep.subr.bf16.mxu0 %v1739
    %1795 = vmatpush1.bf16.msra.mxu0 %v1738
    %1796 = vmatprep.subr.bf16.mxu0 %v1743
    %1797 = vmatpush1.bf16.msra.mxu0 %v1742
    %1798 = vmatprep.subr.bf16.mxu0 %v1747
    %1799 = vmatpush1.bf16.msra.mxu0 %v1746
    %1800 = vmatprep.subr.bf16.mxu0 %v1751
    %1801 = vmatpush1.bf16.msra.mxu0 %v1750
    %1802 = vmatprep.subr.bf16.mxu0 0
    %1803 = vmatpush1.bf16.msra.mxu0 0
    %1804 = vmatprep.subr.bf16.mxu0 0
    %1805 = vmatpush1.bf16.msra.mxu0 0
    %1806 = vmatprep.subr.bf16.mxu0 0
    %1807 = vmatpush1.bf16.msra.mxu0 0
    %1808 = vmatprep.subr.bf16.mxu0 0
    %1809 = vmatpush1.bf16.msra.mxu0 0
    %1810 = vmatprep.subr.bf16.mxu0 0
    %1811 = vmatpush1.bf16.msra.mxu0 0
    %1812 = vmatprep.subr.bf16.mxu0 0
    %1813 = vmatpush1.bf16.msra.mxu0 0
    %1814 = vmatprep.subr.bf16.mxu0 0
    %1815 = vmatpush1.bf16.msra.mxu0 0
    %1816 = vmatprep.subr.bf16.mxu0 0
    %1817 = vmatpush1.bf16.msra.mxu0 0
    %1818 = vmatprep.mubr.bf16.mxu0 0
    %1819 = vmatmul.mubr.bf16.gmra.mrb[0].mxu0 %v1571
    %v1820 = vpop.f32.mrb[0].mxu0
    %v1821 = vadd.f32 %v1609, %v1820
    %v1822 = vpop.f32.mrb[0].mxu0
    %v1823 = vadd.f32 %v1613, %v1822
    %v1824 = vpop.f32.mrb[0].mxu0
    %v1825 = vadd.f32 %v1609, %v1824
    %v1826 = vpop.f32.mrb[0].mxu0
    %v1827 = vadd.f32 %v1613, %v1826
    %1828 = vdwg.mxu0
    %1829 = vmatprep.subr.bf16.mxu0 %v1725
    %1830 = vmatpush1.bf16.msra.mxu0 %v1724
    %1831 = vmatprep.subr.bf16.mxu0 %v1729
    %1832 = vmatpush1.bf16.msra.mxu0 %v1728
    %1833 = vmatprep.subr.bf16.mxu0 %v1733
    %1834 = vmatpush1.bf16.msra.mxu0 %v1732
    %1835 = vmatprep.subr.bf16.mxu0 %v1737
    %1836 = vmatpush1.bf16.msra.mxu0 %v1736
    %1837 = vmatprep.subr.bf16.mxu0 %v1741
    %1838 = vmatpush1.bf16.msra.mxu0 %v1740
    %1839 = vmatprep.subr.bf16.mxu0 %v1745
    %1840 = vmatpush1.bf16.msra.mxu0 %v1744
    %1841 = vmatprep.subr.bf16.mxu0 %v1749
    %1842 = vmatpush1.bf16.msra.mxu0 %v1748
    %1843 = vmatprep.subr.bf16.mxu0 %v1753
    %1844 = vmatpush1.bf16.msra.mxu0 %v1752
    %1845 = vmatprep.subr.bf16.mxu0 0
    %1846 = vmatpush1.bf16.msra.mxu0 0
    %1847 = vmatprep.subr.bf16.mxu0 0
    %1848 = vmatpush1.bf16.msra.mxu0 0
    %1849 = vmatprep.subr.bf16.mxu0 0
    %1850 = vmatpush1.bf16.msra.mxu0 0
    %1851 = vmatprep.subr.bf16.mxu0 0
    %1852 = vmatpush1.bf16.msra.mxu0 0
    %1853 = vmatprep.subr.bf16.mxu0 0
    %1854 = vmatpush1.bf16.msra.mxu0 0
    %1855 = vmatprep.subr.bf16.mxu0 0
    %1856 = vmatpush1.bf16.msra.mxu0 0
    %1857 = vmatprep.subr.bf16.mxu0 0
    %1858 = vmatpush1.bf16.msra.mxu0 0
    %1859 = vmatprep.subr.bf16.mxu0 0
    %1860 = vmatpush1.bf16.msra.mxu0 0
    %1861 = vmatprep.mubr.bf16.mxu0 0
    %1862 = vmatmul.mubr.bf16.gmra.mrb[0].mxu0 %v1571
    %v1863 = vpop.f32.mrb[0].mxu0
    %v1864 = vadd.f32 %v1617, %v1863
    %v1865 = vpop.f32.mrb[0].mxu0
    %v1866 = vadd.f32 %v1621, %v1865
    %v1867 = vpop.f32.mrb[0].mxu0
    %v1868 = vadd.f32 %v1617, %v1867
    %v1869 = vpop.f32.mrb[0].mxu0
    %v1870 = vadd.f32 %v1621, %v1869
    %1871 = vdwg.mxu0
    %v1872 = vmul.f32 %v1821, 0.5
    %v1873 = vmul.f32 %v1823, 0.5
    %v1874 = vmul.f32 %v1864, 0.5
    %v1875 = vmul.f32 %v1866, 0.5
    %v1876 = vmul.f32 %v1825, 0.5
    %v1877 = vmul.f32 %v1827, 0.5
    %v1878 = vmul.f32 %v1868, 0.5
    %v1879 = vmul.f32 %v1870, 0.5
    %v1880 = vmul.f32 %v1821, 0.044715
    %v1881 = vmul.f32 %v1823, 0.044715
    %v1882 = vmul.f32 %v1864, 0.044715
    %v1883 = vmul.f32 %v1866, 0.044715
    %v1884 = vmul.f32 %v1825, 0.044715
    %v1885 = vmul.f32 %v1827, 0.044715
    %v1886 = vmul.f32 %v1868, 0.044715
    %v1887 = vmul.f32 %v1870, 0.044715
    %v1888 = vmul.f32 %v1880, %v1821
    %v1889 = vmul.f32 %v1881, %v1823
    %v1890 = vmul.f32 %v1882, %v1864
    %v1891 = vmul.f32 %v1883, %v1866
    %v1892 = vmul.f32 %v1884, %v1825
    %v1893 = vmul.f32 %v1885, %v1827
    %v1894 = vmul.f32 %v1886, %v1868
    %v1895 = vmul.f32 %v1887, %v1870
    %v1896 = vmul.f32 %v1888, %v1821
    %v1897 = vmul.f32 %v1889, %v1823
    %v1898 = vmul.f32 %v1890, %v1864
    %v1899 = vmul.f32 %v1891, %v1866
    %v1900 = vmul.f32 %v1892, %v1825
    %v1901 = vmul.f32 %v1893, %v1827
    %v1902 = vmul.f32 %v1894, %v1868
    %v1903 = vmul.f32 %v1895, %v1870
    %v1904 = vadd.f32 %v1821, %v1896
    %v1905 = vadd.f32 %v1823, %v1897
    %v1906 = vadd.f32 %v1864, %v1898
    %v1907 = vadd.f32 %v1866, %v1899
    %v1908 = vadd.f32 %v1825, %v1900
    %v1909 = vadd.f32 %v1827, %v1901
    %v1910 = vadd.f32 %v1868, %v1902
    %v1911 = vadd.f32 %v1870, %v1903
    %v1912 = vmul.f32 %v1904, 0.7978846
    %v1913 = vmul.f32 %v1905, 0.7978846
    %v1914 = vmul.f32 %v1906, 0.7978846
    %v1915 = vmul.f32 %v1907, 0.7978846
    %v1916 = vmul.f32 %v1908, 0.7978846
    %v1917 = vmul.f32 %v1909, 0.7978846
    %v1918 = vmul.f32 %v1910, 0.7978846
    %v1919 = vmul.f32 %v1911, 0.7978846
    %v1920 = vtanh.pop %v1912
    %v1921 = vtanh.pop %v1913
    %v1922 = vtanh.pop %v1914
    %v1923 = vtanh.pop %v1915
    %v1924 = vtanh.pop %v1916
    %v1925 = vtanh.pop %v1917
    %v1926 = vtanh.pop %v1918
    %v1927 = vtanh.pop %v1919
    %v1928 = vadd.f32 %v1920, 1.0
    %v1929 = vadd.f32 %v1921, 1.0
    %v1930 = vadd.f32 %v1922, 1.0
    %v1931 = vadd.f32 %v1923, 1.0
    %v1932 = vadd.f32 %v1924, 1.0
    %v1933 = vadd.f32 %v1925, 1.0
    %v1934 = vadd.f32 %v1926, 1.0
    %v1935 = vadd.f32 %v1927, 1.0
    %v1936 = vmul.f32 %v1872, %v1928
    %v1937 = vmul.f32 %v1873, %v1929
    %v1938 = vmul.f32 %v1874, %v1930
    %v1939 = vmul.f32 %v1875, %v1931
    %v1940 = vmul.f32 %v1876, %v1932
    %v1941 = vmul.f32 %v1877, %v1933
    %v1942 = vmul.f32 %v1878, %v1934
    %v1943 = vmul.f32 %v1879, %v1935
    %v1944 = vpack.c.bf16 %v1940, %v1936
    %v1945 = vpack.c.bf16 %v1941, %v1937
    %v1946 = vpack.c.bf16 %v1942, %v1938
    %v1947 = vpack.c.bf16 %v1943, %v1939
    %v1948 = vld [vmem:[#allocation13] sm:$0xf]
    %v1949 = vld [vmem:[#allocation13 + $0x4] sm:$0xf]
    %v1950 = vld [vmem:[#allocation13 + $0x8] sm:$0xf]
    %v1951 = vld [vmem:[#allocation13 + $0xc] sm:$0xf]
    %v1952 = vld [vmem:[#allocation13 + $0x10] sm:$0xf]
    %v1953 = vld [vmem:[#allocation13 + $0x14] sm:$0xf]
    %v1954 = vld [vmem:[#allocation13 + $0x18] sm:$0xf]
    %v1955 = vld [vmem:[#allocation13 + $0x1c] sm:$0xf]
    %v1956 = vld [vmem:[#allocation13 + $0x20] sm:$0xf]
    %v1957 = vld [vmem:[#allocation13 + $0x24] sm:$0xf]
    %v1958 = vld [vmem:[#allocation13 + $0x28] sm:$0xf]
    %v1959 = vld [vmem:[#allocation13 + $0x2c] sm:$0xf]
    %v1960 = vld [vmem:[#allocation13 + $0x30] sm:$0xf]
    %v1961 = vld [vmem:[#allocation13 + $0x34] sm:$0xf]
    %v1962 = vld [vmem:[#allocation13 + $0x38] sm:$0xf]
    %v1963 = vld [vmem:[#allocation13 + $0x3c] sm:$0xf]
    %v1964 = vld [vmem:[#allocation13 + $0x40] sm:$0xf]
    %v1965 = vld [vmem:[#allocation13 + $0x44] sm:$0xf]
    %v1966 = vld [vmem:[#allocation13 + $0x48] sm:$0xf]
    %v1967 = vld [vmem:[#allocation13 + $0x4c] sm:$0xf]
    %v1968 = vld [vmem:[#allocation13 + $0x50] sm:$0xf]
    %v1969 = vld [vmem:[#allocation13 + $0x54] sm:$0xf]
    %v1970 = vld [vmem:[#allocation13 + $0x58] sm:$0xf]
    %v1971 = vld [vmem:[#allocation13 + $0x5c] sm:$0xf]
    %v1972 = vld [vmem:[#allocation13 + $0x60] sm:$0xf]
    %v1973 = vld [vmem:[#allocation13 + $0x64] sm:$0xf]
    %v1974 = vld [vmem:[#allocation13 + $0x68] sm:$0xf]
    %v1975 = vld [vmem:[#allocation13 + $0x6c] sm:$0xf]
    %v1976 = vld [vmem:[#allocation13 + $0x70] sm:$0xf]
    %v1977 = vld [vmem:[#allocation13 + $0x74] sm:$0xf]
    %v1978 = vld [vmem:[#allocation13 + $0x78] sm:$0xf]
    %v1979 = vld [vmem:[#allocation13 + $0x7c] sm:$0xf]
    %v1980 = vld [vmem:[#allocation13 + $0x80] sm:$0xf]
    %v1981 = vld [vmem:[#allocation13 + $0x84] sm:$0xf]
    %v1982 = vld [vmem:[#allocation13 + $0x88] sm:$0xf]
    %v1983 = vld [vmem:[#allocation13 + $0x8c] sm:$0xf]
    %v1984 = vld [vmem:[#allocation13 + $0x90] sm:$0xf]
    %v1985 = vld [vmem:[#allocation13 + $0x94] sm:$0xf]
    %v1986 = vld [vmem:[#allocation13 + $0x98] sm:$0xf]
    %v1987 = vld [vmem:[#allocation13 + $0x9c] sm:$0xf]
    %v1988 = vld [vmem:[#allocation13 + $0xa0] sm:$0xf]
    %v1989 = vld [vmem:[#allocation13 + $0xa4] sm:$0xf]
    %v1990 = vld [vmem:[#allocation13 + $0xa8] sm:$0xf]
    %v1991 = vld [vmem:[#allocation13 + $0xac] sm:$0xf]
    %v1992 = vld [vmem:[#allocation13 + $0xb0] sm:$0xf]
    %v1993 = vld [vmem:[#allocation13 + $0xb4] sm:$0xf]
    %v1994 = vld [vmem:[#allocation13 + $0xb8] sm:$0xf]
    %v1995 = vld [vmem:[#allocation13 + $0xbc] sm:$0xf]
    %v1996 = vld [vmem:[#allocation13 + $0xc0] sm:$0xf]
    %v1997 = vld [vmem:[#allocation13 + $0xc4] sm:$0xf]
    %v1998 = vld [vmem:[#allocation13 + $0xc8] sm:$0xf]
    %v1999 = vld [vmem:[#allocation13 + $0xcc] sm:$0xf]
    %v2000 = vld [vmem:[#allocation13 + $0xd0] sm:$0xf]
    %v2001 = vld [vmem:[#allocation13 + $0xd4] sm:$0xf]
    %v2002 = vld [vmem:[#allocation13 + $0xd8] sm:$0xf]
    %v2003 = vld [vmem:[#allocation13 + $0xdc] sm:$0xf]
    %v2004 = vld [vmem:[#allocation13 + $0xe0] sm:$0xf]
    %v2005 = vld [vmem:[#allocation13 + $0xe4] sm:$0xf]
    %v2006 = vld [vmem:[#allocation13 + $0xe8] sm:$0xf]
    %v2007 = vld [vmem:[#allocation13 + $0xec] sm:$0xf]
    %v2008 = vld [vmem:[#allocation13 + $0xf0] sm:$0xf]
    %v2009 = vld [vmem:[#allocation13 + $0xf4] sm:$0xf]
    %v2010 = vld [vmem:[#allocation13 + $0xf8] sm:$0xf]
    %v2011 = vld [vmem:[#allocation13 + $0xfc] sm:$0xf]
    %v2012 = vld [vmem:[%s12] sm:$0x1]
    %v2014 = vlaneseq
    %v2015 = vshrl.u32 %v2014, 7
    %v2016 = vsub.s32 0, %v2015
    %v2017 = vrot.slane %v2012, %v2016
    %v2083 = vunpack.c.l.b16 %v1948
    %v2084 = vunpack.c.l.b16 %v1949
    %v2085 = vunpack.c.l.b16 %v1950
    %v2086 = vunpack.c.l.b16 %v1951
    %v2087 = vunpack.c.l.b16 %v1952
    %v2088 = vunpack.c.l.b16 %v1953
    %v2089 = vunpack.c.l.b16 %v1954
    %v2090 = vunpack.c.l.b16 %v1955
    %v2091 = vunpack.c.l.b16 %v1956
    %v2092 = vunpack.c.l.b16 %v1957
    %v2093 = vunpack.c.l.b16 %v1958
    %v2094 = vunpack.c.l.b16 %v1959
    %v2095 = vunpack.c.l.b16 %v1960
    %v2096 = vunpack.c.l.b16 %v1961
    %v2097 = vunpack.c.l.b16 %v1962
    %v2098 = vunpack.c.l.b16 %v1963
    %v2099 = vunpack.c.l.b16 %v1964
    %v2100 = vunpack.c.l.b16 %v1965
    %v2101 = vunpack.c.l.b16 %v1966
    %v2102 = vunpack.c.l.b16 %v1967
    %v2103 = vunpack.c.l.b16 %v1968
    %v2104 = vunpack.c.l.b16 %v1969
    %v2105 = vunpack.c.l.b16 %v1970
    %v2106 = vunpack.c.l.b16 %v1971
    %v2107 = vunpack.c.l.b16 %v1972
    %v2108 = vunpack.c.l.b16 %v1973
    %v2109 = vunpack.c.l.b16 %v1974
    %v2110 = vunpack.c.l.b16 %v1975
    %v2111 = vunpack.c.l.b16 %v1976
    %v2112 = vunpack.c.l.b16 %v1977
    %v2113 = vunpack.c.l.b16 %v1978
    %v2114 = vunpack.c.l.b16 %v1979
    %v2115 = vunpack.c.l.b16 %v1980
    %v2116 = vunpack.c.l.b16 %v1981
    %v2117 = vunpack.c.l.b16 %v1982
    %v2118 = vunpack.c.l.b16 %v1983
    %v2119 = vunpack.c.l.b16 %v1984
    %v2120 = vunpack.c.l.b16 %v1985
    %v2121 = vunpack.c.l.b16 %v1986
    %v2122 = vunpack.c.l.b16 %v1987
    %v2123 = vunpack.c.l.b16 %v1988
    %v2124 = vunpack.c.l.b16 %v1989
    %v2125 = vunpack.c.l.b16 %v1990
    %v2126 = vunpack.c.l.b16 %v1991
    %v2127 = vunpack.c.l.b16 %v1992
    %v2128 = vunpack.c.l.b16 %v1993
    %v2129 = vunpack.c.l.b16 %v1994
    %v2130 = vunpack.c.l.b16 %v1995
    %v2131 = vunpack.c.l.b16 %v1996
    %v2132 = vunpack.c.l.b16 %v1997
    %v2133 = vunpack.c.l.b16 %v1998
    %v2134 = vunpack.c.l.b16 %v1999
    %v2135 = vunpack.c.l.b16 %v2000
    %v2136 = vunpack.c.l.b16 %v2001
    %v2137 = vunpack.c.l.b16 %v2002
    %v2138 = vunpack.c.l.b16 %v2003
    %v2139 = vunpack.c.l.b16 %v2004
    %v2140 = vunpack.c.l.b16 %v2005
    %v2141 = vunpack.c.l.b16 %v2006
    %v2142 = vunpack.c.l.b16 %v2007
    %v2143 = vunpack.c.l.b16 %v2008
    %v2144 = vunpack.c.l.b16 %v2009
    %v2145 = vunpack.c.l.b16 %v2010
    %v2146 = vunpack.c.l.b16 %v2011
    %v2147 = vpack.c.b16 %v2084, %v2083
    %v2148 = vpack.c.b16 %v2086, %v2085
    %v2149 = vpack.c.b16 %v2088, %v2087
    %v2150 = vpack.c.b16 %v2090, %v2089
    %v2151 = vpack.c.b16 %v2092, %v2091
    %v2152 = vpack.c.b16 %v2094, %v2093
    %v2153 = vpack.c.b16 %v2096, %v2095
    %v2154 = vpack.c.b16 %v2098, %v2097
    %v2155 = vpack.c.b16 %v2100, %v2099
    %v2156 = vpack.c.b16 %v2102, %v2101
    %v2157 = vpack.c.b16 %v2104, %v2103
    %v2158 = vpack.c.b16 %v2106, %v2105
    %v2159 = vpack.c.b16 %v2108, %v2107
    %v2160 = vpack.c.b16 %v2110, %v2109
    %v2161 = vpack.c.b16 %v2112, %v2111
    %v2162 = vpack.c.b16 %v2114, %v2113
    %v2163 = vpack.c.b16 %v2116, %v2115
    %v2164 = vpack.c.b16 %v2118, %v2117
    %v2165 = vpack.c.b16 %v2120, %v2119
    %v2166 = vpack.c.b16 %v2122, %v2121
    %v2167 = vpack.c.b16 %v2124, %v2123
    %v2168 = vpack.c.b16 %v2126, %v2125
    %v2169 = vpack.c.b16 %v2128, %v2127
    %v2170 = vpack.c.b16 %v2130, %v2129
    %v2171 = vpack.c.b16 %v2132, %v2131
    %v2172 = vpack.c.b16 %v2134, %v2133
    %v2173 = vpack.c.b16 %v2136, %v2135
    %v2174 = vpack.c.b16 %v2138, %v2137
    %v2175 = vpack.c.b16 %v2140, %v2139
    %v2176 = vpack.c.b16 %v2142, %v2141
    %v2177 = vpack.c.b16 %v2144, %v2143
    %v2178 = vpack.c.b16 %v2146, %v2145
    %2211 = vmatprep.subr.bf16.mxu0 0
    %2212 = vmatpush1.bf16.msra.mxu0 %v2147
    %2213 = vmatprep.subr.bf16.mxu0 0
    %2214 = vmatpush1.bf16.msra.mxu0 %v2148
    %2215 = vmatprep.subr.bf16.mxu0 0
    %2216 = vmatpush1.bf16.msra.mxu0 %v2149
    %2217 = vmatprep.subr.bf16.mxu0 0
    %2218 = vmatpush1.bf16.msra.mxu0 %v2150
    %2219 = vmatprep.subr.bf16.mxu0 0
    %2220 = vmatpush1.bf16.msra.mxu0 %v2151
    %2221 = vmatprep.subr.bf16.mxu0 0
    %2222 = vmatpush1.bf16.msra.mxu0 %v2152
    %2223 = vmatprep.subr.bf16.mxu0 0
    %2224 = vmatpush1.bf16.msra.mxu0 %v2153
    %2225 = vmatprep.subr.bf16.mxu0 0
    %2226 = vmatpush1.bf16.msra.mxu0 %v2154
    %2227 = vmatprep.subr.bf16.mxu0 0
    %2228 = vmatpush1.bf16.msra.mxu0 %v2155
    %2229 = vmatprep.subr.bf16.mxu0 0
    %2230 = vmatpush1.bf16.msra.mxu0 %v2156
    %2231 = vmatprep.subr.bf16.mxu0 0
    %2232 = vmatpush1.bf16.msra.mxu0 %v2157
    %2233 = vmatprep.subr.bf16.mxu0 0
    %2234 = vmatpush1.bf16.msra.mxu0 %v2158
    %2235 = vmatprep.subr.bf16.mxu0 0
    %2236 = vmatpush1.bf16.msra.mxu0 %v2159
    %2237 = vmatprep.subr.bf16.mxu0 0
    %2238 = vmatpush1.bf16.msra.mxu0 %v2160
    %2239 = vmatprep.subr.bf16.mxu0 0
    %2240 = vmatpush1.bf16.msra.mxu0 %v2161
    %2241 = vmatprep.subr.bf16.mxu0 0
    %2242 = vmatpush1.bf16.msra.mxu0 %v2162
    %2243 = vmatprep.mubr.bf16.mxu0 %v1945
    %2244 = vmatmul.mubr.bf16.gmra.mrb[0].mxu0 %v1944
    %v2245 = vpop.f32.mrb[0].mxu0
    %v2246 = vadd.f32 %v2017, %v2245
    %v2247 = vpop.f32.mrb[0].mxu0
    %v2248 = vpop.f32.mrb[0].mxu0
    %v2249 = vadd.f32 %v2017, %v2248
    %v2250 = vpop.f32.mrb[0].mxu0
    %2251 = vdwg.mxu0
    %2252 = vmatprep.subr.bf16.mxu0 0
    %2253 = vmatpush1.bf16.msra.mxu0 %v2163
    %2254 = vmatprep.subr.bf16.mxu0 0
    %2255 = vmatpush1.bf16.msra.mxu0 %v2164
    %2256 = vmatprep.subr.bf16.mxu0 0
    %2257 = vmatpush1.bf16.msra.mxu0 %v2165
    %2258 = vmatprep.subr.bf16.mxu0 0
    %2259 = vmatpush1.bf16.msra.mxu0 %v2166
    %2260 = vmatprep.subr.bf16.mxu0 0
    %2261 = vmatpush1.bf16.msra.mxu0 %v2167
    %2262 = vmatprep.subr.bf16.mxu0 0
    %2263 = vmatpush1.bf16.msra.mxu0 %v2168
    %2264 = vmatprep.subr.bf16.mxu0 0
    %2265 = vmatpush1.bf16.msra.mxu0 %v2169
    %2266 = vmatprep.subr.bf16.mxu0 0
    %2267 = vmatpush1.bf16.msra.mxu0 %v2170
    %2268 = vmatprep.subr.bf16.mxu0 0
    %2269 = vmatpush1.bf16.msra.mxu0 %v2171
    %2270 = vmatprep.subr.bf16.mxu0 0
    %2271 = vmatpush1.bf16.msra.mxu0 %v2172
    %2272 = vmatprep.subr.bf16.mxu0 0
    %2273 = vmatpush1.bf16.msra.mxu0 %v2173
    %2274 = vmatprep.subr.bf16.mxu0 0
    %2275 = vmatpush1.bf16.msra.mxu0 %v2174
    %2276 = vmatprep.subr.bf16.mxu0 0
    %2277 = vmatpush1.bf16.msra.mxu0 %v2175
    %2278 = vmatprep.subr.bf16.mxu0 0
    %2279 = vmatpush1.bf16.msra.mxu0 %v2176
    %2280 = vmatprep.subr.bf16.mxu0 0
    %2281 = vmatpush1.bf16.msra.mxu0 %v2177
    %2282 = vmatprep.subr.bf16.mxu0 0
    %2283 = vmatpush1.bf16.msra.mxu0 %v2178
    %2284 = vmatprep.mubr.bf16.mxu0 %v1947
    %2285 = vmatmul.mubr.bf16.gmra.mrb[0].mxu0 %v1946
    %v2286 = vpop.f32.mrb[0].mxu0
    %v2287 = vadd.f32 %v2246, %v2286
    %v2288 = vpop.f32.mrb[0].mxu0
    %v2289 = vpop.f32.mrb[0].mxu0
    %v2290 = vadd.f32 %v2249, %v2289
    %v2291 = vpop.f32.mrb[0].mxu0
    %2292 = vdwg.mxu0
    %v2293 = vadd.f32 %v1529, %v2287
    %v2294 = vadd.f32 %v1530, %v2290
    %2295 = vst [vmem:[#allocation14] sm:$0xff] %v2293
    %2296 = vst [vmem:[#allocation14 + $0x8] sm:$0xff] %v2294
    // Predicated region
    $region82: #{tpu_custom_call.1} parent=1 // pred_check
      _
    $region83: #{tpu_custom_call.1} parent=1 // pred_check_branch
      %2298 = sbr.rel (0) target = $region85
    $region84: #{tpu_custom_call.1} parent=1 // pred_region
      %s2300 = ssub.s32 256, 256
      %2301 = vsyncadd [#allocation4], %s2300
      %s2302 = sshll.u32 [#allocation14], 4
      %s2303 = int_to_ptr.vmem [resolvable:$true] %s2302
      %2308 = dma.vmem_to_hbm [thread:$0]  %s2303, 256, %s13, [#allocation4], 128, 128, 8
    $region85: #{tpu_custom_call.1} parent=1 // pred_fallthru
      _
    // Predicated region
    $region86: #{tpu_custom_call.1} parent=1 // pred_check
      _
    $region87: #{tpu_custom_call.1} parent=1 // pred_check_branch
      %2310 = sbr.rel (0) target = $region89
    $region88: #{tpu_custom_call.1} parent=1 // pred_region
      %2311 = dma.done [#allocation4], 256
    $region89: #{tpu_custom_call.1} parent=1 // pred_fallthru
      _
    %2312 = vsyncpa [#allocation3], 1
    %2313 = vsyncpa [#allocation6], 1
    %2314 = vsyncpa [#allocation9], 1
    %2315 = vsyncpa [#allocation12], 1
    %2316 = vsyncpa [#allocation4], 1

// kernel: tpu_custom_call.1
$region0: #{tpu_custom_call.1}
  #allocation0 [shape = 'u32[]', space=smem, size = 0x4, offset = 0x4, fixed_abs, tag = 'smem constant byte address 0x4 - core index']
  #allocation1 [shape = 'u32[144,128]{1,0:T(1,128)}', space=vmem, size = 0x12000, scoped, tag = 'internal scratch']
  %s0 = inlined_call_operand.hbm [shape: f32[2,8,128], index: 0, kind: input, shape index: {}]
  %s1 = inlined_call_operand.hbm [shape: f32[1,128], index: 1, kind: input, shape index: {}]
  %s2 = inlined_call_operand.hbm [shape: f32[1,128], index: 2, kind: input, shape index: {}]
  %s3 = inlined_call_operand.hbm [shape: bf16[128,384], index: 3, kind: input, shape index: {}]
  %s4 = inlined_call_operand.vmem [shape: f32[1,384], index: 4, kind: input, shape index: {}]
  %s5 = inlined_call_operand.hbm [shape: bf16[128,128], index: 5, kind: input, shape index: {}]
  %s6 = inlined_call_operand.vmem [shape: f32[1,128], index: 6, kind: input, shape index: {}]
  %s7 = inlined_call_operand.vmem [shape: f32[1,128], index: 7, kind: input, shape index: {}]
  %s8 = inlined_call_operand.vmem [shape: f32[1,128], index: 8, kind: input, shape index: {}]
  %s9 = inlined_call_operand.hbm [shape: bf16[128,512], index: 9, kind: input, shape index: {}]
  %s10 = inlined_call_operand.vmem [shape: f32[1,512], index: 10, kind: input, shape index: {}]
  %s11 = inlined_call_operand.hbm [shape: bf16[512,128], index: 11, kind: input, shape index: {}]
  %s12 = inlined_call_operand.vmem [shape: f32[1,128], index: 12, kind: input, shape index: {}]
  %s13 = inlined_call_operand.hbm [shape: f32[2,8,128], index: 13, kind: output, shape index: {}]
  %s14 = sld [smem:[#allocation0]]
  $region90: #{tpu_custom_call.1} parent=0
    _
  %s16 = ssub.s32 1, %s14
  %s17 = scalar_select 0, %s16, %s14
  $region1: #{tpu_custom_call.1} parent=0
    #allocation2 [shape = 'u8[8192]{0}', space=vmem, size = 0x2000, scoped, tag = 'input window, operand 0, single buffered']
    #allocation3 [shape = 's32[1]{0}', space=sflag, size = 0x4, scoped, tag = 'scoped memory for tpu_custom_call.1']
    #allocation4 [shape = 's32[1]{0}', space=sflag, size = 0x4, scoped, tag = 'scoped memory for tpu_custom_call.1']
    #allocation5 [shape = 'u8[512]{0}', space=vmem, size = 0x400, scoped, tag = 'input window, operand 1, single buffered']
    #allocation6 [shape = 's32[1]{0}', space=sflag, size = 0x4, scoped, tag = 'scoped memory for tpu_custom_call.1']
    #allocation7 [shape = 'u8[512]{0}', space=vmem, size = 0x400, scoped, tag = 'input window, operand 2, single buffered']
    #allocation8 [shape = 'u8[98304]{0}', space=vmem, size = 0x18000, scoped, tag = 'input window, operand 3, single buffered']
    #allocation9 [shape = 's32[1]{0}', space=sflag, size = 0x4, scoped, tag = 'scoped memory for tpu_custom_call.1']
    #allocation10 [shape = 'u8[32768]{0}', space=vmem, size = 0x8000, scoped, tag = 'input window, operand 5, single buffered']
    #allocation11 [shape = 'u8[131072]{0}', space=vmem, size = 0x20000, scoped, tag = 'input window, operand 9, single buffered']
    #allocation12 [shape = 's32[1]{0}', space=sflag, size = 0x4, scoped, tag = 'scoped memory for tpu_custom_call.1']
    #allocation13 [shape = 'u8[131072]{0}', space=vmem, size = 0x20000, scoped, tag = 'input window, operand 11, single buffered']
    #allocation14 [shape = 'u8[8192]{0}', space=vmem, size = 0x2000, scoped, tag = 'output window, operand 0, single buffered']
    %18 = vsyncpa [#allocation3], 0
    %19 = vsyncpa [#allocation6], 0
    %20 = vsyncpa [#allocation9], 0
    %21 = vsyncpa [#allocation12], 0
    %22 = vsyncpa [#allocation4], 0
    // Predicated region
    $region2: #{tpu_custom_call.1} parent=1 // pred_check
      _
    $region3: #{tpu_custom_call.1} parent=1 // pred_check_branch
      %24 = sbr.rel (0) target = $region5
    $region4: #{tpu_custom_call.1} parent=1 // pred_region
      %s26 = ssub.s32 256, 256
      %27 = vsyncadd [#allocation3], %s26
      %s28 = sshll.u32 [#allocation2], 4
      %s29 = int_to_ptr.vmem [resolvable:$true] %s28
      %34 = dma.hbm_to_vmem [thread:$0]  %s0, 256, %s29, [#allocation3], 128, 128, 8
    $region5: #{tpu_custom_call.1} parent=1 // pred_fallthru
      _
    // Predicated region
    $region6: #{tpu_custom_call.1} parent=1 // pred_check
      _
    $region7: #{tpu_custom_call.1} parent=1 // pred_check_branch
      %36 = sbr.rel (0) target = $region9
    $region8: #{tpu_custom_call.1} parent=1 // pred_region
      %s38 = ssub.s32 16, 16
      %39 = vsyncadd [#allocation6], %s38
      %s41 = sshll.u32 [#allocation5], 4
      %s42 = int_to_ptr.vmem [resolvable:$true] %s41
      %44 = dma.hbm_to_vmem [thread:$0]  %s1, 16, %s42, [#allocation6]
    $region9: #{tpu_custom_call.1} parent=1 // pred_fallthru
      _
    // Predicated region
    $region10: #{tpu_custom_call.1} parent=1 // pred_check
      _
    $region11: #{tpu_custom_call.1} parent=1 // pred_check_branch
      %46 = sbr.rel (0) target = $region13
    $region12: #{tpu_custom_call.1} parent=1 // pred_region
      %s48 = ssub.s32 16, 16
      %49 = vsyncadd [#allocation6], %s48
      %s51 = sshll.u32 [#allocation7], 4
      %s52 = int_to_ptr.vmem [resolvable:$true] %s51
      %54 = dma.hbm_to_vmem [thread:$0]  %s2, 16, %s52, [#allocation6]
    $region13: #{tpu_custom_call.1} parent=1 // pred_fallthru
      _
    // Predicated region
    $region14: #{tpu_custom_call.1} parent=1 // pred_check
      _
    $region15: #{tpu_custom_call.1} parent=1 // pred_check_branch
      %56 = sbr.rel (0) target = $region17
    $region16: #{tpu_custom_call.1} parent=1 // pred_region
      %s58 = ssub.s32 3072, 3072
      %59 = vsyncadd [#allocation9], %s58
      %s60 = sshll.u32 [#allocation8], 4
      %s61 = int_to_ptr.vmem [resolvable:$true] %s60
      %66 = dma.hbm_to_vmem [thread:$0]  %s3, 3072, %s61, [#allocation9], 192, 192, 12
    $region17: #{tpu_custom_call.1} parent=1 // pred_fallthru
      _
    // Predicated region
    $region18: #{tpu_custom_call.1} parent=1 // pred_check
      _
    $region19: #{tpu_custom_call.1} parent=1 // pred_check_branch
      %68 = sbr.rel (0) target = $region21
    $region20: #{tpu_custom_call.1} parent=1 // pred_region
      _
    $region21: #{tpu_custom_call.1} parent=1 // pred_fallthru
      _
    // Predicated region
    $region22: #{tpu_custom_call.1} parent=1 // pred_check
      _
    $region23: #{tpu_custom_call.1} parent=1 // pred_check_branch
      %70 = sbr.rel (0) target = $region25
    $region24: #{tpu_custom_call.1} parent=1 // pred_region
      %s72 = ssub.s32 1024, 1024
      %73 = vsyncadd [#allocation9], %s72
      %s74 = sshll.u32 [#allocation10], 4
      %s75 = int_to_ptr.vmem [resolvable:$true] %s74
      %80 = dma.hbm_to_vmem [thread:$0]  %s5, 1024, %s75, [#allocation9], 64, 64, 4
    $region25: #{tpu_custom_call.1} parent=1 // pred_fallthru
      _
    // Predicated region
    $region26: #{tpu_custom_call.1} parent=1 // pred_check
      _
    $region27: #{tpu_custom_call.1} parent=1 // pred_check_branch
      %82 = sbr.rel (0) target = $region29
    $region28: #{tpu_custom_call.1} parent=1 // pred_region
      _
    $region29: #{tpu_custom_call.1} parent=1 // pred_fallthru
      _
    // Predicated region
    $region30: #{tpu_custom_call.1} parent=1 // pred_check
      _
    $region31: #{tpu_custom_call.1} parent=1 // pred_check_branch
      %84 = sbr.rel (0) target = $region33
    $region32: #{tpu_custom_call.1} parent=1 // pred_region
      _
    $region33: #{tpu_custom_call.1} parent=1 // pred_fallthru
      _
    // Predicated region
    $region34: #{tpu_custom_call.1} parent=1 // pred_check
      _
    $region35: #{tpu_custom_call.1} parent=1 // pred_check_branch
      %86 = sbr.rel (0) target = $region37
    $region36: #{tpu_custom_call.1} parent=1 // pred_region
      _
    $region37: #{tpu_custom_call.1} parent=1 // pred_fallthru
      _
    // Predicated region
    $region38: #{tpu_custom_call.1} parent=1 // pred_check
      _
    $region39: #{tpu_custom_call.1} parent=1 // pred_check_branch
      %88 = sbr.rel (0) target = $region41
    $region40: #{tpu_custom_call.1} parent=1 // pred_region
      %s90 = ssub.s32 4096, 4096
      %91 = vsyncadd [#allocation12], %s90
      %s92 = sshll.u32 [#allocation11], 4
      %s93 = int_to_ptr.vmem [resolvable:$true] %s92
      %98 = dma.hbm_to_vmem [thread:$0]  %s9, 4096, %s93, [#allocation12], 256, 256, 16
    $region41: #{tpu_custom_call.1} parent=1 // pred_fallthru
      _
    // Predicated region
    $region42: #{tpu_custom_call.1} parent=1 // pred_check
      _
    $region43: #{tpu_custom_call.1} parent=1 // pred_check_branch
      %100 = sbr.rel (0) target = $region45
    $region44: #{tpu_custom_call.1} parent=1 // pred_region
      _
    $region45: #{tpu_custom_call.1} parent=1 // pred_fallthru
      _
    // Predicated region
    $region46: #{tpu_custom_call.1} parent=1 // pred_check
      _
    $region47: #{tpu_custom_call.1} parent=1 // pred_check_branch
      %102 = sbr.rel (0) target = $region49
    $region48: #{tpu_custom_call.1} parent=1 // pred_region
      %s104 = ssub.s32 4096, 4096
      %105 = vsyncadd [#allocation12], %s104
      %s106 = sshll.u32 [#allocation13], 4
      %s107 = int_to_ptr.vmem [resolvable:$true] %s106
      %112 = dma.hbm_to_vmem [thread:$0]  %s11, 4096, %s107, [#allocation12], 64, 64, 4
    $region49: #{tpu_custom_call.1} parent=1 // pred_fallthru
      _
    // Predicated region
    $region50: #{tpu_custom_call.1} parent=1 // pred_check
      _
    $region51: #{tpu_custom_call.1} parent=1 // pred_check_branch
      %114 = sbr.rel (0) target = $region53
    $region52: #{tpu_custom_call.1} parent=1 // pred_region
      _
    $region53: #{tpu_custom_call.1} parent=1 // pred_fallthru
      _
    // Predicated region
    $region54: #{tpu_custom_call.1} parent=1 // pred_check
      _
    $region55: #{tpu_custom_call.1} parent=1 // pred_check_branch
      %116 = sbr.rel (0) target = $region57
    $region56: #{tpu_custom_call.1} parent=1 // pred_region
      %117 = dma.done [#allocation3], 256
    $region57: #{tpu_custom_call.1} parent=1 // pred_fallthru
      _
    // Predicated region
    $region58: #{tpu_custom_call.1} parent=1 // pred_check
      _
    $region59: #{tpu_custom_call.1} parent=1 // pred_check_branch
      %119 = sbr.rel (0) target = $region61
    $region60: #{tpu_custom_call.1} parent=1 // pred_region
      %120 = dma.done [#allocation6], 16
    $region61: #{tpu_custom_call.1} parent=1 // pred_fallthru
      _
    // Predicated region
    $region62: #{tpu_custom_call.1} parent=1 // pred_check
      _
    $region63: #{tpu_custom_call.1} parent=1 // pred_check_branch
      %122 = sbr.rel (0) target = $region65
    $region64: #{tpu_custom_call.1} parent=1 // pred_region
      %123 = dma.done [#allocation6], 16
    $region65: #{tpu_custom_call.1} parent=1 // pred_fallthru
      _
    // Predicated region
    $region66: #{tpu_custom_call.1} parent=1 // pred_check
      _
    $region67: #{tpu_custom_call.1} parent=1 // pred_check_branch
      %125 = sbr.rel (0) target = $region69
    $region68: #{tpu_custom_call.1} parent=1 // pred_region
      %126 = dma.done [#allocation9], 3072
    $region69: #{tpu_custom_call.1} parent=1 // pred_fallthru
      _
    // Predicated region
    $region70: #{tpu_custom_call.1} parent=1 // pred_check
      _
    $region71: #{tpu_custom_call.1} parent=1 // pred_check_branch
      %128 = sbr.rel (0) target = $region73
    $region72: #{tpu_custom_call.1} parent=1 // pred_region
      %129 = dma.done [#allocation9], 1024
    $region73: #{tpu_custom_call.1} parent=1 // pred_fallthru
      _
    // Predicated region
    $region74: #{tpu_custom_call.1} parent=1 // pred_check
      _
    $region75: #{tpu_custom_call.1} parent=1 // pred_check_branch
      %131 = sbr.rel (0) target = $region77
    $region76: #{tpu_custom_call.1} parent=1 // pred_region
      %132 = dma.done [#allocation12], 4096
    $region77: #{tpu_custom_call.1} parent=1 // pred_fallthru
      _
    // Predicated region
    $region78: #{tpu_custom_call.1} parent=1 // pred_check
      _
    $region79: #{tpu_custom_call.1} parent=1 // pred_check_branch
      %134 = sbr.rel (0) target = $region81
    $region80: #{tpu_custom_call.1} parent=1 // pred_region
      %135 = dma.done [#allocation12], 4096
    $region81: #{tpu_custom_call.1} parent=1 // pred_fallthru
      _
    %v137 = vld [vmem:[#allocation2] sm:$0xff]
    %v138 = vld [vmem:[#allocation2 + $0x8] sm:$0xff]
    %139 = vadd.xlane.f32.xlu0 %v137
    %v140 = vpop.xlane.xlu0 %139
    %141 = vadd.xlane.f32.xlu0 %v138
    %v142 = vpop.xlane.xlu0 %141
    %v143 = vrcp.pop 128.0
    %v144 = vmul.f32 %v140, %v143
    %v145 = vmul.f32 %v142, %v143
    %v146 = vsub.f32 %v137, %v144
    %v147 = vsub.f32 %v138, %v145
    %v148 = vmul.f32 %v146, %v146
    %v149 = vmul.f32 %v147, %v147
    %150 = vadd.xlane.f32.xlu0 %v148
    %v151 = vpop.xlane.xlu0 %150
    %152 = vadd.xlane.f32.xlu0 %v149
    %v153 = vpop.xlane.xlu0 %152
    %v154 = vmul.f32 %v151, %v143
    %v155 = vmul.f32 %v153, %v143
    %v156 = vadd.f32 %v154, 1e-05
    %v157 = vadd.f32 %v155, 1e-05
    %v158 = vrsqrt.pop %v156
    %v159 = vrsqrt.pop %v157
    %v160 = vmul.f32 %v146, %v158
    %v161 = vmul.f32 %v147, %v159
    %v162 = vld [vmem:[#allocation5] sm:$0x1]
    %v164 = vlaneseq
    %v165 = vshrl.u32 %v164, 7
    %v166 = vsub.s32 0, %v165
    %v167 = vrot.slane %v162, %v166
    %v169 = vmul.f32 %v160, %v167
    %v170 = vmul.f32 %v161, %v167
    %v171 = vld [vmem:[#allocation7] sm:$0x1]
    %v173 = vlaneseq
    %v174 = vshrl.u32 %v173, 7
    %v175 = vsub.s32 0, %v174
    %v176 = vrot.slane %v171, %v175
    %v178 = vadd.f32 %v169, %v176
    %v179 = vadd.f32 %v170, %v176
    %v180 = vpack.c.bf16 %v179, %v178
    %v181 = vld [vmem:[#allocation8] sm:$0xff]
    %v182 = vld [vmem:[#allocation8 + $0x8] sm:$0xf]
    %v183 = vld [vmem:[#allocation8 + $0xc] sm:$0xff]
    %v184 = vld [vmem:[#allocation8 + $0x14] sm:$0xf]
    %v185 = vld [vmem:[#allocation8 + $0x18] sm:$0xff]
    %v186 = vld [vmem:[#allocation8 + $0x20] sm:$0xf]
    %v187 = vld [vmem:[#allocation8 + $0x24] sm:$0xff]
    %v188 = vld [vmem:[#allocation8 + $0x2c] sm:$0xf]
    %v189 = vld [vmem:[#allocation8 + $0x30] sm:$0xff]
    %v190 = vld [vmem:[#allocation8 + $0x38] sm:$0xf]
    %v191 = vld [vmem:[#allocation8 + $0x3c] sm:$0xff]
    %v192 = vld [vmem:[#allocation8 + $0x44] sm:$0xf]
    %v193 = vld [vmem:[#allocation8 + $0x48] sm:$0xff]
    %v194 = vld [vmem:[#allocation8 + $0x50] sm:$0xf]
    %v195 = vld [vmem:[#allocation8 + $0x54] sm:$0xff]
    %v196 = vld [vmem:[#allocation8 + $0x5c] sm:$0xf]
    %v197 = vld [vmem:[#allocation8 + $0x60] sm:$0xff]
    %v198 = vld [vmem:[#allocation8 + $0x68] sm:$0xf]
    %v199 = vld [vmem:[#allocation8 + $0x6c] sm:$0xff]
    %v200 = vld [vmem:[#allocation8 + $0x74] sm:$0xf]
    %v201 = vld [vmem:[#allocation8 + $0x78] sm:$0xff]
    %v202 = vld [vmem:[#allocation8 + $0x80] sm:$0xf]
    %v203 = vld [vmem:[#allocation8 + $0x84] sm:$0xff]
    %v204 = vld [vmem:[#allocation8 + $0x8c] sm:$0xf]
    %v205 = vld [vmem:[#allocation8 + $0x90] sm:$0xff]
    %v206 = vld [vmem:[#allocation8 + $0x98] sm:$0xf]
    %v207 = vld [vmem:[#allocation8 + $0x9c] sm:$0xff]
    %v208 = vld [vmem:[#allocation8 + $0xa4] sm:$0xf]
    %v209 = vld [vmem:[#allocation8 + $0xa8] sm:$0xff]
    %v210 = vld [vmem:[#allocation8 + $0xb0] sm:$0xf]
    %v211 = vld [vmem:[#allocation8 + $0xb4] sm:$0xff]
    %v212 = vld [vmem:[#allocation8 + $0xbc] sm:$0xf]
    %v213 = vld [vmem:[%s4] sm:$0x7]
    %v215 = vlaneseq
    %v216 = vshrl.u32 %v215, 7
    %v217 = vsub.s32 0, %v216
    %v218 = vrot.slane %v213, %v217
    %v219 = vlaneseq
    %v220 = vshrl.u32 %v219, 7
    %v221 = vsub.s32 1, %v220
    %v222 = vrot.slane %v213, %v221
    %v223 = vlaneseq
    %v224 = vshrl.u32 %v223, 7
    %v225 = vsub.s32 2, %v224
    %v226 = vrot.slane %v213, %v225
    %v262 = vunpack.c.l.b16 %v181
    %v263 = vunpack.c.h.b16 %v181
    %v264 = vunpack.c.l.b16 %v182
    %v265 = vunpack.c.l.b16 %v183
    %v266 = vunpack.c.h.b16 %v183
    %v267 = vunpack.c.l.b16 %v184
    %v268 = vunpack.c.l.b16 %v185
    %v269 = vunpack.c.h.b16 %v185
    %v270 = vunpack.c.l.b16 %v186
    %v271 = vunpack.c.l.b16 %v187
    %v272 = vunpack.c.h.b16 %v187
    %v273 = vunpack.c.l.b16 %v188
    %v274 = vunpack.c.l.b16 %v189
    %v275 = vunpack.c.h.b16 %v189
    %v276 = vunpack.c.l.b16 %v190
    %v277 = vunpack.c.l.b16 %v191
    %v278 = vunpack.c.h.b16 %v191
    %v279 = vunpack.c.l.b16 %v192
    %v280 = vunpack.c.l.b16 %v193
    %v281 = vunpack.c.h.b16 %v193
    %v282 = vunpack.c.l.b16 %v194
    %v283 = vunpack.c.l.b16 %v195
    %v284 = vunpack.c.h.b16 %v195
    %v285 = vunpack.c.l.b16 %v196
    %v286 = vunpack.c.l.b16 %v197
    %v287 = vunpack.c.h.b16 %v197
    %v288 = vunpack.c.l.b16 %v198
    %v289 = vunpack.c.l.b16 %v199
    %v290 = vunpack.c.h.b16 %v199
    %v291 = vunpack.c.l.b16 %v200
    %v292 = vunpack.c.l.b16 %v201
    %v293 = vunpack.c.h.b16 %v201
    %v294 = vunpack.c.l.b16 %v202
    %v295 = vunpack.c.l.b16 %v203
    %v296 = vunpack.c.h.b16 %v203
    %v297 = vunpack.c.l.b16 %v204
    %v298 = vunpack.c.l.b16 %v205
    %v299 = vunpack.c.h.b16 %v205
    %v300 = vunpack.c.l.b16 %v206
    %v301 = vunpack.c.l.b16 %v207
    %v302 = vunpack.c.h.b16 %v207
    %v303 = vunpack.c.l.b16 %v208
    %v304 = vunpack.c.l.b16 %v209
    %v305 = vunpack.c.h.b16 %v209
    %v306 = vunpack.c.l.b16 %v210
    %v307 = vunpack.c.l.b16 %v211
    %v308 = vunpack.c.h.b16 %v211
    %v309 = vunpack.c.l.b16 %v212
    %v310 = vpack.c.b16 %v265, %v262
    %v311 = vpack.c.b16 %v266, %v263
    %v312 = vpack.c.b16 %v267, %v264
    %v313 = vpack.c.b16 %v271, %v268
    %v314 = vpack.c.b16 %v272, %v269
    %v315 = vpack.c.b16 %v273, %v270
    %v316 = vpack.c.b16 %v277, %v274
    %v317 = vpack.c.b16 %v278, %v275
    %v318 = vpack.c.b16 %v279, %v276
    %v319 = vpack.c.b16 %v283, %v280
    %v320 = vpack.c.b16 %v284, %v281
    %v321 = vpack.c.b16 %v285, %v282
    %v322 = vpack.c.b16 %v289, %v286
    %v323 = vpack.c.b16 %v290, %v287
    %v324 = vpack.c.b16 %v291, %v288
    %v325 = vpack.c.b16 %v295, %v292
    %v326 = vpack.c.b16 %v296, %v293
    %v327 = vpack.c.b16 %v297, %v294
    %v328 = vpack.c.b16 %v301, %v298
    %v329 = vpack.c.b16 %v302, %v299
    %v330 = vpack.c.b16 %v303, %v300
    %v331 = vpack.c.b16 %v307, %v304
    %v332 = vpack.c.b16 %v308, %v305
    %v333 = vpack.c.b16 %v309, %v306
    %358 = vmatprep.subr.bf16.mxu0 %v311
    %359 = vmatpush1.bf16.msra.mxu0 %v310
    %360 = vmatprep.subr.bf16.mxu0 %v314
    %361 = vmatpush1.bf16.msra.mxu0 %v313
    %362 = vmatprep.subr.bf16.mxu0 %v317
    %363 = vmatpush1.bf16.msra.mxu0 %v316
    %364 = vmatprep.subr.bf16.mxu0 %v320
    %365 = vmatpush1.bf16.msra.mxu0 %v319
    %366 = vmatprep.subr.bf16.mxu0 %v323
    %367 = vmatpush1.bf16.msra.mxu0 %v322
    %368 = vmatprep.subr.bf16.mxu0 %v326
    %369 = vmatpush1.bf16.msra.mxu0 %v325
    %370 = vmatprep.subr.bf16.mxu0 %v329
    %371 = vmatpush1.bf16.msra.mxu0 %v328
    %372 = vmatprep.subr.bf16.mxu0 %v332
    %373 = vmatpush1.bf16.msra.mxu0 %v331
    %374 = vmatprep.subr.bf16.mxu0 0
    %375 = vmatpush1.bf16.msra.mxu0 0
    %376 = vmatprep.subr.bf16.mxu0 0
    %377 = vmatpush1.bf16.msra.mxu0 0
    %378 = vmatprep.subr.bf16.mxu0 0
    %379 = vmatpush1.bf16.msra.mxu0 0
    %380 = vmatprep.subr.bf16.mxu0 0
    %381 = vmatpush1.bf16.msra.mxu0 0
    %382 = vmatprep.subr.bf16.mxu0 0
    %383 = vmatpush1.bf16.msra.mxu0 0
    %384 = vmatprep.subr.bf16.mxu0 0
    %385 = vmatpush1.bf16.msra.mxu0 0
    %386 = vmatprep.subr.bf16.mxu0 0
    %387 = vmatpush1.bf16.msra.mxu0 0
    %388 = vmatprep.subr.bf16.mxu0 0
    %389 = vmatpush1.bf16.msra.mxu0 0
    %390 = vmatprep.mubr.bf16.mxu0 0
    %391 = vmatmul.mubr.bf16.gmra.mrb[0].mxu0 %v180
    %v392 = vpop.f32.mrb[0].mxu0
    %v393 = vadd.f32 %v218, %v392
    %v394 = vpop.f32.mrb[0].mxu0
    %v395 = vadd.f32 %v222, %v394
    %v396 = vpop.f32.mrb[0].mxu0
    %v397 = vadd.f32 %v218, %v396
    %v398 = vpop.f32.mrb[0].mxu0
    %v399 = vadd.f32 %v222, %v398
    %400 = vdwg.mxu0
    %401 = vmatprep.subr.bf16.mxu0 0
    %402 = vmatpush1.bf16.msra.mxu0 %v312
    %403 = vmatprep.subr.bf16.mxu0 0
    %404 = vmatpush1.bf16.msra.mxu0 %v315
    %405 = vmatprep.subr.bf16.mxu0 0
    %406 = vmatpush1.bf16.msra.mxu0 %v318
    %407 = vmatprep.subr.bf16.mxu0 0
    %408 = vmatpush1.bf16.msra.mxu0 %v321
    %409 = vmatprep.subr.bf16.mxu0 0
    %410 = vmatpush1.bf16.msra.mxu0 %v324
    %411 = vmatprep.subr.bf16.mxu0 0
    %412 = vmatpush1.bf16.msra.mxu0 %v327
    %413 = vmatprep.subr.bf16.mxu0 0
    %414 = vmatpush1.bf16.msra.mxu0 %v330
    %415 = vmatprep.subr.bf16.mxu0 0
    %416 = vmatpush1.bf16.msra.mxu0 %v333
    %417 = vmatprep.subr.bf16.mxu0 0
    %418 = vmatpush1.bf16.msra.mxu0 0
    %419 = vmatprep.subr.bf16.mxu0 0
    %420 = vmatpush1.bf16.msra.mxu0 0
    %421 = vmatprep.subr.bf16.mxu0 0
    %422 = vmatpush1.bf16.msra.mxu0 0
    %423 = vmatprep.subr.bf16.mxu0 0
    %424 = vmatpush1.bf16.msra.mxu0 0
    %425 = vmatprep.subr.bf16.mxu0 0
    %426 = vmatpush1.bf16.msra.mxu0 0
    %427 = vmatprep.subr.bf16.mxu0 0
    %428 = vmatpush1.bf16.msra.mxu0 0
    %429 = vmatprep.subr.bf16.mxu0 0
    %430 = vmatpush1.bf16.msra.mxu0 0
    %431 = vmatprep.subr.bf16.mxu0 0
    %432 = vmatpush1.bf16.msra.mxu0 0
    %433 = vmatprep.mubr.bf16.mxu0 0
    %434 = vmatmul.mubr.bf16.gmra.mrb[0].mxu0 %v180
    %v435 = vpop.f32.mrb[0].mxu0
    %v436 = vadd.f32 %v226, %v435
    %v437 = vpop.f32.mrb[0].mxu0
    %v438 = vpop.f32.mrb[0].mxu0
    %v439 = vadd.f32 %v226, %v438
    %v440 = vpop.f32.mrb[0].mxu0
    %441 = vdwg.mxu0
    %444 = vrot.lane.b32.xlu0 %v393, 96
    %v445 = vpop.permute.xlu0 %444
    %446 = vrot.lane.b32.xlu0 %v397, 96
    %v447 = vpop.permute.xlu0 %446
    %450 = vrot.lane.b32.xlu0 %v393, 64
    %v451 = vpop.permute.xlu0 %450
    %452 = vrot.lane.b32.xlu0 %v397, 64
    %v453 = vpop.permute.xlu0 %452
    %456 = vrot.lane.b32.xlu0 %v393, 32
    %v457 = vpop.permute.xlu0 %456
    %458 = vrot.lane.b32.xlu0 %v397, 32
    %v459 = vpop.permute.xlu0 %458
    %v462 = vmul.f32 %v393, 0.17677669
    %v463 = vmul.f32 %v445, 0.17677669
    %v464 = vmul.f32 %v451, 0.17677669
    %v465 = vmul.f32 %v457, 0.17677669
    %v466 = vmul.f32 %v397, 0.17677669
    %v467 = vmul.f32 %v447, 0.17677669
    %v468 = vmul.f32 %v453, 0.17677669
    %v469 = vmul.f32 %v459, 0.17677669
    %472 = vrot.lane.b32.xlu0 %v395, 96
    %v473 = vpop.permute.xlu0 %472
    %474 = vrot.lane.b32.xlu0 %v399, 96
    %v475 = vpop.permute.xlu0 %474
    %478 = vrot.lane.b32.xlu0 %v395, 64
    %v479 = vpop.permute.xlu0 %478
    %480 = vrot.lane.b32.xlu0 %v399, 64
    %v481 = vpop.permute.xlu0 %480
    %484 = vrot.lane.b32.xlu0 %v395, 32
    %v485 = vpop.permute.xlu0 %484
    %486 = vrot.lane.b32.xlu0 %v399, 32
    %v487 = vpop.permute.xlu0 %486
    %492 = vrot.lane.b32.xlu0 %v436, 96
    %v493 = vpop.permute.xlu0 %492
    %494 = vrot.lane.b32.xlu0 %v439, 96
    %v495 = vpop.permute.xlu0 %494
    %498 = vrot.lane.b32.xlu0 %v436, 64
    %v499 = vpop.permute.xlu0 %498
    %500 = vrot.lane.b32.xlu0 %v439, 64
    %v501 = vpop.permute.xlu0 %500
    %504 = vrot.lane.b32.xlu0 %v436, 32
    %v505 = vpop.permute.xlu0 %504
    %506 = vrot.lane.b32.xlu0 %v439, 32
    %v507 = vpop.permute.xlu0 %506
    %v510 = vpack.c.bf16 %v462, %v462
    %v511 = vpack.c.bf16 %v463, %v463
    %v512 = vpack.c.bf16 %v464, %v464
    %v513 = vpack.c.bf16 %v465, %v465
    %v514 = vpack.c.bf16 %v466, %v466
    %v515 = vpack.c.bf16 %v467, %v467
    %v516 = vpack.c.bf16 %v468, %v468
    %v517 = vpack.c.bf16 %v469, %v469
    %v518 = vpack.c.bf16 %v395, %v395
    %v519 = vpack.c.bf16 %v473, %v473
    %v520 = vpack.c.bf16 %v479, %v479
    %v521 = vpack.c.bf16 %v485, %v485
    %v522 = vpack.c.bf16 %v399, %v399
    %v523 = vpack.c.bf16 %v475, %v475
    %v524 = vpack.c.bf16 %v481, %v481
    %v525 = vpack.c.bf16 %v487, %v487
    %vm526 = vcmask 261120
    %v528 = vsel %vm526, %v510, 0
    %v531 = vsel %vm526, %v518, 0
    %533 = vmatprep.subr.bf16.mxu0 0
    %534 = vmatpush1.bf16.xpose.msra.mxu0 %v531
    %535 = vmatprep.subr.bf16.mxu0 0
    %536 = vmatpush1.bf16.xpose.msra.mxu0 0
    %537 = vmatprep.subr.bf16.mxu0 0
    %538 = vmatpush1.bf16.xpose.msra.mxu0 0
    %539 = vmatprep.subr.bf16.mxu0 0
    %540 = vmatpush1.bf16.xpose.msra.mxu0 0
    %541 = vmatprep.subr.bf16.mxu0 0
    %542 = vmatpush1.bf16.xpose.msra.mxu0 0
    %543 = vmatprep.subr.bf16.mxu0 0
    %544 = vmatpush1.bf16.xpose.msra.mxu0 0
    %545 = vmatprep.subr.bf16.mxu0 0
    %546 = vmatpush1.bf16.xpose.msra.mxu0 0
    %547 = vmatprep.subr.bf16.mxu0 0
    %548 = vmatpush1.bf16.xpose.msra.mxu0 0
    %549 = vmatprep.subr.bf16.mxu0 0
    %550 = vmatpush1.bf16.xpose.msra.mxu0 0
    %551 = vmatprep.subr.bf16.mxu0 0
    %552 = vmatpush1.bf16.xpose.msra.mxu0 0
    %553 = vmatprep.subr.bf16.mxu0 0
    %554 = vmatpush1.bf16.xpose.msra.mxu0 0
    %555 = vmatprep.subr.bf16.mxu0 0
    %556 = vmatpush1.bf16.xpose.msra.mxu0 0
    %557 = vmatprep.subr.bf16.mxu0 0
    %558 = vmatpush1.bf16.xpose.msra.mxu0 0
    %559 = vmatprep.subr.bf16.mxu0 0
    %560 = vmatpush1.bf16.xpose.msra.mxu0 0
    %561 = vmatprep.subr.bf16.mxu0 0
    %562 = vmatpush1.bf16.xpose.msra.mxu0 0
    %563 = vmatprep.subr.bf16.mxu0 0
    %564 = vmatpush1.bf16.xpose.msra.mxu0 0
    %565 = vmatprep.mubr.bf16.mxu0 0
    %566 = vmatmul.mubr.bf16.gmra.mrb[0].mxu0 %v528
    %v567 = vpop.f32.mrb[0].mxu0
    %v568 = vadd.f32 0.0, %v567
    %v569 = vpop.f32.mrb[0].mxu0
    %v570 = vpop.f32.mrb[0].mxu0
    %v571 = vpop.f32.mrb[0].mxu0
    %572 = vdwg.mxu0
    %v574 = vsel %vm526, %v511, 0
    %v577 = vsel %vm526, %v519, 0
    %579 = vmatprep.subr.bf16.mxu0 0
    %580 = vmatpush1.bf16.xpose.msra.mxu0 %v577
    %581 = vmatprep.subr.bf16.mxu0 0
    %582 = vmatpush1.bf16.xpose.msra.mxu0 0
    %583 = vmatprep.subr.bf16.mxu0 0
    %584 = vmatpush1.bf16.xpose.msra.mxu0 0
    %585 = vmatprep.subr.bf16.mxu0 0
    %586 = vmatpush1.bf16.xpose.msra.mxu0 0
    %587 = vmatprep.subr.bf16.mxu0 0
    %588 = vmatpush1.bf16.xpose.msra.mxu0 0
    %589 = vmatprep.subr.bf16.mxu0 0
    %590 = vmatpush1.bf16.xpose.msra.mxu0 0
    %591 = vmatprep.subr.bf16.mxu0 0
    %592 = vmatpush1.bf16.xpose.msra.mxu0 0
    %593 = vmatprep.subr.bf16.mxu0 0
    %594 = vmatpush1.bf16.xpose.msra.mxu0 0
    %595 = vmatprep.subr.bf16.mxu0 0
    %596 = vmatpush1.bf16.xpose.msra.mxu0 0
    %597 = vmatprep.subr.bf16.mxu0 0
    %598 = vmatpush1.bf16.xpose.msra.mxu0 0
    %599 = vmatprep.subr.bf16.mxu0 0
    %600 = vmatpush1.bf16.xpose.msra.mxu0 0
    %601 = vmatprep.subr.bf16.mxu0 0
    %602 = vmatpush1.bf16.xpose.msra.mxu0 0
    %603 = vmatprep.subr.bf16.mxu0 0
    %604 = vmatpush1.bf16.xpose.msra.mxu0 0
    %605 = vmatprep.subr.bf16.mxu0 0
    %606 = vmatpush1.bf16.xpose.msra.mxu0 0
    %607 = vmatprep.subr.bf16.mxu0 0
    %608 = vmatpush1.bf16.xpose.msra.mxu0 0
    %609 = vmatprep.subr.bf16.mxu0 0
    %610 = vmatpush1.bf16.xpose.msra.mxu0 0
    %611 = vmatprep.mubr.bf16.mxu0 0
    %612 = vmatmul.mubr.bf16.gmra.mrb[0].mxu0 %v574
    %v613 = vpop.f32.mrb[0].mxu0
    %v614 = vadd.f32 0.0, %v613
    %v615 = vpop.f32.mrb[0].mxu0
    %v616 = vpop.f32.mrb[0].mxu0
    %v617 = vpop.f32.mrb[0].mxu0
    %618 = vdwg.mxu0
    %v620 = vsel %vm526, %v512, 0
    %v623 = vsel %vm526, %v520, 0
    %625 = vmatprep.subr.bf16.mxu0 0
    %626 = vmatpush1.bf16.xpose.msra.mxu0 %v623
    %627 = vmatprep.subr.bf16.mxu0 0
    %628 = vmatpush1.bf16.xpose.msra.mxu0 0
    %629 = vmatprep.subr.bf16.mxu0 0
    %630 = vmatpush1.bf16.xpose.msra.mxu0 0
    %631 = vmatprep.subr.bf16.mxu0 0
    %632 = vmatpush1.bf16.xpose.msra.mxu0 0
    %633 = vmatprep.subr.bf16.mxu0 0
    %634 = vmatpush1.bf16.xpose.msra.mxu0 0
    %635 = vmatprep.subr.bf16.mxu0 0
    %636 = vmatpush1.bf16.xpose.msra.mxu0 0
    %637 = vmatprep.subr.bf16.mxu0 0
    %638 = vmatpush1.bf16.xpose.msra.mxu0 0
    %639 = vmatprep.subr.bf16.mxu0 0
    %640 = vmatpush1.bf16.xpose.msra.mxu0 0
    %641 = vmatprep.subr.bf16.mxu0 0
    %642 = vmatpush1.bf16.xpose.msra.mxu0 0
    %643 = vmatprep.subr.bf16.mxu0 0
    %644 = vmatpush1.bf16.xpose.msra.mxu0 0
    %645 = vmatprep.subr.bf16.mxu0 0
    %646 = vmatpush1.bf16.xpose.msra.mxu0 0
    %647 = vmatprep.subr.bf16.mxu0 0
    %648 = vmatpush1.bf16.xpose.msra.mxu0 0
    %649 = vmatprep.subr.bf16.mxu0 0
    %650 = vmatpush1.bf16.xpose.msra.mxu0 0
    %651 = vmatprep.subr.bf16.mxu0 0
    %652 = vmatpush1.bf16.xpose.msra.mxu0 0
    %653 = vmatprep.subr.bf16.mxu0 0
    %654 = vmatpush1.bf16.xpose.msra.mxu0 0
    %655 = vmatprep.subr.bf16.mxu0 0
    %656 = vmatpush1.bf16.xpose.msra.mxu0 0
    %657 = vmatprep.mubr.bf16.mxu0 0
    %658 = vmatmul.mubr.bf16.gmra.mrb[0].mxu0 %v620
    %v659 = vpop.f32.mrb[0].mxu0
    %v660 = vadd.f32 0.0, %v659
    %v661 = vpop.f32.mrb[0].mxu0
    %v662 = vpop.f32.mrb[0].mxu0
    %v663 = vpop.f32.mrb[0].mxu0
    %664 = vdwg.mxu0
    %v666 = vsel %vm526, %v513, 0
    %v669 = vsel %vm526, %v521, 0
    %671 = vmatprep.subr.bf16.mxu0 0
    %672 = vmatpush1.bf16.xpose.msra.mxu0 %v669
    %673 = vmatprep.subr.bf16.mxu0 0
    %674 = vmatpush1.bf16.xpose.msra.mxu0 0
    %675 = vmatprep.subr.bf16.mxu0 0
    %676 = vmatpush1.bf16.xpose.msra.mxu0 0
    %677 = vmatprep.subr.bf16.mxu0 0
    %678 = vmatpush1.bf16.xpose.msra.mxu0 0
    %679 = vmatprep.subr.bf16.mxu0 0
    %680 = vmatpush1.bf16.xpose.msra.mxu0 0
    %681 = vmatprep.subr.bf16.mxu0 0
    %682 = vmatpush1.bf16.xpose.msra.mxu0 0
    %683 = vmatprep.subr.bf16.mxu0 0
    %684 = vmatpush1.bf16.xpose.msra.mxu0 0
    %685 = vmatprep.subr.bf16.mxu0 0
    %686 = vmatpush1.bf16.xpose.msra.mxu0 0
    %687 = vmatprep.subr.bf16.mxu0 0
    %688 = vmatpush1.bf16.xpose.msra.mxu0 0
    %689 = vmatprep.subr.bf16.mxu0 0
    %690 = vmatpush1.bf16.xpose.msra.mxu0 0
    %691 = vmatprep.subr.bf16.mxu0 0
    %692 = vmatpush1.bf16.xpose.msra.mxu0 0
    %693 = vmatprep.subr.bf16.mxu0 0
    %694 = vmatpush1.bf16.xpose.msra.mxu0 0
    %695 = vmatprep.subr.bf16.mxu0 0
    %696 = vmatpush1.bf16.xpose.msra.mxu0 0
    %697 = vmatprep.subr.bf16.mxu0 0
    %698 = vmatpush1.bf16.xpose.msra.mxu0 0
    %699 = vmatprep.subr.bf16.mxu0 0
    %700 = vmatpush1.bf16.xpose.msra.mxu0 0
    %701 = vmatprep.subr.bf16.mxu0 0
    %702 = vmatpush1.bf16.xpose.msra.mxu0 0
    %703 = vmatprep.mubr.bf16.mxu0 0
    %704 = vmatmul.mubr.bf16.gmra.mrb[0].mxu0 %v666
    %v705 = vpop.f32.mrb[0].mxu0
    %v706 = vadd.f32 0.0, %v705
    %v707 = vpop.f32.mrb[0].mxu0
    %v708 = vpop.f32.mrb[0].mxu0
    %v709 = vpop.f32.mrb[0].mxu0
    %710 = vdwg.mxu0
    %v712 = vsel %vm526, %v514, 0
    %v715 = vsel %vm526, %v522, 0
    %717 = vmatprep.subr.bf16.mxu0 0
    %718 = vmatpush1.bf16.xpose.msra.mxu0 %v715
    %719 = vmatprep.subr.bf16.mxu0 0
    %720 = vmatpush1.bf16.xpose.msra.mxu0 0
    %721 = vmatprep.subr.bf16.mxu0 0
    %722 = vmatpush1.bf16.xpose.msra.mxu0 0
    %723 = vmatprep.subr.bf16.mxu0 0
    %724 = vmatpush1.bf16.xpose.msra.mxu0 0
    %725 = vmatprep.subr.bf16.mxu0 0
    %726 = vmatpush1.bf16.xpose.msra.mxu0 0
    %727 = vmatprep.subr.bf16.mxu0 0
    %728 = vmatpush1.bf16.xpose.msra.mxu0 0
    %729 = vmatprep.subr.bf16.mxu0 0
    %730 = vmatpush1.bf16.xpose.msra.mxu0 0
    %731 = vmatprep.subr.bf16.mxu0 0
    %732 = vmatpush1.bf16.xpose.msra.mxu0 0
    %733 = vmatprep.subr.bf16.mxu0 0
    %734 = vmatpush1.bf16.xpose.msra.mxu0 0
    %735 = vmatprep.subr.bf16.mxu0 0
    %736 = vmatpush1.bf16.xpose.msra.mxu0 0
    %737 = vmatprep.subr.bf16.mxu0 0
    %738 = vmatpush1.bf16.xpose.msra.mxu0 0
    %739 = vmatprep.subr.bf16.mxu0 0
    %740 = vmatpush1.bf16.xpose.msra.mxu0 0
    %741 = vmatprep.subr.bf16.mxu0 0
    %742 = vmatpush1.bf16.xpose.msra.mxu0 0
    %743 = vmatprep.subr.bf16.mxu0 0
    %744 = vmatpush1.bf16.xpose.msra.mxu0 0
    %745 = vmatprep.subr.bf16.mxu0 0
    %746 = vmatpush1.bf16.xpose.msra.mxu0 0
    %747 = vmatprep.subr.bf16.mxu0 0
    %748 = vmatpush1.bf16.xpose.msra.mxu0 0
    %749 = vmatprep.mubr.bf16.mxu0 0
    %750 = vmatmul.mubr.bf16.gmra.mrb[0].mxu0 %v712
    %v751 = vpop.f32.mrb[0].mxu0
    %v752 = vadd.f32 0.0, %v751
    %v753 = vpop.f32.mrb[0].mxu0
    %v754 = vpop.f32.mrb[0].mxu0
    %v755 = vpop.f32.mrb[0].mxu0
    %756 = vdwg.mxu0
    %v758 = vsel %vm526, %v515, 0
    %v761 = vsel %vm526, %v523, 0
    %763 = vmatprep.subr.bf16.mxu0 0
    %764 = vmatpush1.bf16.xpose.msra.mxu0 %v761
    %765 = vmatprep.subr.bf16.mxu0 0
    %766 = vmatpush1.bf16.xpose.msra.mxu0 0
    %767 = vmatprep.subr.bf16.mxu0 0
    %768 = vmatpush1.bf16.xpose.msra.mxu0 0
    %769 = vmatprep.subr.bf16.mxu0 0
    %770 = vmatpush1.bf16.xpose.msra.mxu0 0
    %771 = vmatprep.subr.bf16.mxu0 0
    %772 = vmatpush1.bf16.xpose.msra.mxu0 0
    %773 = vmatprep.subr.bf16.mxu0 0
    %774 = vmatpush1.bf16.xpose.msra.mxu0 0
    %775 = vmatprep.subr.bf16.mxu0 0
    %776 = vmatpush1.bf16.xpose.msra.mxu0 0
    %777 = vmatprep.subr.bf16.mxu0 0
    %778 = vmatpush1.bf16.xpose.msra.mxu0 0
    %779 = vmatprep.subr.bf16.mxu0 0
    %780 = vmatpush1.bf16.xpose.msra.mxu0 0
    %781 = vmatprep.subr.bf16.mxu0 0
    %782 = vmatpush1.bf16.xpose.msra.mxu0 0
    %783 = vmatprep.subr.bf16.mxu0 0
    %784 = vmatpush1.bf16.xpose.msra.mxu0 0
    %785 = vmatprep.subr.bf16.mxu0 0
    %786 = vmatpush1.bf16.xpose.msra.mxu0 0
    %787 = vmatprep.subr.bf16.mxu0 0
    %788 = vmatpush1.bf16.xpose.msra.mxu0 0
    %789 = vmatprep.subr.bf16.mxu0 0
    %790 = vmatpush1.bf16.xpose.msra.mxu0 0
    %791 = vmatprep.subr.bf16.mxu0 0
    %792 = vmatpush1.bf16.xpose.msra.mxu0 0
    %793 = vmatprep.subr.bf16.mxu0 0
    %794 = vmatpush1.bf16.xpose.msra.mxu0 0
    %795 = vmatprep.mubr.bf16.mxu0 0
    %796 = vmatmul.mubr.bf16.gmra.mrb[0].mxu0 %v758
    %v797 = vpop.f32.mrb[0].mxu0
    %v798 = vadd.f32 0.0, %v797
    %v799 = vpop.f32.mrb[0].mxu0
    %v800 = vpop.f32.mrb[0].mxu0
    %v801 = vpop.f32.mrb[0].mxu0
    %802 = vdwg.mxu0
    %v804 = vsel %vm526, %v516, 0
    %v807 = vsel %vm526, %v524, 0
    %809 = vmatprep.subr.bf16.mxu0 0
    %810 = vmatpush1.bf16.xpose.msra.mxu0 %v807
    %811 = vmatprep.subr.bf16.mxu0 0
    %812 = vmatpush1.bf16.xpose.msra.mxu0 0
    %813 = vmatprep.subr.bf16.mxu0 0
    %814 = vmatpush1.bf16.xpose.msra.mxu0 0
    %815 = vmatprep.subr.bf16.mxu0 0
    %816 = vmatpush1.bf16.xpose.msra.mxu0 0
    %817 = vmatprep.subr.bf16.mxu0 0
    %818 = vmatpush1.bf16.xpose.msra.mxu0 0
    %819 = vmatprep.subr.bf16.mxu0 0
    %820 = vmatpush1.bf16.xpose.msra.mxu0 0
    %821 = vmatprep.subr.bf16.mxu0 0
    %822 = vmatpush1.bf16.xpose.msra.mxu0 0
    %823 = vmatprep.subr.bf16.mxu0 0
    %824 = vmatpush1.bf16.xpose.msra.mxu0 0
    %825 = vmatprep.subr.bf16.mxu0 0
    %826 = vmatpush1.bf16.xpose.msra.mxu0 0
    %827 = vmatprep.subr.bf16.mxu0 0
    %828 = vmatpush1.bf16.xpose.msra.mxu0 0
    %829 = vmatprep.subr.bf16.mxu0 0
    %830 = vmatpush1.bf16.xpose.msra.mxu0 0
    %831 = vmatprep.subr.bf16.mxu0 0
    %832 = vmatpush1.bf16.xpose.msra.mxu0 0
    %833 = vmatprep.subr.bf16.mxu0 0
    %834 = vmatpush1.bf16.xpose.msra.mxu0 0
    %835 = vmatprep.subr.bf16.mxu0 0
    %836 = vmatpush1.bf16.xpose.msra.mxu0 0
    %837 = vmatprep.subr.bf16.mxu0 0
    %838 = vmatpush1.bf16.xpose.msra.mxu0 0
    %839 = vmatprep.subr.bf16.mxu0 0
    %840 = vmatpush1.bf16.xpose.msra.mxu0 0
    %841 = vmatprep.mubr.bf16.mxu0 0
    %842 = vmatmul.mubr.bf16.gmra.mrb[0].mxu0 %v804
    %v843 = vpop.f32.mrb[0].mxu0
    %v844 = vadd.f32 0.0, %v843
    %v845 = vpop.f32.mrb[0].mxu0
    %v846 = vpop.f32.mrb[0].mxu0
    %v847 = vpop.f32.mrb[0].mxu0
    %848 = vdwg.mxu0
    %v850 = vsel %vm526, %v517, 0
    %v853 = vsel %vm526, %v525, 0
    %855 = vmatprep.subr.bf16.mxu0 0
    %856 = vmatpush1.bf16.xpose.msra.mxu0 %v853
    %857 = vmatprep.subr.bf16.mxu0 0
    %858 = vmatpush1.bf16.xpose.msra.mxu0 0
    %859 = vmatprep.subr.bf16.mxu0 0
    %860 = vmatpush1.bf16.xpose.msra.mxu0 0
    %861 = vmatprep.subr.bf16.mxu0 0
    %862 = vmatpush1.bf16.xpose.msra.mxu0 0
    %863 = vmatprep.subr.bf16.mxu0 0
    %864 = vmatpush1.bf16.xpose.msra.mxu0 0
    %865 = vmatprep.subr.bf16.mxu0 0
    %866 = vmatpush1.bf16.xpose.msra.mxu0 0
    %867 = vmatprep.subr.bf16.mxu0 0
    %868 = vmatpush1.bf16.xpose.msra.mxu0 0
    %869 = vmatprep.subr.bf16.mxu0 0
    %870 = vmatpush1.bf16.xpose.msra.mxu0 0
    %871 = vmatprep.subr.bf16.mxu0 0
    %872 = vmatpush1.bf16.xpose.msra.mxu0 0
    %873 = vmatprep.subr.bf16.mxu0 0
    %874 = vmatpush1.bf16.xpose.msra.mxu0 0
    %875 = vmatprep.subr.bf16.mxu0 0
    %876 = vmatpush1.bf16.xpose.msra.mxu0 0
    %877 = vmatprep.subr.bf16.mxu0 0
    %878 = vmatpush1.bf16.xpose.msra.mxu0 0
    %879 = vmatprep.subr.bf16.mxu0 0
    %880 = vmatpush1.bf16.xpose.msra.mxu0 0
    %881 = vmatprep.subr.bf16.mxu0 0
    %882 = vmatpush1.bf16.xpose.msra.mxu0 0
    %883 = vmatprep.subr.bf16.mxu0 0
    %884 = vmatpush1.bf16.xpose.msra.mxu0 0
    %885 = vmatprep.subr.bf16.mxu0 0
    %886 = vmatpush1.bf16.xpose.msra.mxu0 0
    %887 = vmatprep.mubr.bf16.mxu0 0
    %888 = vmatmul.mubr.bf16.gmra.mrb[0].mxu0 %v850
    %v889 = vpop.f32.mrb[0].mxu0
    %v890 = vadd.f32 0.0, %v889
    %v891 = vpop.f32.mrb[0].mxu0
    %v892 = vpop.f32.mrb[0].mxu0
    %v893 = vpop.f32.mrb[0].mxu0
    %894 = vdwg.mxu0
    %v895 = vlaneseq
    %v896 = vshrl.u32 %v895, 7
    %v897 = vlaneseq
    %v898 = vand.u32 %v897, 127
    %vm899 = vcmp.le.s32.totalorder %v898, %v896
    %v900 = vsel %vm899, 1, 0
    %vm901 = vcmp.eq.s32.totalorder %v900, 1
    %v902 = vsel %vm901, %v568, -1e+30
    %v903 = vsel %vm901, %v614, -1e+30
    %v904 = vsel %vm901, %v660, -1e+30
    %v905 = vsel %vm901, %v706, -1e+30
    %v906 = vsel %vm901, %v752, -1e+30
    %v907 = vsel %vm901, %v798, -1e+30
    %v908 = vsel %vm901, %v844, -1e+30
    %v909 = vsel %vm901, %v890, -1e+30
    %vm910 = vcmask 64512
    %v911 = vsel %vm910, %v902, -inf
    %912 = vmax.xlane.f32.xlu0 %v911
    %v913 = vpop.xlane.xlu0 %912
    %v914 = vsel %vm910, %v903, -inf
    %915 = vmax.xlane.f32.xlu0 %v914
    %v916 = vpop.xlane.xlu0 %915
    %v917 = vsel %vm910, %v904, -inf
    %918 = vmax.xlane.f32.xlu0 %v917
    %v919 = vpop.xlane.xlu0 %918
    %v920 = vsel %vm910, %v905, -inf
    %921 = vmax.xlane.f32.xlu0 %v920
    %v922 = vpop.xlane.xlu0 %921
    %v923 = vsel %vm910, %v906, -inf
    %924 = vmax.xlane.f32.xlu0 %v923
    %v925 = vpop.xlane.xlu0 %924
    %v926 = vsel %vm910, %v907, -inf
    %927 = vmax.xlane.f32.xlu0 %v926
    %v928 = vpop.xlane.xlu0 %927
    %v929 = vsel %vm910, %v908, -inf
    %930 = vmax.xlane.f32.xlu0 %v929
    %v931 = vpop.xlane.xlu0 %930
    %v932 = vsel %vm910, %v909, -inf
    %933 = vmax.xlane.f32.xlu0 %v932
    %v934 = vpop.xlane.xlu0 %933
    %v935 = vsub.f32 %v902, %v913
    %v936 = vsub.f32 %v903, %v916
    %v937 = vsub.f32 %v904, %v919
    %v938 = vsub.f32 %v905, %v922
    %v939 = vsub.f32 %v906, %v925
    %v940 = vsub.f32 %v907, %v928
    %v941 = vsub.f32 %v908, %v931
    %v942 = vsub.f32 %v909, %v934
    %v943 = vmul.f32 %v935, 1.442695
    %v944 = vpow.pop %v943
    %v945 = vmul.f32 %v936, 1.442695
    %v946 = vpow.pop %v945
    %v947 = vmul.f32 %v937, 1.442695
    %v948 = vpow.pop %v947
    %v949 = vmul.f32 %v938, 1.442695
    %v950 = vpow.pop %v949
    %v951 = vmul.f32 %v939, 1.442695
    %v952 = vpow.pop %v951
    %v953 = vmul.f32 %v940, 1.442695
    %v954 = vpow.pop %v953
    %v955 = vmul.f32 %v941, 1.442695
    %v956 = vpow.pop %v955
    %v957 = vmul.f32 %v942, 1.442695
    %v958 = vpow.pop %v957
    %v959 = vsel %vm910, %v944, 0.0
    %960 = vadd.xlane.f32.xlu0 %v959
    %v961 = vpop.xlane.xlu0 %960
    %v962 = vsel %vm910, %v946, 0.0
    %963 = vadd.xlane.f32.xlu0 %v962
    %v964 = vpop.xlane.xlu0 %963
    %v965 = vsel %vm910, %v948, 0.0
    %966 = vadd.xlane.f32.xlu0 %v965
    %v967 = vpop.xlane.xlu0 %966
    %v968 = vsel %vm910, %v950, 0.0
    %969 = vadd.xlane.f32.xlu0 %v968
    %v970 = vpop.xlane.xlu0 %969
    %v971 = vsel %vm910, %v952, 0.0
    %972 = vadd.xlane.f32.xlu0 %v971
    %v973 = vpop.xlane.xlu0 %972
    %v974 = vsel %vm910, %v954, 0.0
    %975 = vadd.xlane.f32.xlu0 %v974
    %v976 = vpop.xlane.xlu0 %975
    %v977 = vsel %vm910, %v956, 0.0
    %978 = vadd.xlane.f32.xlu0 %v977
    %v979 = vpop.xlane.xlu0 %978
    %v980 = vsel %vm910, %v958, 0.0
    %981 = vadd.xlane.f32.xlu0 %v980
    %v982 = vpop.xlane.xlu0 %981
    %v983 = vrcp.pop %v961
    %v984 = vrcp.pop %v964
    %v985 = vrcp.pop %v967
    %v986 = vrcp.pop %v970
    %v987 = vrcp.pop %v973
    %v988 = vrcp.pop %v976
    %v989 = vrcp.pop %v979
    %v990 = vrcp.pop %v982
    %v991 = vmul.f32 %v944, %v983
    %v992 = vmul.f32 %v946, %v984
    %v993 = vmul.f32 %v948, %v985
    %v994 = vmul.f32 %v950, %v986
    %v995 = vmul.f32 %v952, %v987
    %v996 = vmul.f32 %v954, %v988
    %v997 = vmul.f32 %v956, %v989
    %v998 = vmul.f32 %v958, %v990
    %v999 = vpack.c.bf16 %v991, %v991
    %v1000 = vpack.c.bf16 %v992, %v992
    %v1001 = vpack.c.bf16 %v993, %v993
    %v1002 = vpack.c.bf16 %v994, %v994
    %v1003 = vpack.c.bf16 %v995, %v995
    %v1004 = vpack.c.bf16 %v996, %v996
    %v1005 = vpack.c.bf16 %v997, %v997
    %v1006 = vpack.c.bf16 %v998, %v998
    %v1007 = vpack.c.bf16 %v436, %v436
    %v1008 = vpack.c.bf16 %v493, %v493
    %v1009 = vpack.c.bf16 %v499, %v499
    %v1010 = vpack.c.bf16 %v505, %v505
    %v1011 = vpack.c.bf16 %v439, %v439
    %v1012 = vpack.c.bf16 %v495, %v495
    %v1013 = vpack.c.bf16 %v501, %v501
    %v1014 = vpack.c.bf16 %v507, %v507
    %v1016 = vsel %vm910, %v999, 0
    %vm1018 = vcmask 1043456
    %v1020 = vsel %vm1018, %v1007, 0
    %1022 = vmatprep.subr.bf16.mxu0 0
    %1023 = vmatpush1.bf16.msra.mxu0 %v1020
    %1024 = vmatprep.subr.bf16.mxu0 0
    %1025 = vmatpush1.bf16.msra.mxu0 0
    %1026 = vmatprep.subr.bf16.mxu0 0
    %1027 = vmatpush1.bf16.msra.mxu0 0
    %1028 = vmatprep.subr.bf16.mxu0 0
    %1029 = vmatpush1.bf16.msra.mxu0 0
    %1030 = vmatprep.subr.bf16.mxu0 0
    %1031 = vmatpush1.bf16.msra.mxu0 0
    %1032 = vmatprep.subr.bf16.mxu0 0
    %1033 = vmatpush1.bf16.msra.mxu0 0
    %1034 = vmatprep.subr.bf16.mxu0 0
    %1035 = vmatpush1.bf16.msra.mxu0 0
    %1036 = vmatprep.subr.bf16.mxu0 0
    %1037 = vmatpush1.bf16.msra.mxu0 0
    %1038 = vmatprep.subr.bf16.mxu0 0
    %1039 = vmatpush1.bf16.msra.mxu0 0
    %1040 = vmatprep.subr.bf16.mxu0 0
    %1041 = vmatpush1.bf16.msra.mxu0 0
    %1042 = vmatprep.subr.bf16.mxu0 0
    %1043 = vmatpush1.bf16.msra.mxu0 0
    %1044 = vmatprep.subr.bf16.mxu0 0
    %1045 = vmatpush1.bf16.msra.mxu0 0
    %1046 = vmatprep.subr.bf16.mxu0 0
    %1047 = vmatpush1.bf16.msra.mxu0 0
    %1048 = vmatprep.subr.bf16.mxu0 0
    %1049 = vmatpush1.bf16.msra.mxu0 0
    %1050 = vmatprep.subr.bf16.mxu0 0
    %1051 = vmatpush1.bf16.msra.mxu0 0
    %1052 = vmatprep.subr.bf16.mxu0 0
    %1053 = vmatpush1.bf16.msra.mxu0 0
    %1054 = vmatprep.mubr.bf16.mxu0 0
    %1055 = vmatmul.mubr.bf16.gmra.mrb[0].mxu0 %v1016
    %v1056 = vpop.f32.mrb[0].mxu0
    %v1057 = vadd.f32 0.0, %v1056
    %v1058 = vpop.f32.mrb[0].mxu0
    %v1059 = vpop.f32.mrb[0].mxu0
    %v1060 = vpop.f32.mrb[0].mxu0
    %1061 = vdwg.mxu0
    %v1063 = vsel %vm910, %v1000, 0
    %v1066 = vsel %vm1018, %v1008, 0
    %1068 = vmatprep.subr.bf16.mxu0 0
    %1069 = vmatpush1.bf16.msra.mxu0 %v1066
    %1070 = vmatprep.subr.bf16.mxu0 0
    %1071 = vmatpush1.bf16.msra.mxu0 0
    %1072 = vmatprep.subr.bf16.mxu0 0
    %1073 = vmatpush1.bf16.msra.mxu0 0
    %1074 = vmatprep.subr.bf16.mxu0 0
    %1075 = vmatpush1.bf16.msra.mxu0 0
    %1076 = vmatprep.subr.bf16.mxu0 0
    %1077 = vmatpush1.bf16.msra.mxu0 0
    %1078 = vmatprep.subr.bf16.mxu0 0
    %1079 = vmatpush1.bf16.msra.mxu0 0
    %1080 = vmatprep.subr.bf16.mxu0 0
    %1081 = vmatpush1.bf16.msra.mxu0 0
    %1082 = vmatprep.subr.bf16.mxu0 0
    %1083 = vmatpush1.bf16.msra.mxu0 0
    %1084 = vmatprep.subr.bf16.mxu0 0
    %1085 = vmatpush1.bf16.msra.mxu0 0
    %1086 = vmatprep.subr.bf16.mxu0 0
    %1087 = vmatpush1.bf16.msra.mxu0 0
    %1088 = vmatprep.subr.bf16.mxu0 0
    %1089 = vmatpush1.bf16.msra.mxu0 0
    %1090 = vmatprep.subr.bf16.mxu0 0
    %1091 = vmatpush1.bf16.msra.mxu0 0
    %1092 = vmatprep.subr.bf16.mxu0 0
    %1093 = vmatpush1.bf16.msra.mxu0 0
    %1094 = vmatprep.subr.bf16.mxu0 0
    %1095 = vmatpush1.bf16.msra.mxu0 0
    %1096 = vmatprep.subr.bf16.mxu0 0
    %1097 = vmatpush1.bf16.msra.mxu0 0
    %1098 = vmatprep.subr.bf16.mxu0 0
    %1099 = vmatpush1.bf16.msra.mxu0 0
    %1100 = vmatprep.mubr.bf16.mxu0 0
    %1101 = vmatmul.mubr.bf16.gmra.mrb[0].mxu0 %v1063
    %v1102 = vpop.f32.mrb[0].mxu0
    %v1103 = vadd.f32 0.0, %v1102
    %v1104 = vpop.f32.mrb[0].mxu0
    %v1105 = vpop.f32.mrb[0].mxu0
    %v1106 = vpop.f32.mrb[0].mxu0
    %1107 = vdwg.mxu0
    %v1109 = vsel %vm910, %v1001, 0
    %v1112 = vsel %vm1018, %v1009, 0
    %1114 = vmatprep.subr.bf16.mxu0 0
    %1115 = vmatpush1.bf16.msra.mxu0 %v1112
    %1116 = vmatprep.subr.bf16.mxu0 0
    %1117 = vmatpush1.bf16.msra.mxu0 0
    %1118 = vmatprep.subr.bf16.mxu0 0
    %1119 = vmatpush1.bf16.msra.mxu0 0
    %1120 = vmatprep.subr.bf16.mxu0 0
    %1121 = vmatpush1.bf16.msra.mxu0 0
    %1122 = vmatprep.subr.bf16.mxu0 0
    %1123 = vmatpush1.bf16.msra.mxu0 0
    %1124 = vmatprep.subr.bf16.mxu0 0
    %1125 = vmatpush1.bf16.msra.mxu0 0
    %1126 = vmatprep.subr.bf16.mxu0 0
    %1127 = vmatpush1.bf16.msra.mxu0 0
    %1128 = vmatprep.subr.bf16.mxu0 0
    %1129 = vmatpush1.bf16.msra.mxu0 0
    %1130 = vmatprep.subr.bf16.mxu0 0
    %1131 = vmatpush1.bf16.msra.mxu0 0
    %1132 = vmatprep.subr.bf16.mxu0 0
    %1133 = vmatpush1.bf16.msra.mxu0 0
    %1134 = vmatprep.subr.bf16.mxu0 0
    %1135 = vmatpush1.bf16.msra.mxu0 0
    %1136 = vmatprep.subr.bf16.mxu0 0
    %1137 = vmatpush1.bf16.msra.mxu0 0
    %1138 = vmatprep.subr.bf16.mxu0 0
    %1139 = vmatpush1.bf16.msra.mxu0 0
    %1140 = vmatprep.subr.bf16.mxu0 0
    %1141 = vmatpush1.bf16.msra.mxu0 0
    %1142 = vmatprep.subr.bf16.mxu0 0
    %1143 = vmatpush1.bf16.msra.mxu0 0
    %1144 = vmatprep.subr.bf16.mxu0 0
    %1145 = vmatpush1.bf16.msra.mxu0 0
    %1146 = vmatprep.mubr.bf16.mxu0 0
    %1147 = vmatmul.mubr.bf16.gmra.mrb[0].mxu0 %v1109
    %v1148 = vpop.f32.mrb[0].mxu0
    %v1149 = vadd.f32 0.0, %v1148
    %v1150 = vpop.f32.mrb[0].mxu0
    %v1151 = vpop.f32.mrb[0].mxu0
    %v1152 = vpop.f32.mrb[0].mxu0
    %1153 = vdwg.mxu0
    %v1155 = vsel %vm910, %v1002, 0
    %v1158 = vsel %vm1018, %v1010, 0
    %1160 = vmatprep.subr.bf16.mxu0 0
    %1161 = vmatpush1.bf16.msra.mxu0 %v1158
    %1162 = vmatprep.subr.bf16.mxu0 0
    %1163 = vmatpush1.bf16.msra.mxu0 0
    %1164 = vmatprep.subr.bf16.mxu0 0
    %1165 = vmatpush1.bf16.msra.mxu0 0
    %1166 = vmatprep.subr.bf16.mxu0 0
    %1167 = vmatpush1.bf16.msra.mxu0 0
    %1168 = vmatprep.subr.bf16.mxu0 0
    %1169 = vmatpush1.bf16.msra.mxu0 0
    %1170 = vmatprep.subr.bf16.mxu0 0
    %1171 = vmatpush1.bf16.msra.mxu0 0
    %1172 = vmatprep.subr.bf16.mxu0 0
    %1173 = vmatpush1.bf16.msra.mxu0 0
    %1174 = vmatprep.subr.bf16.mxu0 0
    %1175 = vmatpush1.bf16.msra.mxu0 0
    %1176 = vmatprep.subr.bf16.mxu0 0
    %1177 = vmatpush1.bf16.msra.mxu0 0
    %1178 = vmatprep.subr.bf16.mxu0 0
    %1179 = vmatpush1.bf16.msra.mxu0 0
    %1180 = vmatprep.subr.bf16.mxu0 0
    %1181 = vmatpush1.bf16.msra.mxu0 0
    %1182 = vmatprep.subr.bf16.mxu0 0
    %1183 = vmatpush1.bf16.msra.mxu0 0
    %1184 = vmatprep.subr.bf16.mxu0 0
    %1185 = vmatpush1.bf16.msra.mxu0 0
    %1186 = vmatprep.subr.bf16.mxu0 0
    %1187 = vmatpush1.bf16.msra.mxu0 0
    %1188 = vmatprep.subr.bf16.mxu0 0
    %1189 = vmatpush1.bf16.msra.mxu0 0
    %1190 = vmatprep.subr.bf16.mxu0 0
    %1191 = vmatpush1.bf16.msra.mxu0 0
    %1192 = vmatprep.mubr.bf16.mxu0 0
    %1193 = vmatmul.mubr.bf16.gmra.mrb[0].mxu0 %v1155
    %v1194 = vpop.f32.mrb[0].mxu0
    %v1195 = vadd.f32 0.0, %v1194
    %v1196 = vpop.f32.mrb[0].mxu0
    %v1197 = vpop.f32.mrb[0].mxu0
    %v1198 = vpop.f32.mrb[0].mxu0
    %1199 = vdwg.mxu0
    %v1201 = vsel %vm910, %v1003, 0
    %v1204 = vsel %vm1018, %v1011, 0
    %1206 = vmatprep.subr.bf16.mxu0 0
    %1207 = vmatpush1.bf16.msra.mxu0 %v1204
    %1208 = vmatprep.subr.bf16.mxu0 0
    %1209 = vmatpush1.bf16.msra.mxu0 0
    %1210 = vmatprep.subr.bf16.mxu0 0
    %1211 = vmatpush1.bf16.msra.mxu0 0
    %1212 = vmatprep.subr.bf16.mxu0 0
    %1213 = vmatpush1.bf16.msra.mxu0 0
    %1214 = vmatprep.subr.bf16.mxu0 0
    %1215 = vmatpush1.bf16.msra.mxu0 0
    %1216 = vmatprep.subr.bf16.mxu0 0
    %1217 = vmatpush1.bf16.msra.mxu0 0
    %1218 = vmatprep.subr.bf16.mxu0 0
    %1219 = vmatpush1.bf16.msra.mxu0 0
    %1220 = vmatprep.subr.bf16.mxu0 0
    %1221 = vmatpush1.bf16.msra.mxu0 0
    %1222 = vmatprep.subr.bf16.mxu0 0
    %1223 = vmatpush1.bf16.msra.mxu0 0
    %1224 = vmatprep.subr.bf16.mxu0 0
    %1225 = vmatpush1.bf16.msra.mxu0 0
    %1226 = vmatprep.subr.bf16.mxu0 0
    %1227 = vmatpush1.bf16.msra.mxu0 0
    %1228 = vmatprep.subr.bf16.mxu0 0
    %1229 = vmatpush1.bf16.msra.mxu0 0
    %1230 = vmatprep.subr.bf16.mxu0 0
    %1231 = vmatpush1.bf16.msra.mxu0 0
    %1232 = vmatprep.subr.bf16.mxu0 0
    %1233 = vmatpush1.bf16.msra.mxu0 0
    %1234 = vmatprep.subr.bf16.mxu0 0
    %1235 = vmatpush1.bf16.msra.mxu0 0
    %1236 = vmatprep.subr.bf16.mxu0 0
    %1237 = vmatpush1.bf16.msra.mxu0 0
    %1238 = vmatprep.mubr.bf16.mxu0 0
    %1239 = vmatmul.mubr.bf16.gmra.mrb[0].mxu0 %v1201
    %v1240 = vpop.f32.mrb[0].mxu0
    %v1241 = vadd.f32 0.0, %v1240
    %v1242 = vpop.f32.mrb[0].mxu0
    %v1243 = vpop.f32.mrb[0].mxu0
    %v1244 = vpop.f32.mrb[0].mxu0
    %1245 = vdwg.mxu0
    %v1247 = vsel %vm910, %v1004, 0
    %v1250 = vsel %vm1018, %v1012, 0
    %1252 = vmatprep.subr.bf16.mxu0 0
    %1253 = vmatpush1.bf16.msra.mxu0 %v1250
    %1254 = vmatprep.subr.bf16.mxu0 0
    %1255 = vmatpush1.bf16.msra.mxu0 0
    %1256 = vmatprep.subr.bf16.mxu0 0
    %1257 = vmatpush1.bf16.msra.mxu0 0
    %1258 = vmatprep.subr.bf16.mxu0 0
    %1259 = vmatpush1.bf16.msra.mxu0 0
    %1260 = vmatprep.subr.bf16.mxu0 0
    %1261 = vmatpush1.bf16.msra.mxu0 0
    %1262 = vmatprep.subr.bf16.mxu0 0
    %1263 = vmatpush1.bf16.msra.mxu0 0
    %1264 = vmatprep.subr.bf16.mxu0 0
    %1265 = vmatpush1.bf16.msra.mxu0 0
    %1266 = vmatprep.subr.bf16.mxu0 0
    %1267 = vmatpush1.bf16.msra.mxu0 0
    %1268 = vmatprep.subr.bf16.mxu0 0
    %1269 = vmatpush1.bf16.msra.mxu0 0
    %1270 = vmatprep.subr.bf16.mxu0 0
    %1271 = vmatpush1.bf16.msra.mxu0 0
    %1272 = vmatprep.subr.bf16.mxu0 0
    %1273 = vmatpush1.bf16.msra.mxu0 0
    %1274 = vmatprep.subr.bf16.mxu0 0
    %1275 = vmatpush1.bf16.msra.mxu0 0
    %1276 = vmatprep.subr.bf16.mxu0 0
    %1277 = vmatpush1.bf16.msra.mxu0 0
    %1278 = vmatprep.subr.bf16.mxu0 0
    %1279 = vmatpush1.bf16.msra.mxu0 0
    %1280 = vmatprep.subr.bf16.mxu0 0
    %1281 = vmatpush1.bf16.msra.mxu0 0
    %1282 = vmatprep.subr.bf16.mxu0 0
    %1283 = vmatpush1.bf16.msra.mxu0 0
    %1284 = vmatprep.mubr.bf16.mxu0 0
    %1285 = vmatmul.mubr.bf16.gmra.mrb[0].mxu0 %v1247
    %v1286 = vpop.f32.mrb[0].mxu0
    %v1287 = vadd.f32 0.0, %v1286
    %v1288 = vpop.f32.mrb[0].mxu0
    %v1289 = vpop.f32.mrb[0].mxu0
    %v1290 = vpop.f32.mrb[0].mxu0
    %1291 = vdwg.mxu0
    %v1293 = vsel %vm910, %v1005, 0
    %v1296 = vsel %vm1018, %v1013, 0
    %1298 = vmatprep.subr.bf16.mxu0 0
    %1299 = vmatpush1.bf16.msra.mxu0 %v1296
    %1300 = vmatprep.subr.bf16.mxu0 0
    %1301 = vmatpush1.bf16.msra.mxu0 0
    %1302 = vmatprep.subr.bf16.mxu0 0
    %1303 = vmatpush1.bf16.msra.mxu0 0
    %1304 = vmatprep.subr.bf16.mxu0 0
    %1305 = vmatpush1.bf16.msra.mxu0 0
    %1306 = vmatprep.subr.bf16.mxu0 0
    %1307 = vmatpush1.bf16.msra.mxu0 0
    %1308 = vmatprep.subr.bf16.mxu0 0
    %1309 = vmatpush1.bf16.msra.mxu0 0
    %1310 = vmatprep.subr.bf16.mxu0 0
    %1311 = vmatpush1.bf16.msra.mxu0 0
    %1312 = vmatprep.subr.bf16.mxu0 0
    %1313 = vmatpush1.bf16.msra.mxu0 0
    %1314 = vmatprep.subr.bf16.mxu0 0
    %1315 = vmatpush1.bf16.msra.mxu0 0
    %1316 = vmatprep.subr.bf16.mxu0 0
    %1317 = vmatpush1.bf16.msra.mxu0 0
    %1318 = vmatprep.subr.bf16.mxu0 0
    %1319 = vmatpush1.bf16.msra.mxu0 0
    %1320 = vmatprep.subr.bf16.mxu0 0
    %1321 = vmatpush1.bf16.msra.mxu0 0
    %1322 = vmatprep.subr.bf16.mxu0 0
    %1323 = vmatpush1.bf16.msra.mxu0 0
    %1324 = vmatprep.subr.bf16.mxu0 0
    %1325 = vmatpush1.bf16.msra.mxu0 0
    %1326 = vmatprep.subr.bf16.mxu0 0
    %1327 = vmatpush1.bf16.msra.mxu0 0
    %1328 = vmatprep.subr.bf16.mxu0 0
    %1329 = vmatpush1.bf16.msra.mxu0 0
    %1330 = vmatprep.mubr.bf16.mxu0 0
    %1331 = vmatmul.mubr.bf16.gmra.mrb[0].mxu0 %v1293
    %v1332 = vpop.f32.mrb[0].mxu0
    %v1333 = vadd.f32 0.0, %v1332
    %v1334 = vpop.f32.mrb[0].mxu0
    %v1335 = vpop.f32.mrb[0].mxu0
    %v1336 = vpop.f32.mrb[0].mxu0
    %1337 = vdwg.mxu0
    %v1339 = vsel %vm910, %v1006, 0
    %v1342 = vsel %vm1018, %v1014, 0
    %1344 = vmatprep.subr.bf16.mxu0 0
    %1345 = vmatpush1.bf16.msra.mxu0 %v1342
    %1346 = vmatprep.subr.bf16.mxu0 0
    %1347 = vmatpush1.bf16.msra.mxu0 0
    %1348 = vmatprep.subr.bf16.mxu0 0
    %1349 = vmatpush1.bf16.msra.mxu0 0
    %1350 = vmatprep.subr.bf16.mxu0 0
    %1351 = vmatpush1.bf16.msra.mxu0 0
    %1352 = vmatprep.subr.bf16.mxu0 0
    %1353 = vmatpush1.bf16.msra.mxu0 0
    %1354 = vmatprep.subr.bf16.mxu0 0
    %1355 = vmatpush1.bf16.msra.mxu0 0
    %1356 = vmatprep.subr.bf16.mxu0 0
    %1357 = vmatpush1.bf16.msra.mxu0 0
    %1358 = vmatprep.subr.bf16.mxu0 0
    %1359 = vmatpush1.bf16.msra.mxu0 0
    %1360 = vmatprep.subr.bf16.mxu0 0
    %1361 = vmatpush1.bf16.msra.mxu0 0
    %1362 = vmatprep.subr.bf16.mxu0 0
    %1363 = vmatpush1.bf16.msra.mxu0 0
    %1364 = vmatprep.subr.bf16.mxu0 0
    %1365 = vmatpush1.bf16.msra.mxu0 0
    %1366 = vmatprep.subr.bf16.mxu0 0
    %1367 = vmatpush1.bf16.msra.mxu0 0
    %1368 = vmatprep.subr.bf16.mxu0 0
    %1369 = vmatpush1.bf16.msra.mxu0 0
    %1370 = vmatprep.subr.bf16.mxu0 0
    %1371 = vmatpush1.bf16.msra.mxu0 0
    %1372 = vmatprep.subr.bf16.mxu0 0
    %1373 = vmatpush1.bf16.msra.mxu0 0
    %1374 = vmatprep.subr.bf16.mxu0 0
    %1375 = vmatpush1.bf16.msra.mxu0 0
    %1376 = vmatprep.mubr.bf16.mxu0 0
    %1377 = vmatmul.mubr.bf16.gmra.mrb[0].mxu0 %v1339
    %v1378 = vpop.f32.mrb[0].mxu0
    %v1379 = vadd.f32 0.0, %v1378
    %v1380 = vpop.f32.mrb[0].mxu0
    %v1381 = vpop.f32.mrb[0].mxu0
    %v1382 = vpop.f32.mrb[0].mxu0
    %1383 = vdwg.mxu0
    %1386 = vrot.lane.b32.xlu0 %v1103, 32
    %v1387 = vpop.permute.xlu0 %1386
    %1388 = vrot.lane.b32.xlu0 %v1287, 32
    %v1389 = vpop.permute.xlu0 %1388
    %1394 = vrot.lane.b32.xlu0 %v1149, 64
    %v1395 = vpop.permute.xlu0 %1394
    %1396 = vrot.lane.b32.xlu0 %v1333, 64
    %v1397 = vpop.permute.xlu0 %1396
    %1402 = vrot.lane.b32.xlu0 %v1195, 96
    %v1403 = vpop.permute.xlu0 %1402
    %1404 = vrot.lane.b32.xlu0 %v1379, 96
    %v1405 = vpop.permute.xlu0 %1404
    %v1408 = vsel %vm526, %v1057, %v1387
    %v1409 = vsel %vm526, %v1241, %v1389
    %vm1410 = vcmask 523264
    %v1411 = vsel %vm1410, %v1408, %v1395
    %v1412 = vsel %vm1410, %v1409, %v1397
    %vm1413 = vcmask 785408
    %v1414 = vsel %vm1413, %v1411, %v1403
    %v1415 = vsel %vm1413, %v1412, %v1405
    %v1416 = vpack.c.bf16 %v1415, %v1414
    %v1417 = vld [vmem:[#allocation10] sm:$0xf]
    %v1418 = vld [vmem:[#allocation10 + $0x4] sm:$0xf]
    %v1419 = vld [vmem:[#allocation10 + $0x8] sm:$0xf]
    %v1420 = vld [vmem:[#allocation10 + $0xc] sm:$0xf]
    %v1421 = vld [vmem:[#allocation10 + $0x10] sm:$0xf]
    %v1422 = vld [vmem:[#allocation10 + $0x14] sm:$0xf]
    %v1423 = vld [vmem:[#allocation10 + $0x18] sm:$0xf]
    %v1424 = vld [vmem:[#allocation10 + $0x1c] sm:$0xf]
    %v1425 = vld [vmem:[#allocation10 + $0x20] sm:$0xf]
    %v1426 = vld [vmem:[#allocation10 + $0x24] sm:$0xf]
    %v1427 = vld [vmem:[#allocation10 + $0x28] sm:$0xf]
    %v1428 = vld [vmem:[#allocation10 + $0x2c] sm:$0xf]
    %v1429 = vld [vmem:[#allocation10 + $0x30] sm:$0xf]
    %v1430 = vld [vmem:[#allocation10 + $0x34] sm:$0xf]
    %v1431 = vld [vmem:[#allocation10 + $0x38] sm:$0xf]
    %v1432 = vld [vmem:[#allocation10 + $0x3c] sm:$0xf]
    %v1433 = vld [vmem:[%s6] sm:$0x1]
    %v1435 = vlaneseq
    %v1436 = vshrl.u32 %v1435, 7
    %v1437 = vsub.s32 0, %v1436
    %v1438 = vrot.slane %v1433, %v1437
    %v1456 = vunpack.c.l.b16 %v1417
    %v1457 = vunpack.c.l.b16 %v1418
    %v1458 = vunpack.c.l.b16 %v1419
    %v1459 = vunpack.c.l.b16 %v1420
    %v1460 = vunpack.c.l.b16 %v1421
    %v1461 = vunpack.c.l.b16 %v1422
    %v1462 = vunpack.c.l.b16 %v1423
    %v1463 = vunpack.c.l.b16 %v1424
    %v1464 = vunpack.c.l.b16 %v1425
    %v1465 = vunpack.c.l.b16 %v1426
    %v1466 = vunpack.c.l.b16 %v1427
    %v1467 = vunpack.c.l.b16 %v1428
    %v1468 = vunpack.c.l.b16 %v1429
    %v1469 = vunpack.c.l.b16 %v1430
    %v1470 = vunpack.c.l.b16 %v1431
    %v1471 = vunpack.c.l.b16 %v1432
    %v1472 = vpack.c.b16 %v1457, %v1456
    %v1473 = vpack.c.b16 %v1459, %v1458
    %v1474 = vpack.c.b16 %v1461, %v1460
    %v1475 = vpack.c.b16 %v1463, %v1462
    %v1476 = vpack.c.b16 %v1465, %v1464
    %v1477 = vpack.c.b16 %v1467, %v1466
    %v1478 = vpack.c.b16 %v1469, %v1468
    %v1479 = vpack.c.b16 %v1471, %v1470
    %1488 = vmatprep.subr.bf16.mxu0 0
    %1489 = vmatpush1.bf16.msra.mxu0 %v1472
    %1490 = vmatprep.subr.bf16.mxu0 0
    %1491 = vmatpush1.bf16.msra.mxu0 %v1473
    %1492 = vmatprep.subr.bf16.mxu0 0
    %1493 = vmatpush1.bf16.msra.mxu0 %v1474
    %1494 = vmatprep.subr.bf16.mxu0 0
    %1495 = vmatpush1.bf16.msra.mxu0 %v1475
    %1496 = vmatprep.subr.bf16.mxu0 0
    %1497 = vmatpush1.bf16.msra.mxu0 %v1476
    %1498 = vmatprep.subr.bf16.mxu0 0
    %1499 = vmatpush1.bf16.msra.mxu0 %v1477
    %1500 = vmatprep.subr.bf16.mxu0 0
    %1501 = vmatpush1.bf16.msra.mxu0 %v1478
    %1502 = vmatprep.subr.bf16.mxu0 0
    %1503 = vmatpush1.bf16.msra.mxu0 %v1479
    %1504 = vmatprep.subr.bf16.mxu0 0
    %1505 = vmatpush1.bf16.msra.mxu0 0
    %1506 = vmatprep.subr.bf16.mxu0 0
    %1507 = vmatpush1.bf16.msra.mxu0 0
    %1508 = vmatprep.subr.bf16.mxu0 0
    %1509 = vmatpush1.bf16.msra.mxu0 0
    %1510 = vmatprep.subr.bf16.mxu0 0
    %1511 = vmatpush1.bf16.msra.mxu0 0
    %1512 = vmatprep.subr.bf16.mxu0 0
    %1513 = vmatpush1.bf16.msra.mxu0 0
    %1514 = vmatprep.subr.bf16.mxu0 0
    %1515 = vmatpush1.bf16.msra.mxu0 0
    %1516 = vmatprep.subr.bf16.mxu0 0
    %1517 = vmatpush1.bf16.msra.mxu0 0
    %1518 = vmatprep.subr.bf16.mxu0 0
    %1519 = vmatpush1.bf16.msra.mxu0 0
    %1520 = vmatprep.mubr.bf16.mxu0 0
    %1521 = vmatmul.mubr.bf16.gmra.mrb[0].mxu0 %v1416
    %v1522 = vpop.f32.mrb[0].mxu0
    %v1523 = vadd.f32 %v1438, %v1522
    %v1524 = vpop.f32.mrb[0].mxu0
    %v1525 = vpop.f32.mrb[0].mxu0
    %v1526 = vadd.f32 %v1438, %v1525
    %v1527 = vpop.f32.mrb[0].mxu0
    %1528 = vdwg.mxu0
    %v1529 = vadd.f32 %v137, %v1523
    %v1530 = vadd.f32 %v138, %v1526
    %1531 = vadd.xlane.f32.xlu0 %v1529
    %v1532 = vpop.xlane.xlu0 %1531
    %1533 = vadd.xlane.f32.xlu0 %v1530
    %v1534 = vpop.xlane.xlu0 %1533
    %v1535 = vmul.f32 %v1532, %v143
    %v1536 = vmul.f32 %v1534, %v143
    %v1537 = vsub.f32 %v1529, %v1535
    %v1538 = vsub.f32 %v1530, %v1536
    %v1539 = vmul.f32 %v1537, %v1537
    %v1540 = vmul.f32 %v1538, %v1538
    %1541 = vadd.xlane.f32.xlu0 %v1539
    %v1542 = vpop.xlane.xlu0 %1541
    %1543 = vadd.xlane.f32.xlu0 %v1540
    %v1544 = vpop.xlane.xlu0 %1543
    %v1545 = vmul.f32 %v1542, %v143
    %v1546 = vmul.f32 %v1544, %v143
    %v1547 = vadd.f32 %v1545, 1e-05
    %v1548 = vadd.f32 %v1546, 1e-05
    %v1549 = vrsqrt.pop %v1547
    %v1550 = vrsqrt.pop %v1548
    %v1551 = vmul.f32 %v1537, %v1549
    %v1552 = vmul.f32 %v1538, %v1550
    %v1553 = vld [vmem:[%s7] sm:$0x1]
    %v1555 = vlaneseq
    %v1556 = vshrl.u32 %v1555, 7
    %v1557 = vsub.s32 0, %v1556
    %v1558 = vrot.slane %v1553, %v1557
    %v1560 = vmul.f32 %v1551, %v1558
    %v1561 = vmul.f32 %v1552, %v1558
    %v1562 = vld [vmem:[%s8] sm:$0x1]
    %v1564 = vlaneseq
    %v1565 = vshrl.u32 %v1564, 7
    %v1566 = vsub.s32 0, %v1565
    %v1567 = vrot.slane %v1562, %v1566
    %v1569 = vadd.f32 %v1560, %v1567
    %v1570 = vadd.f32 %v1561, %v1567
    %v1571 = vpack.c.bf16 %v1570, %v1569
    %v1572 = vld [vmem:[#allocation11] sm:$0xff]
    %v1573 = vld [vmem:[#allocation11 + $0x8] sm:$0xff]
    %v1574 = vld [vmem:[#allocation11 + $0x10] sm:$0xff]
    %v1575 = vld [vmem:[#allocation11 + $0x18] sm:$0xff]
    %v1576 = vld [vmem:[#allocation11 + $0x20] sm:$0xff]
    %v1577 = vld [vmem:[#allocation11 + $0x28] sm:$0xff]
    %v1578 = vld [vmem:[#allocation11 + $0x30] sm:$0xff]
    %v1579 = vld [vmem:[#allocation11 + $0x38] sm:$0xff]
    %v1580 = vld [vmem:[#allocation11 + $0x40] sm:$0xff]
    %v1581 = vld [vmem:[#allocation11 + $0x48] sm:$0xff]
    %v1582 = vld [vmem:[#allocation11 + $0x50] sm:$0xff]
    %v1583 = vld [vmem:[#allocation11 + $0x58] sm:$0xff]
    %v1584 = vld [vmem:[#allocation11 + $0x60] sm:$0xff]
    %v1585 = vld [vmem:[#allocation11 + $0x68] sm:$0xff]
    %v1586 = vld [vmem:[#allocation11 + $0x70] sm:$0xff]
    %v1587 = vld [vmem:[#allocation11 + $0x78] sm:$0xff]
    %v1588 = vld [vmem:[#allocation11 + $0x80] sm:$0xff]
    %v1589 = vld [vmem:[#allocation11 + $0x88] sm:$0xff]
    %v1590 = vld [vmem:[#allocation11 + $0x90] sm:$0xff]
    %v1591 = vld [vmem:[#allocation11 + $0x98] sm:$0xff]
    %v1592 = vld [vmem:[#allocation11 + $0xa0] sm:$0xff]
    %v1593 = vld [vmem:[#allocation11 + $0xa8] sm:$0xff]
    %v1594 = vld [vmem:[#allocation11 + $0xb0] sm:$0xff]
    %v1595 = vld [vmem:[#allocation11 + $0xb8] sm:$0xff]
    %v1596 = vld [vmem:[#allocation11 + $0xc0] sm:$0xff]
    %v1597 = vld [vmem:[#allocation11 + $0xc8] sm:$0xff]
    %v1598 = vld [vmem:[#allocation11 + $0xd0] sm:$0xff]
    %v1599 = vld [vmem:[#allocation11 + $0xd8] sm:$0xff]
    %v1600 = vld [vmem:[#allocation11 + $0xe0] sm:$0xff]
    %v1601 = vld [vmem:[#allocation11 + $0xe8] sm:$0xff]
    %v1602 = vld [vmem:[#allocation11 + $0xf0] sm:$0xff]
    %v1603 = vld [vmem:[#allocation11 + $0xf8] sm:$0xff]
    %v1604 = vld [vmem:[%s10] sm:$0xf]
    %v1606 = vlaneseq
    %v1607 = vshrl.u32 %v1606, 7
    %v1608 = vsub.s32 0, %v1607
    %v1609 = vrot.slane %v1604, %v1608
    %v1610 = vlaneseq
    %v1611 = vshrl.u32 %v1610, 7
    %v1612 = vsub.s32 1, %v1611
    %v1613 = vrot.slane %v1604, %v1612
    %v1614 = vlaneseq
    %v1615 = vshrl.u32 %v1614, 7
    %v1616 = vsub.s32 2, %v1615
    %v1617 = vrot.slane %v1604, %v1616
    %v1618 = vlaneseq
    %v1619 = vshrl.u32 %v1618, 7
    %v1620 = vsub.s32 3, %v1619
    %v1621 = vrot.slane %v1604, %v1620
    %v1658 = vunpack.c.l.b16 %v1572
    %v1659 = vunpack.c.h.b16 %v1572
    %v1660 = vunpack.c.l.b16 %v1573
    %v1661 = vunpack.c.h.b16 %v1573
    %v1662 = vunpack.c.l.b16 %v1574
    %v1663 = vunpack.c.h.b16 %v1574
    %v1664 = vunpack.c.l.b16 %v1575
    %v1665 = vunpack.c.h.b16 %v1575
    %v1666 = vunpack.c.l.b16 %v1576
    %v1667 = vunpack.c.h.b16 %v1576
    %v1668 = vunpack.c.l.b16 %v1577
    %v1669 = vunpack.c.h.b16 %v1577
    %v1670 = vunpack.c.l.b16 %v1578
    %v1671 = vunpack.c.h.b16 %v1578
    %v1672 = vunpack.c.l.b16 %v1579
    %v1673 = vunpack.c.h.b16 %v1579
    %v1674 = vunpack.c.l.b16 %v1580
    %v1675 = vunpack.c.h.b16 %v1580
    %v1676 = vunpack.c.l.b16 %v1581
    %v1677 = vunpack.c.h.b16 %v1581
    %v1678 = vunpack.c.l.b16 %v1582
    %v1679 = vunpack.c.h.b16 %v1582
    %v1680 = vunpack.c.l.b16 %v1583
    %v1681 = vunpack.c.h.b16 %v1583
    %v1682 = vunpack.c.l.b16 %v1584
    %v1683 = vunpack.c.h.b16 %v1584
    %v1684 = vunpack.c.l.b16 %v1585
    %v1685 = vunpack.c.h.b16 %v1585
    %v1686 = vunpack.c.l.b16 %v1586
    %v1687 = vunpack.c.h.b16 %v1586
    %v1688 = vunpack.c.l.b16 %v1587
    %v1689 = vunpack.c.h.b16 %v1587
    %v1690 = vunpack.c.l.b16 %v1588
    %v1691 = vunpack.c.h.b16 %v1588
    %v1692 = vunpack.c.l.b16 %v1589
    %v1693 = vunpack.c.h.b16 %v1589
    %v1694 = vunpack.c.l.b16 %v1590
    %v1695 = vunpack.c.h.b16 %v1590
    %v1696 = vunpack.c.l.b16 %v1591
    %v1697 = vunpack.c.h.b16 %v1591
    %v1698 = vunpack.c.l.b16 %v1592
    %v1699 = vunpack.c.h.b16 %v1592
    %v1700 = vunpack.c.l.b16 %v1593
    %v1701 = vunpack.c.h.b16 %v1593
    %v1702 = vunpack.c.l.b16 %v1594
    %v1703 = vunpack.c.h.b16 %v1594
    %v1704 = vunpack.c.l.b16 %v1595
    %v1705 = vunpack.c.h.b16 %v1595
    %v1706 = vunpack.c.l.b16 %v1596
    %v1707 = vunpack.c.h.b16 %v1596
    %v1708 = vunpack.c.l.b16 %v1597
    %v1709 = vunpack.c.h.b16 %v1597
    %v1710 = vunpack.c.l.b16 %v1598
    %v1711 = vunpack.c.h.b16 %v1598
    %v1712 = vunpack.c.l.b16 %v1599
    %v1713 = vunpack.c.h.b16 %v1599
    %v1714 = vunpack.c.l.b16 %v1600
    %v1715 = vunpack.c.h.b16 %v1600
    %v1716 = vunpack.c.l.b16 %v1601
    %v1717 = vunpack.c.h.b16 %v1601
    %v1718 = vunpack.c.l.b16 %v1602
    %v1719 = vunpack.c.h.b16 %v1602
    %v1720 = vunpack.c.l.b16 %v1603
    %v1721 = vunpack.c.h.b16 %v1603
    %v1722 = vpack.c.b16 %v1662, %v1658
    %v1723 = vpack.c.b16 %v1663, %v1659
    %v1724 = vpack.c.b16 %v1664, %v1660
    %v1725 = vpack.c.b16 %v1665, %v1661
    %v1726 = vpack.c.b16 %v1670, %v1666
    %v1727 = vpack.c.b16 %v1671, %v1667
    %v1728 = vpack.c.b16 %v1672, %v1668
    %v1729 = vpack.c.b16 %v1673, %v1669
    %v1730 = vpack.c.b16 %v1678, %v1674
    %v1731 = vpack.c.b16 %v1679, %v1675
    %v1732 = vpack.c.b16 %v1680, %v1676
    %v1733 = vpack.c.b16 %v1681, %v1677
    %v1734 = vpack.c.b16 %v1686, %v1682
    %v1735 = vpack.c.b16 %v1687, %v1683
    %v1736 = vpack.c.b16 %v1688, %v1684
    %v1737 = vpack.c.b16 %v1689, %v1685
    %v1738 = vpack.c.b16 %v1694, %v1690
    %v1739 = vpack.c.b16 %v1695, %v1691
    %v1740 = vpack.c.b16 %v1696, %v1692
    %v1741 = vpack.c.b16 %v1697, %v1693
    %v1742 = vpack.c.b16 %v1702, %v1698
    %v1743 = vpack.c.b16 %v1703, %v1699
    %v1744 = vpack.c.b16 %v1704, %v1700
    %v1745 = vpack.c.b16 %v1705, %v1701
    %v1746 = vpack.c.b16 %v1710, %v1706
    %v1747 = vpack.c.b16 %v1711, %v1707
    %v1748 = vpack.c.b16 %v1712, %v1708
    %v1749 = vpack.c.b16 %v1713, %v1709
    %v1750 = vpack.c.b16 %v1718, %v1714
    %v1751 = vpack.c.b16 %v1719, %v1715
    %v1752 = vpack.c.b16 %v1720, %v1716
    %v1753 = vpack.c.b16 %v1721, %v1717
    %1786 = vmatprep.subr.bf16.mxu0 %v1723
    %1787 = vmatpush1.bf16.msra.mxu0 %v1722
    %1788 = vmatprep.subr.bf16.mxu0 %v1727
    %1789 = vmatpush1.bf16.msra.mxu0 %v1726
    %1790 = vmatprep.subr.bf16.mxu0 %v1731
    %1791 = vmatpush1.bf16.msra.mxu0 %v1730
    %1792 = vmatprep.subr.bf16.mxu0 %v1735
    %1793 = vmatpush1.bf16.msra.mxu0 %v1734
    %1794 = vmatprep.subr.bf16.mxu0 %v1739
    %1795 = vmatpush1.bf16.msra.mxu0 %v1738
    %1796 = vmatprep.subr.bf16.mxu0 %v1743
    %1797 = vmatpush1.bf16.msra.mxu0 %v1742
    %1798 = vmatprep.subr.bf16.mxu0 %v1747
    %1799 = vmatpush1.bf16.msra.mxu0 %v1746
    %1800 = vmatprep.subr.bf16.mxu0 %v1751
    %1801 = vmatpush1.bf16.msra.mxu0 %v1750
    %1802 = vmatprep.subr.bf16.mxu0 0
    %1803 = vmatpush1.bf16.msra.mxu0 0
    %1804 = vmatprep.subr.bf16.mxu0 0
    %1805 = vmatpush1.bf16.msra.mxu0 0
    %1806 = vmatprep.subr.bf16.mxu0 0
    %1807 = vmatpush1.bf16.msra.mxu0 0
    %1808 = vmatprep.subr.bf16.mxu0 0
    %1809 = vmatpush1.bf16.msra.mxu0 0
    %1810 = vmatprep.subr.bf16.mxu0 0
    %1811 = vmatpush1.bf16.msra.mxu0 0
    %1812 = vmatprep.subr.bf16.mxu0 0
    %1813 = vmatpush1.bf16.msra.mxu0 0
    %1814 = vmatprep.subr.bf16.mxu0 0
    %1815 = vmatpush1.bf16.msra.mxu0 0
    %1816 = vmatprep.subr.bf16.mxu0 0
    %1817 = vmatpush1.bf16.msra.mxu0 0
    %1818 = vmatprep.mubr.bf16.mxu0 0
    %1819 = vmatmul.mubr.bf16.gmra.mrb[0].mxu0 %v1571
    %v1820 = vpop.f32.mrb[0].mxu0
    %v1821 = vadd.f32 %v1609, %v1820
    %v1822 = vpop.f32.mrb[0].mxu0
    %v1823 = vadd.f32 %v1613, %v1822
    %v1824 = vpop.f32.mrb[0].mxu0
    %v1825 = vadd.f32 %v1609, %v1824
    %v1826 = vpop.f32.mrb[0].mxu0
    %v1827 = vadd.f32 %v1613, %v1826
    %1828 = vdwg.mxu0
    %1829 = vmatprep.subr.bf16.mxu0 %v1725
    %1830 = vmatpush1.bf16.msra.mxu0 %v1724
    %1831 = vmatprep.subr.bf16.mxu0 %v1729
    %1832 = vmatpush1.bf16.msra.mxu0 %v1728
    %1833 = vmatprep.subr.bf16.mxu0 %v1733
    %1834 = vmatpush1.bf16.msra.mxu0 %v1732
    %1835 = vmatprep.subr.bf16.mxu0 %v1737
    %1836 = vmatpush1.bf16.msra.mxu0 %v1736
    %1837 = vmatprep.subr.bf16.mxu0 %v1741
    %1838 = vmatpush1.bf16.msra.mxu0 %v1740
    %1839 = vmatprep.subr.bf16.mxu0 %v1745
    %1840 = vmatpush1.bf16.msra.mxu0 %v1744
    %1841 = vmatprep.subr.bf16.mxu0 %v1749
    %1842 = vmatpush1.bf16.msra.mxu0 %v1748
    %1843 = vmatprep.subr.bf16.mxu0 %v1753
    %1844 = vmatpush1.bf16.msra.mxu0 %v1752
    %1845 = vmatprep.subr.bf16.mxu0 0
    %1846 = vmatpush1.bf16.msra.mxu0 0
    %1847 = vmatprep.subr.bf16.mxu0 0
    %1848 = vmatpush1.bf16.msra.mxu0 0
    %1849 = vmatprep.subr.bf16.mxu0 0
    %1850 = vmatpush1.bf16.msra.mxu0 0
    %1851 = vmatprep.subr.bf16.mxu0 0
    %1852 = vmatpush1.bf16.msra.mxu0 0
    %1853 = vmatprep.subr.bf16.mxu0 0
    %1854 = vmatpush1.bf16.msra.mxu0 0
    %1855 = vmatprep.subr.bf16.mxu0 0
    %1856 = vmatpush1.bf16.msra.mxu0 0
    %1857 = vmatprep.subr.bf16.mxu0 0
    %1858 = vmatpush1.bf16.msra.mxu0 0
    %1859 = vmatprep.subr.bf16.mxu0 0
    %1860 = vmatpush1.bf16.msra.mxu0 0
    %1861 = vmatprep.mubr.bf16.mxu0 0
    %1862 = vmatmul.mubr.bf16.gmra.mrb[0].mxu0 %v1571
    %v1863 = vpop.f32.mrb[0].mxu0
    %v1864 = vadd.f32 %v1617, %v1863
    %v1865 = vpop.f32.mrb[0].mxu0
    %v1866 = vadd.f32 %v1621, %v1865
    %v1867 = vpop.f32.mrb[0].mxu0
    %v1868 = vadd.f32 %v1617, %v1867
    %v1869 = vpop.f32.mrb[0].mxu0
    %v1870 = vadd.f32 %v1621, %v1869
    %1871 = vdwg.mxu0
    %v1872 = vmul.f32 %v1821, 0.5
    %v1873 = vmul.f32 %v1823, 0.5
    %v1874 = vmul.f32 %v1864, 0.5
    %v1875 = vmul.f32 %v1866, 0.5
    %v1876 = vmul.f32 %v1825, 0.5
    %v1877 = vmul.f32 %v1827, 0.5
    %v1878 = vmul.f32 %v1868, 0.5
    %v1879 = vmul.f32 %v1870, 0.5
    %v1880 = vmul.f32 %v1821, 0.044715
    %v1881 = vmul.f32 %v1823, 0.044715
    %v1882 = vmul.f32 %v1864, 0.044715
    %v1883 = vmul.f32 %v1866, 0.044715
    %v1884 = vmul.f32 %v1825, 0.044715
    %v1885 = vmul.f32 %v1827, 0.044715
    %v1886 = vmul.f32 %v1868, 0.044715
    %v1887 = vmul.f32 %v1870, 0.044715
    %v1888 = vmul.f32 %v1880, %v1821
    %v1889 = vmul.f32 %v1881, %v1823
    %v1890 = vmul.f32 %v1882, %v1864
    %v1891 = vmul.f32 %v1883, %v1866
    %v1892 = vmul.f32 %v1884, %v1825
    %v1893 = vmul.f32 %v1885, %v1827
    %v1894 = vmul.f32 %v1886, %v1868
    %v1895 = vmul.f32 %v1887, %v1870
    %v1896 = vmul.f32 %v1888, %v1821
    %v1897 = vmul.f32 %v1889, %v1823
    %v1898 = vmul.f32 %v1890, %v1864
    %v1899 = vmul.f32 %v1891, %v1866
    %v1900 = vmul.f32 %v1892, %v1825
    %v1901 = vmul.f32 %v1893, %v1827
    %v1902 = vmul.f32 %v1894, %v1868
    %v1903 = vmul.f32 %v1895, %v1870
    %v1904 = vadd.f32 %v1821, %v1896
    %v1905 = vadd.f32 %v1823, %v1897
    %v1906 = vadd.f32 %v1864, %v1898
    %v1907 = vadd.f32 %v1866, %v1899
    %v1908 = vadd.f32 %v1825, %v1900
    %v1909 = vadd.f32 %v1827, %v1901
    %v1910 = vadd.f32 %v1868, %v1902
    %v1911 = vadd.f32 %v1870, %v1903
    %v1912 = vmul.f32 %v1904, 0.7978846
    %v1913 = vmul.f32 %v1905, 0.7978846
    %v1914 = vmul.f32 %v1906, 0.7978846
    %v1915 = vmul.f32 %v1907, 0.7978846
    %v1916 = vmul.f32 %v1908, 0.7978846
    %v1917 = vmul.f32 %v1909, 0.7978846
    %v1918 = vmul.f32 %v1910, 0.7978846
    %v1919 = vmul.f32 %v1911, 0.7978846
    %v1920 = vtanh.pop %v1912
    %v1921 = vtanh.pop %v1913
    %v1922 = vtanh.pop %v1914
    %v1923 = vtanh.pop %v1915
    %v1924 = vtanh.pop %v1916
    %v1925 = vtanh.pop %v1917
    %v1926 = vtanh.pop %v1918
    %v1927 = vtanh.pop %v1919
    %v1928 = vadd.f32 %v1920, 1.0
    %v1929 = vadd.f32 %v1921, 1.0
    %v1930 = vadd.f32 %v1922, 1.0
    %v1931 = vadd.f32 %v1923, 1.0
    %v1932 = vadd.f32 %v1924, 1.0
    %v1933 = vadd.f32 %v1925, 1.0
    %v1934 = vadd.f32 %v1926, 1.0
    %v1935 = vadd.f32 %v1927, 1.0
    %v1936 = vmul.f32 %v1872, %v1928
    %v1937 = vmul.f32 %v1873, %v1929
    %v1938 = vmul.f32 %v1874, %v1930
    %v1939 = vmul.f32 %v1875, %v1931
    %v1940 = vmul.f32 %v1876, %v1932
    %v1941 = vmul.f32 %v1877, %v1933
    %v1942 = vmul.f32 %v1878, %v1934
    %v1943 = vmul.f32 %v1879, %v1935
    %v1944 = vpack.c.bf16 %v1940, %v1936
    %v1945 = vpack.c.bf16 %v1941, %v1937
    %v1946 = vpack.c.bf16 %v1942, %v1938
    %v1947 = vpack.c.bf16 %v1943, %v1939
    %v1948 = vld [vmem:[#allocation13] sm:$0xf]
    %v1949 = vld [vmem:[#allocation13 + $0x4] sm:$0xf]
    %v1950 = vld [vmem:[#allocation13 + $0x8] sm:$0xf]
    %v1951 = vld [vmem:[#allocation13 + $0xc] sm:$0xf]
    %v1952 = vld [vmem:[#allocation13 + $0x10] sm:$0xf]
    %v1953 = vld [vmem:[#allocation13 + $0x14] sm:$0xf]
    %v1954 = vld [vmem:[#allocation13 + $0x18] sm:$0xf]
    %v1955 = vld [vmem:[#allocation13 + $0x1c] sm:$0xf]
    %v1956 = vld [vmem:[#allocation13 + $0x20] sm:$0xf]
    %v1957 = vld [vmem:[#allocation13 + $0x24] sm:$0xf]
    %v1958 = vld [vmem:[#allocation13 + $0x28] sm:$0xf]
    %v1959 = vld [vmem:[#allocation13 + $0x2c] sm:$0xf]
    %v1960 = vld [vmem:[#allocation13 + $0x30] sm:$0xf]
    %v1961 = vld [vmem:[#allocation13 + $0x34] sm:$0xf]
    %v1962 = vld [vmem:[#allocation13 + $0x38] sm:$0xf]
    %v1963 = vld [vmem:[#allocation13 + $0x3c] sm:$0xf]
    %v1964 = vld [vmem:[#allocation13 + $0x40] sm:$0xf]
    %v1965 = vld [vmem:[#allocation13 + $0x44] sm:$0xf]
    %v1966 = vld [vmem:[#allocation13 + $0x48] sm:$0xf]
    %v1967 = vld [vmem:[#allocation13 + $0x4c] sm:$0xf]
    %v1968 = vld [vmem:[#allocation13 + $0x50] sm:$0xf]
    %v1969 = vld [vmem:[#allocation13 + $0x54] sm:$0xf]
    %v1970 = vld [vmem:[#allocation13 + $0x58] sm:$0xf]
    %v1971 = vld [vmem:[#allocation13 + $0x5c] sm:$0xf]
    %v1972 = vld [vmem:[#allocation13 + $0x60] sm:$0xf]
    %v1973 = vld [vmem:[#allocation13 + $0x64] sm:$0xf]
    %v1974 = vld [vmem:[#allocation13 + $0x68] sm:$0xf]
    %v1975 = vld [vmem:[#allocation13 + $0x6c] sm:$0xf]
    %v1976 = vld [vmem:[#allocation13 + $0x70] sm:$0xf]
    %v1977 = vld [vmem:[#allocation13 + $0x74] sm:$0xf]
    %v1978 = vld [vmem:[#allocation13 + $0x78] sm:$0xf]
    %v1979 = vld [vmem:[#allocation13 + $0x7c] sm:$0xf]
    %v1980 = vld [vmem:[#allocation13 + $0x80] sm:$0xf]
    %v1981 = vld [vmem:[#allocation13 + $0x84] sm:$0xf]
    %v1982 = vld [vmem:[#allocation13 + $0x88] sm:$0xf]
    %v1983 = vld [vmem:[#allocation13 + $0x8c] sm:$0xf]
    %v1984 = vld [vmem:[#allocation13 + $0x90] sm:$0xf]
    %v1985 = vld [vmem:[#allocation13 + $0x94] sm:$0xf]
    %v1986 = vld [vmem:[#allocation13 + $0x98] sm:$0xf]
    %v1987 = vld [vmem:[#allocation13 + $0x9c] sm:$0xf]
    %v1988 = vld [vmem:[#allocation13 + $0xa0] sm:$0xf]
    %v1989 = vld [vmem:[#allocation13 + $0xa4] sm:$0xf]
    %v1990 = vld [vmem:[#allocation13 + $0xa8] sm:$0xf]
    %v1991 = vld [vmem:[#allocation13 + $0xac] sm:$0xf]
    %v1992 = vld [vmem:[#allocation13 + $0xb0] sm:$0xf]
    %v1993 = vld [vmem:[#allocation13 + $0xb4] sm:$0xf]
    %v1994 = vld [vmem:[#allocation13 + $0xb8] sm:$0xf]
    %v1995 = vld [vmem:[#allocation13 + $0xbc] sm:$0xf]
    %v1996 = vld [vmem:[#allocation13 + $0xc0] sm:$0xf]
    %v1997 = vld [vmem:[#allocation13 + $0xc4] sm:$0xf]
    %v1998 = vld [vmem:[#allocation13 + $0xc8] sm:$0xf]
    %v1999 = vld [vmem:[#allocation13 + $0xcc] sm:$0xf]
    %v2000 = vld [vmem:[#allocation13 + $0xd0] sm:$0xf]
    %v2001 = vld [vmem:[#allocation13 + $0xd4] sm:$0xf]
    %v2002 = vld [vmem:[#allocation13 + $0xd8] sm:$0xf]
    %v2003 = vld [vmem:[#allocation13 + $0xdc] sm:$0xf]
    %v2004 = vld [vmem:[#allocation13 + $0xe0] sm:$0xf]
    %v2005 = vld [vmem:[#allocation13 + $0xe4] sm:$0xf]
    %v2006 = vld [vmem:[#allocation13 + $0xe8] sm:$0xf]
    %v2007 = vld [vmem:[#allocation13 + $0xec] sm:$0xf]
    %v2008 = vld [vmem:[#allocation13 + $0xf0] sm:$0xf]
    %v2009 = vld [vmem:[#allocation13 + $0xf4] sm:$0xf]
    %v2010 = vld [vmem:[#allocation13 + $0xf8] sm:$0xf]
    %v2011 = vld [vmem:[#allocation13 + $0xfc] sm:$0xf]
    %v2012 = vld [vmem:[%s12] sm:$0x1]
    %v2014 = vlaneseq
    %v2015 = vshrl.u32 %v2014, 7
    %v2016 = vsub.s32 0, %v2015
    %v2017 = vrot.slane %v2012, %v2016
    %v2083 = vunpack.c.l.b16 %v1948
    %v2084 = vunpack.c.l.b16 %v1949
    %v2085 = vunpack.c.l.b16 %v1950
    %v2086 = vunpack.c.l.b16 %v1951
    %v2087 = vunpack.c.l.b16 %v1952
    %v2088 = vunpack.c.l.b16 %v1953
    %v2089 = vunpack.c.l.b16 %v1954
    %v2090 = vunpack.c.l.b16 %v1955
    %v2091 = vunpack.c.l.b16 %v1956
    %v2092 = vunpack.c.l.b16 %v1957
    %v2093 = vunpack.c.l.b16 %v1958
    %v2094 = vunpack.c.l.b16 %v1959
    %v2095 = vunpack.c.l.b16 %v1960
    %v2096 = vunpack.c.l.b16 %v1961
    %v2097 = vunpack.c.l.b16 %v1962
    %v2098 = vunpack.c.l.b16 %v1963
    %v2099 = vunpack.c.l.b16 %v1964
    %v2100 = vunpack.c.l.b16 %v1965
    %v2101 = vunpack.c.l.b16 %v1966
    %v2102 = vunpack.c.l.b16 %v1967
    %v2103 = vunpack.c.l.b16 %v1968
    %v2104 = vunpack.c.l.b16 %v1969
    %v2105 = vunpack.c.l.b16 %v1970
    %v2106 = vunpack.c.l.b16 %v1971
    %v2107 = vunpack.c.l.b16 %v1972
    %v2108 = vunpack.c.l.b16 %v1973
    %v2109 = vunpack.c.l.b16 %v1974
    %v2110 = vunpack.c.l.b16 %v1975
    %v2111 = vunpack.c.l.b16 %v1976
    %v2112 = vunpack.c.l.b16 %v1977
    %v2113 = vunpack.c.l.b16 %v1978
    %v2114 = vunpack.c.l.b16 %v1979
    %v2115 = vunpack.c.l.b16 %v1980
    %v2116 = vunpack.c.l.b16 %v1981
    %v2117 = vunpack.c.l.b16 %v1982
    %v2118 = vunpack.c.l.b16 %v1983
    %v2119 = vunpack.c.l.b16 %v1984
    %v2120 = vunpack.c.l.b16 %v1985
    %v2121 = vunpack.c.l.b16 %v1986
    %v2122 = vunpack.c.l.b16 %v1987
    %v2123 = vunpack.c.l.b16 %v1988
    %v2124 = vunpack.c.l.b16 %v1989
    %v2125 = vunpack.c.l.b16 %v1990
    %v2126 = vunpack.c.l.b16 %v1991
    %v2127 = vunpack.c.l.b16 %v1992
    %v2128 = vunpack.c.l.b16 %v1993
    %v2129 = vunpack.c.l.b16 %v1994
    %v2130 = vunpack.c.l.b16 %v1995
    %v2131 = vunpack.c.l.b16 %v1996
    %v2132 = vunpack.c.l.b16 %v1997
    %v2133 = vunpack.c.l.b16 %v1998
    %v2134 = vunpack.c.l.b16 %v1999
    %v2135 = vunpack.c.l.b16 %v2000
    %v2136 = vunpack.c.l.b16 %v2001
    %v2137 = vunpack.c.l.b16 %v2002
    %v2138 = vunpack.c.l.b16 %v2003
    %v2139 = vunpack.c.l.b16 %v2004
    %v2140 = vunpack.c.l.b16 %v2005
    %v2141 = vunpack.c.l.b16 %v2006
    %v2142 = vunpack.c.l.b16 %v2007
    %v2143 = vunpack.c.l.b16 %v2008
    %v2144 = vunpack.c.l.b16 %v2009
    %v2145 = vunpack.c.l.b16 %v2010
    %v2146 = vunpack.c.l.b16 %v2011
    %v2147 = vpack.c.b16 %v2084, %v2083
    %v2148 = vpack.c.b16 %v2086, %v2085
    %v2149 = vpack.c.b16 %v2088, %v2087
    %v2150 = vpack.c.b16 %v2090, %v2089
    %v2151 = vpack.c.b16 %v2092, %v2091
    %v2152 = vpack.c.b16 %v2094, %v2093
    %v2153 = vpack.c.b16 %v2096, %v2095
    %v2154 = vpack.c.b16 %v2098, %v2097
    %v2155 = vpack.c.b16 %v2100, %v2099
    %v2156 = vpack.c.b16 %v2102, %v2101
    %v2157 = vpack.c.b16 %v2104, %v2103
    %v2158 = vpack.c.b16 %v2106, %v2105
    %v2159 = vpack.c.b16 %v2108, %v2107
    %v2160 = vpack.c.b16 %v2110, %v2109
    %v2161 = vpack.c.b16 %v2112, %v2111
    %v2162 = vpack.c.b16 %v2114, %v2113
    %v2163 = vpack.c.b16 %v2116, %v2115
    %v2164 = vpack.c.b16 %v2118, %v2117
    %v2165 = vpack.c.b16 %v2120, %v2119
    %v2166 = vpack.c.b16 %v2122, %v2121
    %v2167 = vpack.c.b16 %v2124, %v2123
    %v2168 = vpack.c.b16 %v2126, %v2125
    %v2169 = vpack.c.b16 %v2128, %v2127
    %v2170 = vpack.c.b16 %v2130, %v2129
    %v2171 = vpack.c.b16 %v2132, %v2131
    %v2172 = vpack.c.b16 %v2134, %v2133
    %v2173 = vpack.c.b16 %v2136, %v2135
    %v2174 = vpack.c.b16 %v2138, %v2137
    %v2175 = vpack.c.b16 %v2140, %v2139
    %v2176 = vpack.c.b16 %v2142, %v2141
    %v2177 = vpack.c.b16 %v2144, %v2143
    %v2178 = vpack.c.b16 %v2146, %v2145
    %2211 = vmatprep.subr.bf16.mxu0 0
    %2212 = vmatpush1.bf16.msra.mxu0 %v2147
    %2213 = vmatprep.subr.bf16.mxu0 0
    %2214 = vmatpush1.bf16.msra.mxu0 %v2148
    %2215 = vmatprep.subr.bf16.mxu0 0
    %2216 = vmatpush1.bf16.msra.mxu0 %v2149
    %2217 = vmatprep.subr.bf16.mxu0 0
    %2218 = vmatpush1.bf16.msra.mxu0 %v2150
    %2219 = vmatprep.subr.bf16.mxu0 0
    %2220 = vmatpush1.bf16.msra.mxu0 %v2151
    %2221 = vmatprep.subr.bf16.mxu0 0
    %2222 = vmatpush1.bf16.msra.mxu0 %v2152
    %2223 = vmatprep.subr.bf16.mxu0 0
    %2224 = vmatpush1.bf16.msra.mxu0 %v2153
    %2225 = vmatprep.subr.bf16.mxu0 0
    %2226 = vmatpush1.bf16.msra.mxu0 %v2154
    %2227 = vmatprep.subr.bf16.mxu0 0
    %2228 = vmatpush1.bf16.msra.mxu0 %v2155
    %2229 = vmatprep.subr.bf16.mxu0 0
    %2230 = vmatpush1.bf16.msra.mxu0 %v2156
    %2231 = vmatprep.subr.bf16.mxu0 0
    %2232 = vmatpush1.bf16.msra.mxu0 %v2157
    %2233 = vmatprep.subr.bf16.mxu0 0
    %2234 = vmatpush1.bf16.msra.mxu0 %v2158
    %2235 = vmatprep.subr.bf16.mxu0 0
    %2236 = vmatpush1.bf16.msra.mxu0 %v2159
    %2237 = vmatprep.subr.bf16.mxu0 0
    %2238 = vmatpush1.bf16.msra.mxu0 %v2160
    %2239 = vmatprep.subr.bf16.mxu0 0
    %2240 = vmatpush1.bf16.msra.mxu0 %v2161
    %2241 = vmatprep.subr.bf16.mxu0 0
    %2242 = vmatpush1.bf16.msra.mxu0 %v2162
    %2243 = vmatprep.mubr.bf16.mxu0 %v1945
    %2244 = vmatmul.mubr.bf16.gmra.mrb[0].mxu0 %v1944
    %v2245 = vpop.f32.mrb[0].mxu0
    %v2246 = vadd.f32 %v2017, %v2245
    %v2247 = vpop.f32.mrb[0].mxu0
    %v2248 = vpop.f32.mrb[0].mxu0
    %v2249 = vadd.f32 %v2017, %v2248
    %v2250 = vpop.f32.mrb[0].mxu0
    %2251 = vdwg.mxu0
    %2252 = vmatprep.subr.bf16.mxu0 0
    %2253 = vmatpush1.bf16.msra.mxu0 %v2163
    %2254 = vmatprep.subr.bf16.mxu0 0
    %2255 = vmatpush1.bf16.msra.mxu0 %v2164
    %2256 = vmatprep.subr.bf16.mxu0 0
    %2257 = vmatpush1.bf16.msra.mxu0 %v2165
    %2258 = vmatprep.subr.bf16.mxu0 0
    %2259 = vmatpush1.bf16.msra.mxu0 %v2166
    %2260 = vmatprep.subr.bf16.mxu0 0
    %2261 = vmatpush1.bf16.msra.mxu0 %v2167
    %2262 = vmatprep.subr.bf16.mxu0 0
    %2263 = vmatpush1.bf16.msra.mxu0 %v2168
    %2264 = vmatprep.subr.bf16.mxu0 0
    %2265 = vmatpush1.bf16.msra.mxu0 %v2169
    %2266 = vmatprep.subr.bf16.mxu0 0
    %2267 = vmatpush1.bf16.msra.mxu0 %v2170
    %2268 = vmatprep.subr.bf16.mxu0 0
    %2269 = vmatpush1.bf16.msra.mxu0 %v2171
    %2270 = vmatprep.subr.bf16.mxu0 0
    %2271 = vmatpush1.bf16.msra.mxu0 %v2172
    %2272 = vmatprep.subr.bf16.mxu0 0
    %2273 = vmatpush1.bf16.msra.mxu0 %v2173
    %2274 = vmatprep.subr.bf16.mxu0 0
    %2275 = vmatpush1.bf16.msra.mxu0 %v2174
    %2276 = vmatprep.subr.bf16.mxu0 0
    %2277 = vmatpush1.bf16.msra.mxu0 %v2175
    %2278 = vmatprep.subr.bf16.mxu0 0
    %2279 = vmatpush1.bf16.msra.mxu0 %v2176
    %2280 = vmatprep.subr.bf16.mxu0 0
    %2281 = vmatpush1.bf16.msra.mxu0 %v2177
    %2282 = vmatprep.subr.bf16.mxu0 0
    %2283 = vmatpush1.bf16.msra.mxu0 %v2178
    %2284 = vmatprep.mubr.bf16.mxu0 %v1947
    %2285 = vmatmul.mubr.bf16.gmra.mrb[0].mxu0 %v1946
    %v2286 = vpop.f32.mrb[0].mxu0
    %v2287 = vadd.f32 %v2246, %v2286
    %v2288 = vpop.f32.mrb[0].mxu0
    %v2289 = vpop.f32.mrb[0].mxu0
    %v2290 = vadd.f32 %v2249, %v2289
    %v2291 = vpop.f32.mrb[0].mxu0
    %2292 = vdwg.mxu0
    %v2293 = vadd.f32 %v1529, %v2287
    %v2294 = vadd.f32 %v1530, %v2290
    %2295 = vst [vmem:[#allocation14] sm:$0xff] %v2293
    %2296 = vst [vmem:[#allocation14 + $0x8] sm:$0xff] %v2294
    // Predicated region
    $region82: #{tpu_custom_call.1} parent=1 // pred_check
      _
    $region83: #{tpu_custom_call.1} parent=1 // pred_check_branch
      %2298 = sbr.rel (0) target = $region85
    $region84: #{tpu_custom_call.1} parent=1 // pred_region
      %s2300 = ssub.s32 256, 256
      %2301 = vsyncadd [#allocation4], %s2300
      %s2302 = sshll.u32 [#allocation14], 4
      %s2303 = int_to_ptr.vmem [resolvable:$true] %s2302
      %2308 = dma.vmem_to_hbm [thread:$0]  %s2303, 256, %s13, [#allocation4], 128, 128, 8
    $region85: #{tpu_custom_call.1} parent=1 // pred_fallthru
      _
    // Predicated region
    $region86: #{tpu_custom_call.1} parent=1 // pred_check
      _
    $region87: #{tpu_custom_call.1} parent=1 // pred_check_branch
      %2310 = sbr.rel (0) target = $region89
    $region88: #{tpu_custom_call.1} parent=1 // pred_region
      %2311 = dma.done [#allocation4], 256
    $region89: #{tpu_custom_call.1} parent=1 // pred_fallthru
      _
    %2312 = vsyncpa [#allocation3], 1
    %2313 = vsyncpa [#allocation6], 1
    %2314 = vsyncpa [#allocation9], 1
    %2315 = vsyncpa [#allocation12], 1
    %2316 = vsyncpa [#allocation4], 1

</llo_original>
